<compile_context>
chip_gen: v6e
topology: v6e:2x2x1
jax: 0.10.0
libtpu: 0.0.40
codegen_flags: <defaults>
</compile_context>

<pallas_src>
import math
import numpy as np
import jax
import jax.numpy as jnp
from jax.experimental import pallas as pl
from jax.experimental.pallas import tpu as pltpu


# ----------------------------------------------------------------------------
# Square-wave activation as an odd polynomial in sin(a)
# ----------------------------------------------------------------------------

def _squarer_poly_coeffs(n):
    """Coefficients c_j such that
         sum_{k=1,3,...,2n-1} sin(k*a)/k  ==  sum_j c_j * s**(2j+1),  s = sin(a),
    using sin(k*a) = (-1)**((k-1)/2) * T_k(sin(a)) for odd k.
    (The square wave's overall 4/pi is folded into the downstream weights.)
    For n=2: (2.0, -4/3)."""
    total = np.zeros(2 * n, dtype=np.float64)
    for j in range(n):
        k = 2 * j + 1
        basis = np.zeros(k + 1, dtype=np.float64)
        basis[k] = 1.0
        pk = np.polynomial.chebyshev.cheb2poly(basis)       # T_k power series
        total[:k + 1] += ((-1.0) ** j / k) * pk
    return tuple(float(total[2 * j + 1]) for j in range(n))


def _squarer_poly(arg, coeffs):
    """Evaluate the odd polynomial sum_j c_j * sin(arg)**(2j+1).

    Exactly one hardware sin (EUP) per element; the rest is cheap VPU work
    (Horner in s^2: ~2n mul/adds per element)."""
    s = jnp.sin(arg)
    if len(coeffs) == 1:
        return coeffs[0] * s
    s2 = s * s
    acc = coeffs[-1] * s2 + coeffs[-2]
    for c in reversed(coeffs[:-2]):
        acc = acc * s2 + c
    return s * acc


# ----------------------------------------------------------------------------
# Fused kernel
# ----------------------------------------------------------------------------

def make_siren_kernel(coeffs):
    coeffs = tuple(float(c) for c in coeffs)

    def siren_kernel(xt_ref, w0_ref, b0_ref, w1_ref, b1_ref, wf_ref, bf_ref,
                     o_ref):
        # Transposed layout: batch on lanes, features on sublanes.
        xt = xt_ref[...]                                     # (2, TB)

        # --- layer 0: (H,2) @ (2,TB) on the (otherwise idle) MXU.
        #     Weights/bias pre-scaled by omega_0 in the wrapper.
        a0 = jnp.dot(w0_ref[...], xt,
                     preferred_element_type=jnp.float32) + b0_ref[...]
        h0 = _squarer_poly(a0, coeffs)          # (H, TB); its 4/pi lives in W1

        # --- layer 1: the one real matmul (weights pre-scaled by
        #     omega_h * 4/pi, bias by omega_h).
        a1 = jnp.dot(w1_ref[...], h0,
                     preferred_element_type=jnp.float32) + b1_ref[...]
        h1 = _squarer_poly(a1, coeffs)          # (H, TB); its 4/pi lives in wf

        # --- final Linear(H -> 1): N=1 is degenerate for the MXU, so VPU
        #     multiply + sublane reduce (XLU) -> lane-dense (1, TB) block.
        o_ref[...] = (jnp.sum(wf_ref[...] * h1, axis=0, keepdims=True)
                      + bf_ref[...])

    return siren_kernel


def _round_up(x, m):
    return (x + m - 1) // m * m


def image_siren_variant2(x, params, *, first_omega=30.0, hidden_omega=30.0,
                         n=2, tile_b=None):
    """x: (B, 2) float32 coordinates.

    params (PyTorch layout): w0 (H,2), b0 (H,), w1 (H,H), b1 (H,), wf (1,H),
    bf (1,).  Returns (B, 1) float32.
    """
    w0, b0, w1, b1, wf, bf = params
    B = x.shape[0]
    H = w0.shape[0]
    n = int(n)

    # ---- batch tiling --------------------------------------------------
    # Big lane-dense tiles amortize the ~600-cycle per-grid-step overhead.
    # Keep the grid count even (>= 2) so the "parallel" axis splits cleanly
    # across both v7x TensorCores.  The 8192 cap keeps the (H, tile_b) f32
    # intermediates + double-buffered IO blocks to a few MiB: safe under
    # v5e's 16 MiB scoped-VMEM default without any vmem_limit_bytes bump.
    if tile_b is None:
        cap = 8192
        nt = max(2, pl.cdiv(B, cap))
        if nt % 2:
            nt += 1
        tile_b = _round_up(pl.cdiv(B, nt), 128)
        B_pad = nt * tile_b
    else:
        assert tile_b % 128 == 0
        B_pad = _round_up(B, tile_b)

    if B_pad != B:
        x = jnp.pad(x, ((0, B_pad - B), (0, 0)))
    xt = x.T.astype(jnp.float32)                             # (2, B_pad)

    f32 = jnp.float32
    four_over_pi = 4.0 / math.pi
    # Fold omega into the tiny weights/biases (omega*(Wx+b) == (omega*W)x +
    # omega*b) and fold each squarer's 4/pi output scale into the DOWNSTREAM
    # weight (numerically neutral at f32, removes per-element multiplies).
    w0s = (first_omega * w0).astype(f32)                         # (H, 2)
    b0s = (first_omega * b0).astype(f32).reshape(H, 1)           # (H, 1)
    w1s = (hidden_omega * four_over_pi * w1).astype(f32)         # (H, H)
    b1s = (hidden_omega * b1).astype(f32).reshape(H, 1)          # (H, 1)
    wfc = (four_over_pi * wf).astype(f32).reshape(H, 1)          # (H, 1) == wf.T
    bfc = bf.astype(f32).reshape(1, 1)                           # (1, 1)

    coeffs = _squarer_poly_coeffs(n)
    kernel = make_siren_kernel(coeffs)
    grid = (B_pad // tile_b,)

    # Advisory cost hint (one sin per element per SquarerLayer).
    param_bytes = 4 * (w0s.size + b0s.size + w1s.size + b1s.size
                       + wfc.size + bfc.size)
    cost = pl.CostEstimate(
        flops=int(B_pad * (4 * H + 2 * H * H + 2 * H + 2 * H * (2 * n + 2))),
        transcendentals=int(2 * H * B_pad),
        bytes_accessed=int(B_pad * 4 * 3 + param_bytes),
    )

    grid_spec = pltpu.PrefetchScalarGridSpec(
        num_scalar_prefetch=0,
        grid=grid,
        in_specs=[
            pl.BlockSpec((2, tile_b), lambda i: (0, i)),    # x^T tile (lane-dense)
            pl.BlockSpec((H, 2), lambda i: (0, 0)),         # W0  (grid-invariant)
            pl.BlockSpec((H, 1), lambda i: (0, 0)),         # b0
            pl.BlockSpec((H, H), lambda i: (0, 0)),         # W1
            pl.BlockSpec((H, 1), lambda i: (0, 0)),         # b1
            pl.BlockSpec((H, 1), lambda i: (0, 0)),         # wf (stored transposed)
            pl.BlockSpec((1, 1), lambda i: (0, 0)),         # bf
        ],
        out_specs=pl.BlockSpec((1, tile_b), lambda i: (0, i)),   # lane-dense out
    )

    out_t = pl.pallas_call(
        kernel,
        out_shape=jax.ShapeDtypeStruct((1, B_pad), jnp.float32),
        grid_spec=grid_spec,
        compiler_params=pltpu.CompilerParams(dimension_semantics=("parallel",)),
        cost_estimate=cost,
    )(xt, w0s, b0s, w1s, b1s, wfc, bfc)

    return out_t[0, :B].reshape(B, 1)


# ----------------------------------------------------------------------------
# Reference / init (direct transliteration of the PyTorch module)
# ----------------------------------------------------------------------------

def siren_init(key, in_features, out_features, *, is_first, omega):
    # Matches siren_init_ on the weight; PyTorch Linear default bias init.
    if is_first:
        bound = 1.0 / in_features
    else:
        bound = math.sqrt(6.0 / in_features) / omega
    kw, kb = jax.random.split(key)
    w = jax.random.uniform(kw, (out_features, in_features), jnp.float32,
                           minval=-bound, maxval=bound)
    bb = 1.0 / math.sqrt(in_features)
    b = jax.random.uniform(kb, (out_features,), jnp.float32, minval=-bb, maxval=bb)
    return w, b


def reference_forward(x, params, *, first_omega=30.0, hidden_omega=30.0, n=2):
    w0, b0, w1, b1, wf, bf = params

    def squarer(arg):
        out = jnp.zeros_like(arg)
        for k in range(1, 2 * n, 2):
            out = out + jnp.sin(float(k) * arg) / float(k)
        return out * (4.0 / math.pi)

    h0 = squarer(first_omega * (x @ w0.T + b0))
    h1 = squarer(hidden_omega * (h0 @ w1.T + b1))
    return h1 @ wf.T + bf


if __name__ == "__main__":
    B = 1000           # deliberately not a tile multiple: exercises padding path
    H = 32             # hidden_features
    FIRST_OMEGA = 30.0
    HIDDEN_OMEGA = 30.0
    N = 2              # terms k = 1, 3 in the square-wave series

    key = jax.random.PRNGKey(0)
    k_x, k0, k1, kf = jax.random.split(key, 4)

    # coordinates in [-1, 1]^2, like a SIREN image-coordinate grid
    x = jax.random.uniform(k_x, (B, 2), jnp.float32, minval=-1.0, maxval=1.0)

    w0, b0 = siren_init(k0, 2, H, is_first=True, omega=FIRST_OMEGA)
    w1, b1 = siren_init(k1, H, H, is_first=False, omega=HIDDEN_OMEGA)
    wf, bf = siren_init(kf, H, 1, is_first=False, omega=HIDDEN_OMEGA)
    params = (w0, b0, w1, b1, wf, bf)

    out = image_siren_variant2(x, params,
                               first_omega=FIRST_OMEGA,
                               hidden_omega=HIDDEN_OMEGA,
                               n=N)
    out = jax.block_until_ready(out)

    ref = reference_forward(x, params,
                            first_omega=FIRST_OMEGA,
                            hidden_omega=HIDDEN_OMEGA,
                            n=N)
    # Tolerance note: f32 reassociation (folded omegas / 4/pi, FMA/MXU
    # ordering, Chebyshev identity for sin(3a)) is amplified by omega=30
    # across two layers.
    np.testing.assert_allclose(np.asarray(out), np.asarray(ref),
                               rtol=1e-3, atol=1e-3)
    assert out.shape == (B, 1)
    print("KERNEL_OK")
</pallas_src>

<mosaic_0001>
module attributes {stable_mosaic.version = 11 : i64} {
  func.func @siren_kernel(%arg0: i32, %arg1: memref<2x512xf32, #tpu.memory_space<vmem>>, %arg2: memref<32x2xf32, #tpu.memory_space<vmem>>, %arg3: memref<32x1xf32, #tpu.memory_space<vmem>>, %arg4: memref<32x32xf32, #tpu.memory_space<vmem>>, %arg5: memref<32x1xf32, #tpu.memory_space<vmem>>, %arg6: memref<32x1xf32, #tpu.memory_space<vmem>>, %arg7: memref<1x1xf32, #tpu.memory_space<vmem>>, %arg8: memref<1x512xf32, #tpu.memory_space<vmem>>) attributes {dimension_semantics = [#tpu.dimension_semantics<parallel>], iteration_bounds = array<i64: 2>, scalar_prefetch = 0 : i64, scratch_operands = 0 : i64, tpu.core_type = #tpu.core_type<tc>, window_params = [{transform_indices = @transform_0, window_bounds = array<i64: 2, 512>}, {pipeline_mode = #tpu.pipeline_mode<synchronous>, transform_indices = @transform_1, window_bounds = array<i64: 32, 2>}, {pipeline_mode = #tpu.pipeline_mode<synchronous>, transform_indices = @transform_2, window_bounds = array<i64: 32, 1>}, {pipeline_mode = #tpu.pipeline_mode<synchronous>, transform_indices = @transform_3, window_bounds = array<i64: 32, 32>}, {pipeline_mode = #tpu.pipeline_mode<synchronous>, transform_indices = @transform_4, window_bounds = array<i64: 32, 1>}, {pipeline_mode = #tpu.pipeline_mode<synchronous>, transform_indices = @transform_5, window_bounds = array<i64: 32, 1>}, {pipeline_mode = #tpu.pipeline_mode<synchronous>, transform_indices = @transform_6, window_bounds = array<i64: 1, 1>}, {transform_indices = @transform_7, window_bounds = array<i64: 1, 512>}]} {
    %c0 = arith.constant 0 : index
    %c0_0 = arith.constant 0 : index
    %0 = vector.load %arg1[%c0, %c0_0] : memref<2x512xf32, #tpu.memory_space<vmem>>, vector<2x512xf32>
    %c0_1 = arith.constant 0 : index
    %c0_2 = arith.constant 0 : index
    %1 = vector.load %arg2[%c0_1, %c0_2] : memref<32x2xf32, #tpu.memory_space<vmem>>, vector<32x2xf32>
    %cst = arith.constant dense<0.000000e+00> : vector<32x512xf32>
    %2 = tpu.matmul %1, %0, %cst {dimension_numbers = #tpu.dot_dimension_numbers<[1], [0], [0], [1], [0, 0, 1, 1], [], []>} : vector<32x2xf32>, vector<2x512xf32>, vector<32x512xf32> -> vector<32x512xf32>
    %c0_3 = arith.constant 0 : index
    %c0_4 = arith.constant 0 : index
    %3 = vector.load %arg3[%c0_3, %c0_4] : memref<32x1xf32, #tpu.memory_space<vmem>>, vector<32x1xf32>
    %4 = vector.broadcast %3 : vector<32x1xf32> to vector<32x512xf32>
    %5 = arith.addf %2, %4 : vector<32x512xf32>
    %6 = math.sin %5 : vector<32x512xf32>
    %7 = arith.mulf %6, %6 : vector<32x512xf32>
    %cst_5 = arith.constant -1.33333337 : f32
    %8 = vector.broadcast %cst_5 : f32 to vector<32x512xf32>
    %9 = arith.mulf %8, %7 : vector<32x512xf32>
    %cst_6 = arith.constant 2.000000e+00 : f32
    %10 = vector.broadcast %cst_6 : f32 to vector<32x512xf32>
    %11 = arith.addf %9, %10 : vector<32x512xf32>
    %12 = arith.mulf %6, %11 : vector<32x512xf32>
    %c0_7 = arith.constant 0 : index
    %c0_8 = arith.constant 0 : index
    %13 = vector.load %arg4[%c0_7, %c0_8] : memref<32x32xf32, #tpu.memory_space<vmem>>, vector<32x32xf32>
    %cst_9 = arith.constant dense<0.000000e+00> : vector<32x512xf32>
    %14 = tpu.matmul %13, %12, %cst_9 {dimension_numbers = #tpu.dot_dimension_numbers<[1], [0], [0], [1], [0, 0, 1, 1], [], []>} : vector<32x32xf32>, vector<32x512xf32>, vector<32x512xf32> -> vector<32x512xf32>
    %c0_10 = arith.constant 0 : index
    %c0_11 = arith.constant 0 : index
    %15 = vector.load %arg5[%c0_10, %c0_11] : memref<32x1xf32, #tpu.memory_space<vmem>>, vector<32x1xf32>
    %16 = vector.broadcast %15 : vector<32x1xf32> to vector<32x512xf32>
    %17 = arith.addf %14, %16 : vector<32x512xf32>
    %18 = math.sin %17 : vector<32x512xf32>
    %19 = arith.mulf %18, %18 : vector<32x512xf32>
    %cst_12 = arith.constant -1.33333337 : f32
    %20 = vector.broadcast %cst_12 : f32 to vector<32x512xf32>
    %21 = arith.mulf %20, %19 : vector<32x512xf32>
    %cst_13 = arith.constant 2.000000e+00 : f32
    %22 = vector.broadcast %cst_13 : f32 to vector<32x512xf32>
    %23 = arith.addf %21, %22 : vector<32x512xf32>
    %24 = arith.mulf %18, %23 : vector<32x512xf32>
    %c0_14 = arith.constant 0 : index
    %c0_15 = arith.constant 0 : index
    %25 = vector.load %arg6[%c0_14, %c0_15] : memref<32x1xf32, #tpu.memory_space<vmem>>, vector<32x1xf32>
    %26 = vector.broadcast %25 : vector<32x1xf32> to vector<32x512xf32>
    %27 = arith.mulf %26, %24 : vector<32x512xf32>
    %cst_16 = arith.constant dense<0.000000e+00> : vector<512xf32>
    %28 = vector.multi_reduction <add>, %27, %cst_16 [0] : vector<32x512xf32> to vector<512xf32>
    %29 = vector.shape_cast %28 : vector<512xf32> to vector<1x512xf32>
    %c0_17 = arith.constant 0 : index
    %c0_18 = arith.constant 0 : index
    %30 = vector.load %arg7[%c0_17, %c0_18] : memref<1x1xf32, #tpu.memory_space<vmem>>, vector<1x1xf32>
    %31 = vector.broadcast %30 : vector<1x1xf32> to vector<1x512xf32>
    %32 = arith.addf %29, %31 : vector<1x512xf32>
    %c0_19 = arith.constant 0 : index
    %c0_20 = arith.constant 0 : index
    %33 = vector.load %arg8[%c0_19, %c0_20] : memref<1x512xf32, #tpu.memory_space<vmem>>, vector<1x512xf32>
    tpu.vector_store %arg8[%c0_19, %c0_20], %32 {strides = array<i32>} : memref<1x512xf32, #tpu.memory_space<vmem>>, vector<1x512xf32>,
    return
  }
  func.func @transform_0(%arg0: i32) -> (i32, i32) {
    %c0_i32 = arith.constant 0 : i32
    %c0_i32_0 = arith.constant 0 : i32
    return %c0_i32, %arg0 : i32, i32
  }
  func.func @transform_1(%arg0: i32) -> (i32, i32) {
    %c0_i32 = arith.constant 0 : i32
    %c0_i32_0 = arith.constant 0 : i32
    %c0_i32_1 = arith.constant 0 : i32
    return %c0_i32, %c0_i32_0 : i32, i32
  }
  func.func @transform_2(%arg0: i32) -> (i32, i32) {
    %c0_i32 = arith.constant 0 : i32
    %c0_i32_0 = arith.constant 0 : i32
    %c0_i32_1 = arith.constant 0 : i32
    return %c0_i32, %c0_i32_0 : i32, i32
  }
  func.func @transform_3(%arg0: i32) -> (i32, i32) {
    %c0_i32 = arith.constant 0 : i32
    %c0_i32_0 = arith.constant 0 : i32
    %c0_i32_1 = arith.constant 0 : i32
    return %c0_i32, %c0_i32_0 : i32, i32
  }
  func.func @transform_4(%arg0: i32) -> (i32, i32) {
    %c0_i32 = arith.constant 0 : i32
    %c0_i32_0 = arith.constant 0 : i32
    %c0_i32_1 = arith.constant 0 : i32
    return %c0_i32, %c0_i32_0 : i32, i32
  }
  func.func @transform_5(%arg0: i32) -> (i32, i32) {
    %c0_i32 = arith.constant 0 : i32
    %c0_i32_0 = arith.constant 0 : i32
    %c0_i32_1 = arith.constant 0 : i32
    return %c0_i32, %c0_i32_0 : i32, i32
  }
  func.func @transform_6(%arg0: i32) -> (i32, i32) {
    %c0_i32 = arith.constant 0 : i32
    %c0_i32_0 = arith.constant 0 : i32
    %c0_i32_1 = arith.constant 0 : i32
    return %c0_i32, %c0_i32_0 : i32, i32
  }
  func.func @transform_7(%arg0: i32) -> (i32, i32) {
    %c0_i32 = arith.constant 0 : i32
    %c0_i32_0 = arith.constant 0 : i32
    return %c0_i32, %arg0 : i32, i32
  }
}

</mosaic_0001>

<llo_original>
// kernel: tpu_custom_call.1
$region0: #{tpu_custom_call.1}
  #allocation0 [shape = 'u32[]', space=smem, size = 0x4, offset = 0x4, fixed_abs, tag = 'smem constant byte address 0x4 - core index']
  #allocation1 [shape = 'u32[144,128]{1,0:T(1,128)}', space=vmem, size = 0x12000, scoped, tag = 'internal scratch']
  #allocation2 [shape = 'f32[1,1]{1,0:T(1,128)S(1)}', space=vmem, size = 0x200, scoped, tag = 'scoped memory for tpu_custom_call.1']
  %s0 = inlined_call_operand.vmem [shape: f32[2,1024], index: 0, kind: input, shape index: {}]
  %s1 = inlined_call_operand.vmem [shape: f32[32,2], index: 1, kind: input, shape index: {}]
  %s2 = inlined_call_operand.vmem [shape: f32[32,1], index: 2, kind: input, shape index: {}]
  %s3 = inlined_call_operand.vmem [shape: f32[32,32], index: 3, kind: input, shape index: {}]
  %s4 = inlined_call_operand.vmem [shape: f32[32,1], index: 4, kind: input, shape index: {}]
  %s5 = inlined_call_operand.vmem [shape: f32[32,1], index: 5, kind: input, shape index: {}]
  %s6 = inlined_call_operand.<no memory space> [shape: f32[1,1], index: 6, kind: input, shape index: {}]
  %s7 = inlined_call_operand.hbm [shape: f32[1,1024], index: 7, kind: output, shape index: {}]
  %s8 = sld [smem:[#allocation0]]
  $region61: #{tpu_custom_call.1} parent=0
    _
  %s10 = ssub.s32 1, %s8
  %s11 = scalar_select 0, %s10, %s8
  %v12 = vstv %s6
  %13 = vst [vmem:[#allocation2] sm:$0x1] %v12
  $region1: #{tpu_custom_call.1} parent=0
    #allocation3 [shape = 'u8[4096]{0}', space=vmem, size = 0x1000, scoped, tag = 'output window, operand 0']
    #allocation4 [shape = 's32[2]{0}', space=sflag, size = 0x8, scoped, tag = 'scoped memory for tpu_custom_call.1']
    %14 = vsyncpa [#allocation4], 0
    %s15 = scalar_lea.sflag [#allocation4], 1
    %16 = vsyncpa %s15, 0
    loop: start=0, step=1, limit=4
    $region2: #{tpu_custom_call.1} parent=1 // loop_pre_header
      _
    $region3: #{tpu_custom_call.1} parent=1 // loop_header
      %s18 = sphi 0, %s22
      %p19 = scmp.ge.s32.totalorder %s18, 4
      %s28 = sphi 0, %s30
      %s31 = sphi 0, %s28
      %s32 = sphi 0, %s31
      %s48 = sphi 0, %s32
      %s52 = sphi 0, %s52
      %s54 = sphi 0, %s52
      %s55 = sphi 0, %s54
      %s69 = sphi 0, %s55
      %s73 = sphi 0, %s73
      %s75 = sphi 0, %s73
      %s76 = sphi 0, %s75
      %s90 = sphi 0, %s76
      %s94 = sphi 0, %s94
      %s96 = sphi 0, %s94
      %s97 = sphi 0, %s96
      %s111 = sphi 0, %s97
      %s115 = sphi 0, %s115
      %s117 = sphi 0, %s115
      %s118 = sphi 0, %s117
      %s132 = sphi 0, %s118
      %s136 = sphi 0, %s136
      %s138 = sphi 0, %s136
      %s139 = sphi 0, %s138
      %s153 = sphi 0, %s139
      %s157 = sphi 0, %s157
      %s159 = sphi 0, %s157
      %s160 = sphi 0, %s159
      %s174 = sphi 0, %s160
      %s180 = sphi 0, %s182
      %s183 = sphi 0, %s180
      %s184 = sphi 0, %s183
      %s200 = sphi 0, %s184
    $region4: #{tpu_custom_call.1} parent=1 // loop_header_branch
      %21 = sbr.rel (%p19) target = $region8
    $region5: #{tpu_custom_call.1} parent=1 // loop_body
      %s23 = ssub.s32 %s18, 1
      %s24 = ssub.s32 %s18, 2
      %s25 = sadd.s32 %s18, 1
      %s26 = ssub.s32 %s18, %s25
      %p27 = scmp.eq.s32.totalorder %s26, 0
      %s29 = sadd.s32 %s28, 1
      %s30 = scalar_select %p27, %s28, %s29
      %p33 = pneg %p27
      %p34 = scmp.eq.s32.totalorder %s18, 1
      %p35 = por %p33, %p34
      %p36 = scmp.ne.s32.totalorder %s28, %s31
      %p37 = scmp.eq.s32.totalorder %s18, 0
      %p38 = por %p36, %p37
      %p39 = scmp.ne.s32.totalorder %s28, %s31
      %p40 = scmp.eq.s32.totalorder %s23, 1
      %p41 = por %p39, %p40
      %p42 = scmp.ne.s32.totalorder %s31, %s32
      %p43 = scmp.eq.s32.totalorder %s23, 0
      %p44 = por %p42, %p43
      %p45 = scmp.ne.s32.totalorder %s31, %s32
      %p46 = scmp.eq.s32.totalorder %s24, 1
      %p47 = por %p45, %p46
      %p49 = scmp.ne.s32.totalorder %s32, %s48
      %p50 = scmp.eq.s32.totalorder %s24, 0
      %p51 = por %p49, %p50
      %s53 = sadd.s32 %s52, 1
      %p56 = scmp.eq.s32.totalorder %s18, 1
      %p57 = scmp.ne.s32.totalorder %s52, %s54
      %p58 = scmp.eq.s32.totalorder %s18, 0
      %p59 = por %p57, %p58
      %p60 = scmp.ne.s32.totalorder %s52, %s54
      %p61 = scmp.eq.s32.totalorder %s23, 1
      %p62 = por %p60, %p61
      %p63 = scmp.ne.s32.totalorder %s54, %s55
      %p64 = scmp.eq.s32.totalorder %s23, 0
      %p65 = por %p63, %p64
      %p66 = scmp.ne.s32.totalorder %s54, %s55
      %p67 = scmp.eq.s32.totalorder %s24, 1
      %p68 = por %p66, %p67
      %p70 = scmp.ne.s32.totalorder %s55, %s69
      %p71 = scmp.eq.s32.totalorder %s24, 0
      %p72 = por %p70, %p71
      %s74 = sadd.s32 %s73, 1
      %p77 = scmp.eq.s32.totalorder %s18, 1
      %p78 = scmp.ne.s32.totalorder %s73, %s75
      %p79 = scmp.eq.s32.totalorder %s18, 0
      %p80 = por %p78, %p79
      %p81 = scmp.ne.s32.totalorder %s73, %s75
      %p82 = scmp.eq.s32.totalorder %s23, 1
      %p83 = por %p81, %p82
      %p84 = scmp.ne.s32.totalorder %s75, %s76
      %p85 = scmp.eq.s32.totalorder %s23, 0
      %p86 = por %p84, %p85
      %p87 = scmp.ne.s32.totalorder %s75, %s76
      %p88 = scmp.eq.s32.totalorder %s24, 1
      %p89 = por %p87, %p88
      %p91 = scmp.ne.s32.totalorder %s76, %s90
      %p92 = scmp.eq.s32.totalorder %s24, 0
      %p93 = por %p91, %p92
      %s95 = sadd.s32 %s94, 1
      %p98 = scmp.eq.s32.totalorder %s18, 1
      %p99 = scmp.ne.s32.totalorder %s94, %s96
      %p100 = scmp.eq.s32.totalorder %s18, 0
      %p101 = por %p99, %p100
      %p102 = scmp.ne.s32.totalorder %s94, %s96
      %p103 = scmp.eq.s32.totalorder %s23, 1
      %p104 = por %p102, %p103
      %p105 = scmp.ne.s32.totalorder %s96, %s97
      %p106 = scmp.eq.s32.totalorder %s23, 0
      %p107 = por %p105, %p106
      %p108 = scmp.ne.s32.totalorder %s96, %s97
      %p109 = scmp.eq.s32.totalorder %s24, 1
      %p110 = por %p108, %p109
      %p112 = scmp.ne.s32.totalorder %s97, %s111
      %p113 = scmp.eq.s32.totalorder %s24, 0
      %p114 = por %p112, %p113
      %s116 = sadd.s32 %s115, 1
      %p119 = scmp.eq.s32.totalorder %s18, 1
      %p120 = scmp.ne.s32.totalorder %s115, %s117
      %p121 = scmp.eq.s32.totalorder %s18, 0
      %p122 = por %p120, %p121
      %p123 = scmp.ne.s32.totalorder %s115, %s117
      %p124 = scmp.eq.s32.totalorder %s23, 1
      %p125 = por %p123, %p124
      %p126 = scmp.ne.s32.totalorder %s117, %s118
      %p127 = scmp.eq.s32.totalorder %s23, 0
      %p128 = por %p126, %p127
      %p129 = scmp.ne.s32.totalorder %s117, %s118
      %p130 = scmp.eq.s32.totalorder %s24, 1
      %p131 = por %p129, %p130
      %p133 = scmp.ne.s32.totalorder %s118, %s132
      %p134 = scmp.eq.s32.totalorder %s24, 0
      %p135 = por %p133, %p134
      %s137 = sadd.s32 %s136, 1
      %p140 = scmp.eq.s32.totalorder %s18, 1
      %p141 = scmp.ne.s32.totalorder %s136, %s138
      %p142 = scmp.eq.s32.totalorder %s18, 0
      %p143 = por %p141, %p142
      %p144 = scmp.ne.s32.totalorder %s136, %s138
      %p145 = scmp.eq.s32.totalorder %s23, 1
      %p146 = por %p144, %p145
      %p147 = scmp.ne.s32.totalorder %s138, %s139
      %p148 = scmp.eq.s32.totalorder %s23, 0
      %p149 = por %p147, %p148
      %p150 = scmp.ne.s32.totalorder %s138, %s139
      %p151 = scmp.eq.s32.totalorder %s24, 1
      %p152 = por %p150, %p151
      %p154 = scmp.ne.s32.totalorder %s139, %s153
      %p155 = scmp.eq.s32.totalorder %s24, 0
      %p156 = por %p154, %p155
      %s158 = sadd.s32 %s157, 1
      %p161 = scmp.eq.s32.totalorder %s18, 1
      %p162 = scmp.ne.s32.totalorder %s157, %s159
      %p163 = scmp.eq.s32.totalorder %s18, 0
      %p164 = por %p162, %p163
      %p165 = scmp.ne.s32.totalorder %s157, %s159
      %p166 = scmp.eq.s32.totalorder %s23, 1
      %p167 = por %p165, %p166
      %p168 = scmp.ne.s32.totalorder %s159, %s160
      %p169 = scmp.eq.s32.totalorder %s23, 0
      %p170 = por %p168, %p169
      %p171 = scmp.ne.s32.totalorder %s159, %s160
      %p172 = scmp.eq.s32.totalorder %s24, 1
      %p173 = por %p171, %p172
      %p175 = scmp.ne.s32.totalorder %s160, %s174
      %p176 = scmp.eq.s32.totalorder %s24, 0
      %p177 = por %p175, %p176
      %s178 = ssub.s32 %s18, %s25
      %p179 = scmp.eq.s32.totalorder %s178, 0
      %s181 = sadd.s32 %s180, 1
      %s182 = scalar_select %p179, %s180, %s181
      %p185 = pneg %p179
      %p186 = scmp.eq.s32.totalorder %s18, 1
      %p187 = por %p185, %p186
      %p188 = scmp.ne.s32.totalorder %s180, %s183
      %p189 = scmp.eq.s32.totalorder %s18, 0
      %p190 = por %p188, %p189
      %p191 = scmp.ne.s32.totalorder %s180, %s183
      %p192 = scmp.eq.s32.totalorder %s23, 1
      %p193 = por %p191, %p192
      %p194 = scmp.ne.s32.totalorder %s183, %s184
      %p195 = scmp.eq.s32.totalorder %s23, 0
      %p196 = por %p194, %p195
      %p197 = scmp.ne.s32.totalorder %s183, %s184
      %p198 = scmp.eq.s32.totalorder %s24, 1
      %p199 = por %p197, %p198
      %p201 = scmp.ne.s32.totalorder %s184, %s200
      %p202 = scmp.eq.s32.totalorder %s24, 0
      %p203 = por %p201, %p202
      %p204 = scmp.le.s32.totalorder 1, %s18
      %p205 = scmp.lt.s32.totalorder %s18, 3
      %p206 = pnand %p204, %p205
      %p207 = pneg %p206
      // Predicated region
      $region9: #{tpu_custom_call.1} parent=5 // pred_check
        _
      $region10: #{tpu_custom_call.1} parent=5 // pred_check_branch
        %209 = sbr.rel (%p206) target = $region12
      $region11: #{tpu_custom_call.1} parent=5 // pred_region
        %s210 = ssub.s32 %s18, 1
        // Predicated region
        $region13: #{tpu_custom_call.1} parent=11 // pred_check
          %p211 = pneg %p65
        $region14: #{tpu_custom_call.1} parent=11 // pred_check_branch
          %213 = sbr.rel (%p211) target = $region16
        $region15: #{tpu_custom_call.1} parent=11 // pred_region
          _
        $region16: #{tpu_custom_call.1} parent=11 // pred_fallthru
          _
        // Predicated region
        $region17: #{tpu_custom_call.1} parent=11 // pred_check
          %p214 = pneg %p86
        $region18: #{tpu_custom_call.1} parent=11 // pred_check_branch
          %216 = sbr.rel (%p214) target = $region20
        $region19: #{tpu_custom_call.1} parent=11 // pred_region
          _
        $region20: #{tpu_custom_call.1} parent=11 // pred_fallthru
          _
        // Predicated region
        $region21: #{tpu_custom_call.1} parent=11 // pred_check
          %p217 = pneg %p107
        $region22: #{tpu_custom_call.1} parent=11 // pred_check_branch
          %219 = sbr.rel (%p217) target = $region24
        $region23: #{tpu_custom_call.1} parent=11 // pred_region
          _
        $region24: #{tpu_custom_call.1} parent=11 // pred_fallthru
          _
        // Predicated region
        $region25: #{tpu_custom_call.1} parent=11 // pred_check
          %p220 = pneg %p128
        $region26: #{tpu_custom_call.1} parent=11 // pred_check_branch
          %222 = sbr.rel (%p220) target = $region28
        $region27: #{tpu_custom_call.1} parent=11 // pred_region
          _
        $region28: #{tpu_custom_call.1} parent=11 // pred_fallthru
          _
        // Predicated region
        $region29: #{tpu_custom_call.1} parent=11 // pred_check
          %p223 = pneg %p149
        $region30: #{tpu_custom_call.1} parent=11 // pred_check_branch
          %225 = sbr.rel (%p223) target = $region32
        $region31: #{tpu_custom_call.1} parent=11 // pred_region
          _
        $region32: #{tpu_custom_call.1} parent=11 // pred_fallthru
          _
        // Predicated region
        $region33: #{tpu_custom_call.1} parent=11 // pred_check
          %p226 = pneg %p170
        $region34: #{tpu_custom_call.1} parent=11 // pred_check_branch
          %228 = sbr.rel (%p226) target = $region36
        $region35: #{tpu_custom_call.1} parent=11 // pred_region
          _
        $region36: #{tpu_custom_call.1} parent=11 // pred_fallthru
          _
      $region12: #{tpu_custom_call.1} parent=5 // pred_fallthru
        _
      %p229 = scmp.lt.s32.totalorder %s18, 2
      // Predicated region
      $region37: #{tpu_custom_call.1} parent=5 // pred_check
        %p230 = pneg %p229
      $region38: #{tpu_custom_call.1} parent=5 // pred_check_branch
        %232 = sbr.rel (%p230) target = $region40
      $region39: #{tpu_custom_call.1} parent=5 // pred_region
        // Predicated region
        $region41: #{tpu_custom_call.1} parent=39 // pred_check
          %p233 = pneg %p38
        $region42: #{tpu_custom_call.1} parent=39 // pred_check_branch
          %235 = sbr.rel (%p233) target = $region44
        $region43: #{tpu_custom_call.1} parent=39 // pred_region
          %s236 = smul.u32 4, %s18
          %p237 = scmp.lt.s32.totalorder %s236, 7
          %s238 = scalar_select %p237, %s236, 7
          %s239 = smul.addr %s238, 2
          %s240 = scalar_lea.vmem %s0, %s239
          %s241 = smul.u32 4, %s18
        $region44: #{tpu_custom_call.1} parent=39 // pred_fallthru
          _
      $region40: #{tpu_custom_call.1} parent=5 // pred_fallthru
        _
      %p242 = scmp.le.s32.totalorder 1, %s18
      %p243 = scmp.lt.s32.totalorder %s18, 3
      %p244 = pnand %p242, %p243
      %p245 = pneg %p244
      // Predicated region
      $region45: #{tpu_custom_call.1} parent=5 // pred_check
        _
      $region46: #{tpu_custom_call.1} parent=5 // pred_check_branch
        %247 = sbr.rel (%p244) target = $region48
      $region47: #{tpu_custom_call.1} parent=5 // pred_region
        %s248 = ssub.s32 %s18, 1
        %s249 = smul.u32 4, %s23
        %p250 = scmp.lt.s32.totalorder %s249, 7
        %s251 = scalar_select %p250, %s249, 7
        %s252 = smul.addr %s251, 2
        %s253 = scalar_lea.vmem %s0, %s252
        %p254 = pneg %p44
        %p255 = pneg %p41
        %p256 = pneg %p65
        %p257 = pneg %p62
        %p258 = pneg %p86
        %p259 = pneg %p83
        %p260 = pneg %p107
        %p261 = pneg %p104
        %p262 = pneg %p128
        %p263 = pneg %p125
        %p264 = pneg %p149
        %p265 = pneg %p146
        %p266 = pneg %p170
        %p267 = pneg %p167
        %p268 = pneg %p196
        %p269 = pneg %p193
        %s270 = sand.u32 %s183, 1
        %s271 = scalar_lea.sflag [#allocation4], %s270
        %s272 = sand.u32 %s183, 1
        %s273 = smul.addr %s272, 4
        %s274 = scalar_lea.vmem [#allocation3], %s273
        %s275 = smul.u32 4, %s23
        %p276 = scmp.lt.s32.totalorder %s275, 7
        %s277 = scalar_select %p276, %s275, 7
        %s278 = smul.addr %s277, 2
        %s279 = scalar_lea.vmem %s0, %s278
        %s280 = smul.u32 4, %s23
        %s281 = smul.u32 4, %s23
        %v282 = vld [vmem:[%s279] sm:$0xff]
        %v283 = vld [vmem:[%s1] sm:$0xff]
        %v284 = vld [vmem:[%s1 + $0x8] sm:$0xff]
        %v285 = vld [vmem:[%s1 + $0x10] sm:$0xff]
        %v286 = vld [vmem:[%s1 + $0x18] sm:$0xff]
        %v287 = vld [vmem:[%s2] sm:$0xff]
        %v288 = vld [vmem:[%s2 + $0x8] sm:$0xff]
        %v289 = vld [vmem:[%s2 + $0x10] sm:$0xff]
        %v290 = vld [vmem:[%s2 + $0x18] sm:$0xff]
        %292 = vset.pattern.permute.xlu0 0
        %293 = vperm.xlu0 %292, %v287
        %v294 = vpop.permute.xlu0 %293
        %297 = vset.pattern.permute.xlu0 0
        %298 = vperm.xlu0 %297, %v288
        %v299 = vpop.permute.xlu0 %298
        %302 = vset.pattern.permute.xlu0 0
        %303 = vperm.xlu0 %302, %v289
        %v304 = vpop.permute.xlu0 %303
        %307 = vset.pattern.permute.xlu0 0
        %308 = vperm.xlu0 %307, %v290
        %v309 = vpop.permute.xlu0 %308
        %v312 = vcombine.high %v282, %v282
        %v314 = vunpack.c.l.s4 1983009808
        %v315 = vunpack.c.0.s8 %v314
        %v316 = vlaneseq
        %v317 = vshrl.u32 %v316, 7
        %v318 = vsub.s32 %v315, %v317
        %v319 = vrot.slane %v282, %v318
        %v321 = vunpack.c.l.s4 1983009808
        %v322 = vunpack.c.0.s8 %v321
        %v323 = vlaneseq
        %v324 = vshrl.u32 %v323, 7
        %v325 = vsub.s32 %v322, %v324
        %v326 = vrot.slane %v312, %v325
        %v327 = vcombine.high %v319, %v319
        %v328 = vcombine.high %v326, %v326
        %vm329 = vcmask 15360
        %v331 = vsel %vm329, %v283, 0
        %v334 = vsel %vm329, %v284, 0
        %v337 = vsel %vm329, %v285, 0
        %v340 = vsel %vm329, %v286, 0
        %vm342 = vcmask 1041408
        %v343 = vsel %vm342, %v319, 0
        %v345 = vsel %vm342, %v327, 0
        %v347 = vsel %vm342, %v326, 0
        %v349 = vsel %vm342, %v328, 0
        %351 = vmatprep.subr.mxu0 0.0
        %352 = vmatpush1.msra.mxu0 0.0
        %353 = vmatprep.subr.mxu0 0.0
        %354 = vmatpush1.msra.mxu0 0.0
        %355 = vmatprep.subr.mxu0 0.0
        %356 = vmatpush1.msra.mxu0 0.0
        %357 = vmatprep.subr.mxu0 0.0
        %358 = vmatpush1.msra.mxu0 0.0
        %359 = vmatprep.subr.mxu0 0.0
        %360 = vmatpush1.msra.mxu0 0.0
        %361 = vmatprep.subr.mxu0 0.0
        %362 = vmatpush1.msra.mxu0 0.0
        %363 = vmatprep.subr.mxu0 0.0
        %364 = vmatpush1.msra.mxu0 0.0
        %365 = vmatprep.subr.mxu0 0.0
        %366 = vmatpush1.msra.mxu0 0.0
        %367 = vmatprep.subr.mxu0 0.0
        %368 = vmatpush1.msra.mxu0 0.0
        %369 = vmatprep.subr.mxu0 0.0
        %370 = vmatpush1.msra.mxu0 0.0
        %371 = vmatprep.subr.mxu0 0.0
        %372 = vmatpush1.msra.mxu0 0.0
        %373 = vmatprep.subr.mxu0 0.0
        %374 = vmatpush1.msra.mxu0 0.0
        %375 = vmatprep.subr.mxu0 0.0
        %376 = vmatpush1.msra.mxu0 0.0
        %377 = vmatprep.subr.mxu0 0.0
        %378 = vmatpush1.msra.mxu0 0.0
        %379 = vmatprep.subr.mxu0 0.0
        %380 = vmatpush1.msra.mxu0 0.0
        %381 = vmatprep.subr.mxu0 %v345
        %382 = vmatpush1.msra.mxu0 %v343
        %383 = vmatprep.subr.mxu0 0.0
        %384 = vmatpush2.msra.mxu0 0.0
        %385 = vmatprep.subr.mxu0 0.0
        %386 = vmatpush2.msra.mxu0 0.0
        %387 = vmatprep.subr.mxu0 0.0
        %388 = vmatpush2.msra.mxu0 0.0
        %389 = vmatprep.subr.mxu0 0.0
        %390 = vmatpush2.msra.mxu0 0.0
        %391 = vmatprep.subr.mxu0 0.0
        %392 = vmatpush2.msra.mxu0 0.0
        %393 = vmatprep.subr.mxu0 0.0
        %394 = vmatpush2.msra.mxu0 0.0
        %395 = vmatprep.subr.mxu0 0.0
        %396 = vmatpush2.msra.mxu0 0.0
        %397 = vmatprep.subr.mxu0 0.0
        %398 = vmatpush2.msra.mxu0 0.0
        %399 = vmatprep.subr.mxu0 0.0
        %400 = vmatpush2.msra.mxu0 0.0
        %401 = vmatprep.subr.mxu0 0.0
        %402 = vmatpush2.msra.mxu0 0.0
        %403 = vmatprep.subr.mxu0 0.0
        %404 = vmatpush2.msra.mxu0 0.0
        %405 = vmatprep.subr.mxu0 0.0
        %406 = vmatpush2.msra.mxu0 0.0
        %407 = vmatprep.subr.mxu0 0.0
        %408 = vmatpush2.msra.mxu0 0.0
        %409 = vmatprep.subr.mxu0 0.0
        %410 = vmatpush2.msra.mxu0 0.0
        %411 = vmatprep.subr.mxu0 0.0
        %412 = vmatpush2.msra.mxu0 0.0
        %413 = vmatprep.subr.mxu0 0.0
        %414 = vmatpush2.msra.mxu0 0.0
        %415 = vmatprep.mubr.f32.mxu0 0.0
        %416 = vmatmul.mubr.f32.gmra.mxu0 %v331
        %v417 = vpop.f32.mrf.mxu0
        %v418 = vadd.f32 %v294, %v417
        %v419 = vpop.f32.mrf.mxu0
        %v420 = vadd.f32 %v294, %v419
        %421 = vmatprep.mubr.f32.mxu0 0.0
        %422 = vmatmul.mubr.f32.gmra.mxu0 %v334
        %v423 = vpop.f32.mrf.mxu0
        %v424 = vadd.f32 %v299, %v423
        %v425 = vpop.f32.mrf.mxu0
        %v426 = vadd.f32 %v299, %v425
        %427 = vmatprep.mubr.f32.mxu0 0.0
        %428 = vmatmul.mubr.f32.gmra.mxu0 %v337
        %v429 = vpop.f32.mrf.mxu0
        %v430 = vadd.f32 %v304, %v429
        %v431 = vpop.f32.mrf.mxu0
        %v432 = vadd.f32 %v304, %v431
        %433 = vmatprep.mubr.f32.mxu0 0.0
        %434 = vmatmul.mubr.f32.gmra.mxu0 %v340
        %v435 = vpop.f32.mrf.mxu0
        %v436 = vadd.f32 %v309, %v435
        %v437 = vpop.f32.mrf.mxu0
        %v438 = vadd.f32 %v309, %v437
        %439 = vdwg.mxu0
        %440 = vmatprep.subr.mxu0 0.0
        %441 = vmatpush1.msra.mxu0 0.0
        %442 = vmatprep.subr.mxu0 0.0
        %443 = vmatpush1.msra.mxu0 0.0
        %444 = vmatprep.subr.mxu0 0.0
        %445 = vmatpush1.msra.mxu0 0.0
        %446 = vmatprep.subr.mxu0 0.0
        %447 = vmatpush1.msra.mxu0 0.0
        %448 = vmatprep.subr.mxu0 0.0
        %449 = vmatpush1.msra.mxu0 0.0
        %450 = vmatprep.subr.mxu0 0.0
        %451 = vmatpush1.msra.mxu0 0.0
        %452 = vmatprep.subr.mxu0 0.0
        %453 = vmatpush1.msra.mxu0 0.0
        %454 = vmatprep.subr.mxu0 0.0
        %455 = vmatpush1.msra.mxu0 0.0
        %456 = vmatprep.subr.mxu0 0.0
        %457 = vmatpush1.msra.mxu0 0.0
        %458 = vmatprep.subr.mxu0 0.0
        %459 = vmatpush1.msra.mxu0 0.0
        %460 = vmatprep.subr.mxu0 0.0
        %461 = vmatpush1.msra.mxu0 0.0
        %462 = vmatprep.subr.mxu0 0.0
        %463 = vmatpush1.msra.mxu0 0.0
        %464 = vmatprep.subr.mxu0 0.0
        %465 = vmatpush1.msra.mxu0 0.0
        %466 = vmatprep.subr.mxu0 0.0
        %467 = vmatpush1.msra.mxu0 0.0
        %468 = vmatprep.subr.mxu0 0.0
        %469 = vmatpush1.msra.mxu0 0.0
        %470 = vmatprep.subr.mxu0 %v349
        %471 = vmatpush1.msra.mxu0 %v347
        %472 = vmatprep.subr.mxu0 0.0
        %473 = vmatpush2.msra.mxu0 0.0
        %474 = vmatprep.subr.mxu0 0.0
        %475 = vmatpush2.msra.mxu0 0.0
        %476 = vmatprep.subr.mxu0 0.0
        %477 = vmatpush2.msra.mxu0 0.0
        %478 = vmatprep.subr.mxu0 0.0
        %479 = vmatpush2.msra.mxu0 0.0
        %480 = vmatprep.subr.mxu0 0.0
        %481 = vmatpush2.msra.mxu0 0.0
        %482 = vmatprep.subr.mxu0 0.0
        %483 = vmatpush2.msra.mxu0 0.0
        %484 = vmatprep.subr.mxu0 0.0
        %485 = vmatpush2.msra.mxu0 0.0
        %486 = vmatprep.subr.mxu0 0.0
        %487 = vmatpush2.msra.mxu0 0.0
        %488 = vmatprep.subr.mxu0 0.0
        %489 = vmatpush2.msra.mxu0 0.0
        %490 = vmatprep.subr.mxu0 0.0
        %491 = vmatpush2.msra.mxu0 0.0
        %492 = vmatprep.subr.mxu0 0.0
        %493 = vmatpush2.msra.mxu0 0.0
        %494 = vmatprep.subr.mxu0 0.0
        %495 = vmatpush2.msra.mxu0 0.0
        %496 = vmatprep.subr.mxu0 0.0
        %497 = vmatpush2.msra.mxu0 0.0
        %498 = vmatprep.subr.mxu0 0.0
        %499 = vmatpush2.msra.mxu0 0.0
        %500 = vmatprep.subr.mxu0 0.0
        %501 = vmatpush2.msra.mxu0 0.0
        %502 = vmatprep.subr.mxu0 0.0
        %503 = vmatpush2.msra.mxu0 0.0
        %504 = vmatprep.mubr.f32.mxu0 0.0
        %505 = vmatmul.mubr.f32.gmra.mxu0 %v331
        %v506 = vpop.f32.mrf.mxu0
        %v507 = vadd.f32 %v294, %v506
        %v508 = vpop.f32.mrf.mxu0
        %v509 = vadd.f32 %v294, %v508
        %510 = vmatprep.mubr.f32.mxu0 0.0
        %511 = vmatmul.mubr.f32.gmra.mxu0 %v334
        %v512 = vpop.f32.mrf.mxu0
        %v513 = vadd.f32 %v299, %v512
        %v514 = vpop.f32.mrf.mxu0
        %v515 = vadd.f32 %v299, %v514
        %516 = vmatprep.mubr.f32.mxu0 0.0
        %517 = vmatmul.mubr.f32.gmra.mxu0 %v337
        %v518 = vpop.f32.mrf.mxu0
        %v519 = vadd.f32 %v304, %v518
        %v520 = vpop.f32.mrf.mxu0
        %v521 = vadd.f32 %v304, %v520
        %522 = vmatprep.mubr.f32.mxu0 0.0
        %523 = vmatmul.mubr.f32.gmra.mxu0 %v340
        %v524 = vpop.f32.mrf.mxu0
        %v525 = vadd.f32 %v309, %v524
        %v526 = vpop.f32.mrf.mxu0
        %v527 = vadd.f32 %v309, %v526
        %528 = vdwg.mxu0
        %v529 = vand.u32 2147483647, %v418
        %vm530 = vcmp.le.f32.partialorder %v529, 0.7853982
        %vm531 = vcmp.lt.s32.totalorder %v418, 0
        %v532 = vand.u32 %v418, 2139095040
        %v533 = vshrl.u32 %v532, 23
        %v534 = vsub.s32 %v533, 127
        %v535 = vand.u32 2147483647, %v418
        %v536 = vand.u32 %v535, 8388607
        %v537 = vor.u32 %v536, 8388608
        %v538 = vsub.s32 0, %v537
        %v539 = vadd.s32 %v534, 1
        %vm540 = vcmp.gt.s32.totalorder %v539, 0
        %v541 = vsel %vm540, %v539, 0
        %v542 = vshrl.u32 %v541, 5
        %v543 = vand.u32 %v541, 31
        %v544 = vsub.s32 32, %v543
        %v545 = vshrl.u32 683565275, %v544
        %v546 = vshll.u32 683565275, %v543
        %v547 = vshrl.u32 2475754826, %v544
        %v548 = vor.u32 %v546, %v547
        %v549 = vshll.u32 2475754826, %v543
        %v550 = vshrl.u32 2131351028, %v544
        %v551 = vor.u32 %v549, %v550
        %v552 = vshll.u32 2131351028, %v543
        %v553 = vshrl.u32 2102212464, %v544
        %v554 = vor.u32 %v552, %v553
        %v555 = vshll.u32 2102212464, %v543
        %v556 = vshrl.u32 920167782, %v544
        %v557 = vor.u32 %v555, %v556
        %v558 = vshll.u32 920167782, %v543
        %v559 = vshrl.u32 1326507024, %v544
        %v560 = vor.u32 %v558, %v559
        %vm561 = vcmp.lt.s32.totalorder %v542, 1
        %vm562 = vcmp.lt.s32.totalorder %v542, 2
        %vm563 = vcmp.lt.s32.totalorder %v542, 3
        %vm564 = vcmp.lt.s32.totalorder %v542, 4
        %v565 = vsel %vm561, %v545, %v548
        %v566 = vsel %vm564, %v554, 2102212464
        %v567 = vsel %vm563, %v551, %v566
        %v568 = vsel %vm562, %v565, %v567
        %v569 = vsel %vm561, %v548, %v551
        %v570 = vsel %vm564, %v557, 920167782
        %v571 = vsel %vm563, %v554, %v570
        %v572 = vsel %vm562, %v569, %v571
        %v573 = vsel %vm561, %v551, %v554
        %v574 = vsel %vm564, %v560, 1326507024
        %v575 = vsel %vm563, %v557, %v574
        %v576 = vsel %vm562, %v573, %v575
        %v577 = vshll.u32 %v537, 8
        %v578 = vmul.u32.u64.compose %v577, %v576
        %v579 = vextract.low.u32 %v578
        %v580 = vextract.high.u32 %v578
        %v581 = vmul.u32.u64.compose %v577, %v572
        %v582 = vextract.low.u32 %v581
        %v583 = vextract.high.u32 %v581
        %v584 = vmul.u32 %v577, %v568
        %v585 = vadd.s32 %v580, %v582
        %vm586 = vc.u32 %v580, %v582
        %v587 = vadd.s32 %v583, 1
        %v588 = vsel %vm586, %v587, %v583
        %v589 = vadd.s32 %v584, %v588
        %v590 = vadd.s32 %v589, 536870912
        %v591 = vshrl.u32 %v590, 30
        %v592 = vshll.u32 %v591, 30
        %v593 = vsub.s32 %v589, %v592
        %vm594 = vcmp.lt.s32.totalorder %v593, 0
        %v595 = vsub.s32 0, %v593
        %v596 = vsel %vm594, %v595, %v593
        %v597 = vclz %v596
        %v598 = vsub.s32 %v597, 2
        %vm599 = vcmp.gt.s32.totalorder 0, %v598
        %v600 = vsel %vm599, 0, %v598
        %v601 = vsub.s32 32, %v600
        %v602 = vshll.u32 %v593, %v600
        %v603 = vshrl.u32 %v585, %v601
        %v604 = vor.u32 %v602, %v603
        %v605 = vsub.s32 4294967266, %v600
        %v606 = vadd.s32 %v605, 127
        %v607 = vshll.u32 %v606, 23
        %v608 = vor.u32 4788187, %v607
        %v609 = vand.u32 2147483647, %v608
        %v611 = vcvt.s32.f32 %v604
        %v612 = vmul.f32 %v611, %v609
        %v613 = vxor.u32 %v612, 2147483648
        %v614 = vsel %vm531, %v613, %v612
        %v615 = vsub.s32 4, %v591
        %v616 = vsel %vm531, %v615, %v591
        %v617 = vsel %vm530, %v418, %v614
        %v618 = vsel %vm530, 0, %v616
        %v619 = vcosq.f32.pop %v617
        %v620 = vsinq.f32.pop %v617
        %vm621 = vweird.f32 %v418
        %v622 = vadd.s32 %v618, 3
        %v623 = vand.u32 %v622, 3
        %vm624 = vcmp.lt.s32.totalorder %v623, 2
        %vm625 = vcmp.eq.s32.totalorder %v623, 0
        %v626 = vxor.u32 %v620, 2147483648
        %v627 = vsel %vm625, %v619, %v626
        %vm628 = vcmp.eq.s32.totalorder %v623, 2
        %v629 = vxor.u32 %v619, 2147483648
        %v630 = vsel %vm628, %v629, %v620
        %v631 = vsel %vm624, %v627, %v630
        %v632 = vsel %vm621, nan, %v631
        %v633 = vand.u32 2147483647, %v420
        %vm634 = vcmp.le.f32.partialorder %v633, 0.7853982
        %vm635 = vcmp.lt.s32.totalorder %v420, 0
        %v636 = vand.u32 %v420, 2139095040
        %v637 = vshrl.u32 %v636, 23
        %v638 = vsub.s32 %v637, 127
        %v639 = vand.u32 2147483647, %v420
        %v640 = vand.u32 %v639, 8388607
        %v641 = vor.u32 %v640, 8388608
        %v642 = vsub.s32 0, %v641
        %v643 = vadd.s32 %v638, 1
        %vm644 = vcmp.gt.s32.totalorder %v643, 0
        %v645 = vsel %vm644, %v643, 0
        %v646 = vshrl.u32 %v645, 5
        %v647 = vand.u32 %v645, 31
        %v648 = vsub.s32 32, %v647
        %v649 = vshrl.u32 683565275, %v648
        %v650 = vshll.u32 683565275, %v647
        %v651 = vshrl.u32 2475754826, %v648
        %v652 = vor.u32 %v650, %v651
        %v653 = vshll.u32 2475754826, %v647
        %v654 = vshrl.u32 2131351028, %v648
        %v655 = vor.u32 %v653, %v654
        %v656 = vshll.u32 2131351028, %v647
        %v657 = vshrl.u32 2102212464, %v648
        %v658 = vor.u32 %v656, %v657
        %v659 = vshll.u32 2102212464, %v647
        %v660 = vshrl.u32 920167782, %v648
        %v661 = vor.u32 %v659, %v660
        %v662 = vshll.u32 920167782, %v647
        %v663 = vshrl.u32 1326507024, %v648
        %v664 = vor.u32 %v662, %v663
        %vm665 = vcmp.lt.s32.totalorder %v646, 1
        %vm666 = vcmp.lt.s32.totalorder %v646, 2
        %vm667 = vcmp.lt.s32.totalorder %v646, 3
        %vm668 = vcmp.lt.s32.totalorder %v646, 4
        %v669 = vsel %vm665, %v649, %v652
        %v670 = vsel %vm668, %v658, 2102212464
        %v671 = vsel %vm667, %v655, %v670
        %v672 = vsel %vm666, %v669, %v671
        %v673 = vsel %vm665, %v652, %v655
        %v674 = vsel %vm668, %v661, 920167782
        %v675 = vsel %vm667, %v658, %v674
        %v676 = vsel %vm666, %v673, %v675
        %v677 = vsel %vm665, %v655, %v658
        %v678 = vsel %vm668, %v664, 1326507024
        %v679 = vsel %vm667, %v661, %v678
        %v680 = vsel %vm666, %v677, %v679
        %v681 = vshll.u32 %v641, 8
        %v682 = vmul.u32.u64.compose %v681, %v680
        %v683 = vextract.low.u32 %v682
        %v684 = vextract.high.u32 %v682
        %v685 = vmul.u32.u64.compose %v681, %v676
        %v686 = vextract.low.u32 %v685
        %v687 = vextract.high.u32 %v685
        %v688 = vmul.u32 %v681, %v672
        %v689 = vadd.s32 %v684, %v686
        %vm690 = vc.u32 %v684, %v686
        %v691 = vadd.s32 %v687, 1
        %v692 = vsel %vm690, %v691, %v687
        %v693 = vadd.s32 %v688, %v692
        %v694 = vadd.s32 %v693, 536870912
        %v695 = vshrl.u32 %v694, 30
        %v696 = vshll.u32 %v695, 30
        %v697 = vsub.s32 %v693, %v696
        %vm698 = vcmp.lt.s32.totalorder %v697, 0
        %v699 = vsub.s32 0, %v697
        %v700 = vsel %vm698, %v699, %v697
        %v701 = vclz %v700
        %v702 = vsub.s32 %v701, 2
        %vm703 = vcmp.gt.s32.totalorder 0, %v702
        %v704 = vsel %vm703, 0, %v702
        %v705 = vsub.s32 32, %v704
        %v706 = vshll.u32 %v697, %v704
        %v707 = vshrl.u32 %v689, %v705
        %v708 = vor.u32 %v706, %v707
        %v709 = vsub.s32 4294967266, %v704
        %v710 = vadd.s32 %v709, 127
        %v711 = vshll.u32 %v710, 23
        %v712 = vor.u32 4788187, %v711
        %v713 = vand.u32 2147483647, %v712
        %v715 = vcvt.s32.f32 %v708
        %v716 = vmul.f32 %v715, %v713
        %v717 = vxor.u32 %v716, 2147483648
        %v718 = vsel %vm635, %v717, %v716
        %v719 = vsub.s32 4, %v695
        %v720 = vsel %vm635, %v719, %v695
        %v721 = vsel %vm634, %v420, %v718
        %v722 = vsel %vm634, 0, %v720
        %v723 = vcosq.f32.pop %v721
        %v724 = vsinq.f32.pop %v721
        %vm725 = vweird.f32 %v420
        %v726 = vadd.s32 %v722, 3
        %v727 = vand.u32 %v726, 3
        %vm728 = vcmp.lt.s32.totalorder %v727, 2
        %vm729 = vcmp.eq.s32.totalorder %v727, 0
        %v730 = vxor.u32 %v724, 2147483648
        %v731 = vsel %vm729, %v723, %v730
        %vm732 = vcmp.eq.s32.totalorder %v727, 2
        %v733 = vxor.u32 %v723, 2147483648
        %v734 = vsel %vm732, %v733, %v724
        %v735 = vsel %vm728, %v731, %v734
        %v736 = vsel %vm725, nan, %v735
        %v737 = vand.u32 2147483647, %v507
        %vm738 = vcmp.le.f32.partialorder %v737, 0.7853982
        %vm739 = vcmp.lt.s32.totalorder %v507, 0
        %v740 = vand.u32 %v507, 2139095040
        %v741 = vshrl.u32 %v740, 23
        %v742 = vsub.s32 %v741, 127
        %v743 = vand.u32 2147483647, %v507
        %v744 = vand.u32 %v743, 8388607
        %v745 = vor.u32 %v744, 8388608
        %v746 = vsub.s32 0, %v745
        %v747 = vadd.s32 %v742, 1
        %vm748 = vcmp.gt.s32.totalorder %v747, 0
        %v749 = vsel %vm748, %v747, 0
        %v750 = vshrl.u32 %v749, 5
        %v751 = vand.u32 %v749, 31
        %v752 = vsub.s32 32, %v751
        %v753 = vshrl.u32 683565275, %v752
        %v754 = vshll.u32 683565275, %v751
        %v755 = vshrl.u32 2475754826, %v752
        %v756 = vor.u32 %v754, %v755
        %v757 = vshll.u32 2475754826, %v751
        %v758 = vshrl.u32 2131351028, %v752
        %v759 = vor.u32 %v757, %v758
        %v760 = vshll.u32 2131351028, %v751
        %v761 = vshrl.u32 2102212464, %v752
        %v762 = vor.u32 %v760, %v761
        %v763 = vshll.u32 2102212464, %v751
        %v764 = vshrl.u32 920167782, %v752
        %v765 = vor.u32 %v763, %v764
        %v766 = vshll.u32 920167782, %v751
        %v767 = vshrl.u32 1326507024, %v752
        %v768 = vor.u32 %v766, %v767
        %vm769 = vcmp.lt.s32.totalorder %v750, 1
        %vm770 = vcmp.lt.s32.totalorder %v750, 2
        %vm771 = vcmp.lt.s32.totalorder %v750, 3
        %vm772 = vcmp.lt.s32.totalorder %v750, 4
        %v773 = vsel %vm769, %v753, %v756
        %v774 = vsel %vm772, %v762, 2102212464
        %v775 = vsel %vm771, %v759, %v774
        %v776 = vsel %vm770, %v773, %v775
        %v777 = vsel %vm769, %v756, %v759
        %v778 = vsel %vm772, %v765, 920167782
        %v779 = vsel %vm771, %v762, %v778
        %v780 = vsel %vm770, %v777, %v779
        %v781 = vsel %vm769, %v759, %v762
        %v782 = vsel %vm772, %v768, 1326507024
        %v783 = vsel %vm771, %v765, %v782
        %v784 = vsel %vm770, %v781, %v783
        %v785 = vshll.u32 %v745, 8
        %v786 = vmul.u32.u64.compose %v785, %v784
        %v787 = vextract.low.u32 %v786
        %v788 = vextract.high.u32 %v786
        %v789 = vmul.u32.u64.compose %v785, %v780
        %v790 = vextract.low.u32 %v789
        %v791 = vextract.high.u32 %v789
        %v792 = vmul.u32 %v785, %v776
        %v793 = vadd.s32 %v788, %v790
        %vm794 = vc.u32 %v788, %v790
        %v795 = vadd.s32 %v791, 1
        %v796 = vsel %vm794, %v795, %v791
        %v797 = vadd.s32 %v792, %v796
        %v798 = vadd.s32 %v797, 536870912
        %v799 = vshrl.u32 %v798, 30
        %v800 = vshll.u32 %v799, 30
        %v801 = vsub.s32 %v797, %v800
        %vm802 = vcmp.lt.s32.totalorder %v801, 0
        %v803 = vsub.s32 0, %v801
        %v804 = vsel %vm802, %v803, %v801
        %v805 = vclz %v804
        %v806 = vsub.s32 %v805, 2
        %vm807 = vcmp.gt.s32.totalorder 0, %v806
        %v808 = vsel %vm807, 0, %v806
        %v809 = vsub.s32 32, %v808
        %v810 = vshll.u32 %v801, %v808
        %v811 = vshrl.u32 %v793, %v809
        %v812 = vor.u32 %v810, %v811
        %v813 = vsub.s32 4294967266, %v808
        %v814 = vadd.s32 %v813, 127
        %v815 = vshll.u32 %v814, 23
        %v816 = vor.u32 4788187, %v815
        %v817 = vand.u32 2147483647, %v816
        %v819 = vcvt.s32.f32 %v812
        %v820 = vmul.f32 %v819, %v817
        %v821 = vxor.u32 %v820, 2147483648
        %v822 = vsel %vm739, %v821, %v820
        %v823 = vsub.s32 4, %v799
        %v824 = vsel %vm739, %v823, %v799
        %v825 = vsel %vm738, %v507, %v822
        %v826 = vsel %vm738, 0, %v824
        %v827 = vcosq.f32.pop %v825
        %v828 = vsinq.f32.pop %v825
        %vm829 = vweird.f32 %v507
        %v830 = vadd.s32 %v826, 3
        %v831 = vand.u32 %v830, 3
        %vm832 = vcmp.lt.s32.totalorder %v831, 2
        %vm833 = vcmp.eq.s32.totalorder %v831, 0
        %v834 = vxor.u32 %v828, 2147483648
        %v835 = vsel %vm833, %v827, %v834
        %vm836 = vcmp.eq.s32.totalorder %v831, 2
        %v837 = vxor.u32 %v827, 2147483648
        %v838 = vsel %vm836, %v837, %v828
        %v839 = vsel %vm832, %v835, %v838
        %v840 = vsel %vm829, nan, %v839
        %v841 = vand.u32 2147483647, %v509
        %vm842 = vcmp.le.f32.partialorder %v841, 0.7853982
        %vm843 = vcmp.lt.s32.totalorder %v509, 0
        %v844 = vand.u32 %v509, 2139095040
        %v845 = vshrl.u32 %v844, 23
        %v846 = vsub.s32 %v845, 127
        %v847 = vand.u32 2147483647, %v509
        %v848 = vand.u32 %v847, 8388607
        %v849 = vor.u32 %v848, 8388608
        %v850 = vsub.s32 0, %v849
        %v851 = vadd.s32 %v846, 1
        %vm852 = vcmp.gt.s32.totalorder %v851, 0
        %v853 = vsel %vm852, %v851, 0
        %v854 = vshrl.u32 %v853, 5
        %v855 = vand.u32 %v853, 31
        %v856 = vsub.s32 32, %v855
        %v857 = vshrl.u32 683565275, %v856
        %v858 = vshll.u32 683565275, %v855
        %v859 = vshrl.u32 2475754826, %v856
        %v860 = vor.u32 %v858, %v859
        %v861 = vshll.u32 2475754826, %v855
        %v862 = vshrl.u32 2131351028, %v856
        %v863 = vor.u32 %v861, %v862
        %v864 = vshll.u32 2131351028, %v855
        %v865 = vshrl.u32 2102212464, %v856
        %v866 = vor.u32 %v864, %v865
        %v867 = vshll.u32 2102212464, %v855
        %v868 = vshrl.u32 920167782, %v856
        %v869 = vor.u32 %v867, %v868
        %v870 = vshll.u32 920167782, %v855
        %v871 = vshrl.u32 1326507024, %v856
        %v872 = vor.u32 %v870, %v871
        %vm873 = vcmp.lt.s32.totalorder %v854, 1
        %vm874 = vcmp.lt.s32.totalorder %v854, 2
        %vm875 = vcmp.lt.s32.totalorder %v854, 3
        %vm876 = vcmp.lt.s32.totalorder %v854, 4
        %v877 = vsel %vm873, %v857, %v860
        %v878 = vsel %vm876, %v866, 2102212464
        %v879 = vsel %vm875, %v863, %v878
        %v880 = vsel %vm874, %v877, %v879
        %v881 = vsel %vm873, %v860, %v863
        %v882 = vsel %vm876, %v869, 920167782
        %v883 = vsel %vm875, %v866, %v882
        %v884 = vsel %vm874, %v881, %v883
        %v885 = vsel %vm873, %v863, %v866
        %v886 = vsel %vm876, %v872, 1326507024
        %v887 = vsel %vm875, %v869, %v886
        %v888 = vsel %vm874, %v885, %v887
        %v889 = vshll.u32 %v849, 8
        %v890 = vmul.u32.u64.compose %v889, %v888
        %v891 = vextract.low.u32 %v890
        %v892 = vextract.high.u32 %v890
        %v893 = vmul.u32.u64.compose %v889, %v884
        %v894 = vextract.low.u32 %v893
        %v895 = vextract.high.u32 %v893
        %v896 = vmul.u32 %v889, %v880
        %v897 = vadd.s32 %v892, %v894
        %vm898 = vc.u32 %v892, %v894
        %v899 = vadd.s32 %v895, 1
        %v900 = vsel %vm898, %v899, %v895
        %v901 = vadd.s32 %v896, %v900
        %v902 = vadd.s32 %v901, 536870912
        %v903 = vshrl.u32 %v902, 30
        %v904 = vshll.u32 %v903, 30
        %v905 = vsub.s32 %v901, %v904
        %vm906 = vcmp.lt.s32.totalorder %v905, 0
        %v907 = vsub.s32 0, %v905
        %v908 = vsel %vm906, %v907, %v905
        %v909 = vclz %v908
        %v910 = vsub.s32 %v909, 2
        %vm911 = vcmp.gt.s32.totalorder 0, %v910
        %v912 = vsel %vm911, 0, %v910
        %v913 = vsub.s32 32, %v912
        %v914 = vshll.u32 %v905, %v912
        %v915 = vshrl.u32 %v897, %v913
        %v916 = vor.u32 %v914, %v915
        %v917 = vsub.s32 4294967266, %v912
        %v918 = vadd.s32 %v917, 127
        %v919 = vshll.u32 %v918, 23
        %v920 = vor.u32 4788187, %v919
        %v921 = vand.u32 2147483647, %v920
        %v923 = vcvt.s32.f32 %v916
        %v924 = vmul.f32 %v923, %v921
        %v925 = vxor.u32 %v924, 2147483648
        %v926 = vsel %vm843, %v925, %v924
        %v927 = vsub.s32 4, %v903
        %v928 = vsel %vm843, %v927, %v903
        %v929 = vsel %vm842, %v509, %v926
        %v930 = vsel %vm842, 0, %v928
        %v931 = vcosq.f32.pop %v929
        %v932 = vsinq.f32.pop %v929
        %vm933 = vweird.f32 %v509
        %v934 = vadd.s32 %v930, 3
        %v935 = vand.u32 %v934, 3
        %vm936 = vcmp.lt.s32.totalorder %v935, 2
        %vm937 = vcmp.eq.s32.totalorder %v935, 0
        %v938 = vxor.u32 %v932, 2147483648
        %v939 = vsel %vm937, %v931, %v938
        %vm940 = vcmp.eq.s32.totalorder %v935, 2
        %v941 = vxor.u32 %v931, 2147483648
        %v942 = vsel %vm940, %v941, %v932
        %v943 = vsel %vm936, %v939, %v942
        %v944 = vsel %vm933, nan, %v943
        %v945 = vand.u32 2147483647, %v424
        %vm946 = vcmp.le.f32.partialorder %v945, 0.7853982
        %vm947 = vcmp.lt.s32.totalorder %v424, 0
        %v948 = vand.u32 %v424, 2139095040
        %v949 = vshrl.u32 %v948, 23
        %v950 = vsub.s32 %v949, 127
        %v951 = vand.u32 2147483647, %v424
        %v952 = vand.u32 %v951, 8388607
        %v953 = vor.u32 %v952, 8388608
        %v954 = vsub.s32 0, %v953
        %v955 = vadd.s32 %v950, 1
        %vm956 = vcmp.gt.s32.totalorder %v955, 0
        %v957 = vsel %vm956, %v955, 0
        %v958 = vshrl.u32 %v957, 5
        %v959 = vand.u32 %v957, 31
        %v960 = vsub.s32 32, %v959
        %v961 = vshrl.u32 683565275, %v960
        %v962 = vshll.u32 683565275, %v959
        %v963 = vshrl.u32 2475754826, %v960
        %v964 = vor.u32 %v962, %v963
        %v965 = vshll.u32 2475754826, %v959
        %v966 = vshrl.u32 2131351028, %v960
        %v967 = vor.u32 %v965, %v966
        %v968 = vshll.u32 2131351028, %v959
        %v969 = vshrl.u32 2102212464, %v960
        %v970 = vor.u32 %v968, %v969
        %v971 = vshll.u32 2102212464, %v959
        %v972 = vshrl.u32 920167782, %v960
        %v973 = vor.u32 %v971, %v972
        %v974 = vshll.u32 920167782, %v959
        %v975 = vshrl.u32 1326507024, %v960
        %v976 = vor.u32 %v974, %v975
        %vm977 = vcmp.lt.s32.totalorder %v958, 1
        %vm978 = vcmp.lt.s32.totalorder %v958, 2
        %vm979 = vcmp.lt.s32.totalorder %v958, 3
        %vm980 = vcmp.lt.s32.totalorder %v958, 4
        %v981 = vsel %vm977, %v961, %v964
        %v982 = vsel %vm980, %v970, 2102212464
        %v983 = vsel %vm979, %v967, %v982
        %v984 = vsel %vm978, %v981, %v983
        %v985 = vsel %vm977, %v964, %v967
        %v986 = vsel %vm980, %v973, 920167782
        %v987 = vsel %vm979, %v970, %v986
        %v988 = vsel %vm978, %v985, %v987
        %v989 = vsel %vm977, %v967, %v970
        %v990 = vsel %vm980, %v976, 1326507024
        %v991 = vsel %vm979, %v973, %v990
        %v992 = vsel %vm978, %v989, %v991
        %v993 = vshll.u32 %v953, 8
        %v994 = vmul.u32.u64.compose %v993, %v992
        %v995 = vextract.low.u32 %v994
        %v996 = vextract.high.u32 %v994
        %v997 = vmul.u32.u64.compose %v993, %v988
        %v998 = vextract.low.u32 %v997
        %v999 = vextract.high.u32 %v997
        %v1000 = vmul.u32 %v993, %v984
        %v1001 = vadd.s32 %v996, %v998
        %vm1002 = vc.u32 %v996, %v998
        %v1003 = vadd.s32 %v999, 1
        %v1004 = vsel %vm1002, %v1003, %v999
        %v1005 = vadd.s32 %v1000, %v1004
        %v1006 = vadd.s32 %v1005, 536870912
        %v1007 = vshrl.u32 %v1006, 30
        %v1008 = vshll.u32 %v1007, 30
        %v1009 = vsub.s32 %v1005, %v1008
        %vm1010 = vcmp.lt.s32.totalorder %v1009, 0
        %v1011 = vsub.s32 0, %v1009
        %v1012 = vsel %vm1010, %v1011, %v1009
        %v1013 = vclz %v1012
        %v1014 = vsub.s32 %v1013, 2
        %vm1015 = vcmp.gt.s32.totalorder 0, %v1014
        %v1016 = vsel %vm1015, 0, %v1014
        %v1017 = vsub.s32 32, %v1016
        %v1018 = vshll.u32 %v1009, %v1016
        %v1019 = vshrl.u32 %v1001, %v1017
        %v1020 = vor.u32 %v1018, %v1019
        %v1021 = vsub.s32 4294967266, %v1016
        %v1022 = vadd.s32 %v1021, 127
        %v1023 = vshll.u32 %v1022, 23
        %v1024 = vor.u32 4788187, %v1023
        %v1025 = vand.u32 2147483647, %v1024
        %v1027 = vcvt.s32.f32 %v1020
        %v1028 = vmul.f32 %v1027, %v1025
        %v1029 = vxor.u32 %v1028, 2147483648
        %v1030 = vsel %vm947, %v1029, %v1028
        %v1031 = vsub.s32 4, %v1007
        %v1032 = vsel %vm947, %v1031, %v1007
        %v1033 = vsel %vm946, %v424, %v1030
        %v1034 = vsel %vm946, 0, %v1032
        %v1035 = vcosq.f32.pop %v1033
        %v1036 = vsinq.f32.pop %v1033
        %vm1037 = vweird.f32 %v424
        %v1038 = vadd.s32 %v1034, 3
        %v1039 = vand.u32 %v1038, 3
        %vm1040 = vcmp.lt.s32.totalorder %v1039, 2
        %vm1041 = vcmp.eq.s32.totalorder %v1039, 0
        %v1042 = vxor.u32 %v1036, 2147483648
        %v1043 = vsel %vm1041, %v1035, %v1042
        %vm1044 = vcmp.eq.s32.totalorder %v1039, 2
        %v1045 = vxor.u32 %v1035, 2147483648
        %v1046 = vsel %vm1044, %v1045, %v1036
        %v1047 = vsel %vm1040, %v1043, %v1046
        %v1048 = vsel %vm1037, nan, %v1047
        %v1049 = vand.u32 2147483647, %v426
        %vm1050 = vcmp.le.f32.partialorder %v1049, 0.7853982
        %vm1051 = vcmp.lt.s32.totalorder %v426, 0
        %v1052 = vand.u32 %v426, 2139095040
        %v1053 = vshrl.u32 %v1052, 23
        %v1054 = vsub.s32 %v1053, 127
        %v1055 = vand.u32 2147483647, %v426
        %v1056 = vand.u32 %v1055, 8388607
        %v1057 = vor.u32 %v1056, 8388608
        %v1058 = vsub.s32 0, %v1057
        %v1059 = vadd.s32 %v1054, 1
        %vm1060 = vcmp.gt.s32.totalorder %v1059, 0
        %v1061 = vsel %vm1060, %v1059, 0
        %v1062 = vshrl.u32 %v1061, 5
        %v1063 = vand.u32 %v1061, 31
        %v1064 = vsub.s32 32, %v1063
        %v1065 = vshrl.u32 683565275, %v1064
        %v1066 = vshll.u32 683565275, %v1063
        %v1067 = vshrl.u32 2475754826, %v1064
        %v1068 = vor.u32 %v1066, %v1067
        %v1069 = vshll.u32 2475754826, %v1063
        %v1070 = vshrl.u32 2131351028, %v1064
        %v1071 = vor.u32 %v1069, %v1070
        %v1072 = vshll.u32 2131351028, %v1063
        %v1073 = vshrl.u32 2102212464, %v1064
        %v1074 = vor.u32 %v1072, %v1073
        %v1075 = vshll.u32 2102212464, %v1063
        %v1076 = vshrl.u32 920167782, %v1064
        %v1077 = vor.u32 %v1075, %v1076
        %v1078 = vshll.u32 920167782, %v1063
        %v1079 = vshrl.u32 1326507024, %v1064
        %v1080 = vor.u32 %v1078, %v1079
        %vm1081 = vcmp.lt.s32.totalorder %v1062, 1
        %vm1082 = vcmp.lt.s32.totalorder %v1062, 2
        %vm1083 = vcmp.lt.s32.totalorder %v1062, 3
        %vm1084 = vcmp.lt.s32.totalorder %v1062, 4
        %v1085 = vsel %vm1081, %v1065, %v1068
        %v1086 = vsel %vm1084, %v1074, 2102212464
        %v1087 = vsel %vm1083, %v1071, %v1086
        %v1088 = vsel %vm1082, %v1085, %v1087
        %v1089 = vsel %vm1081, %v1068, %v1071
        %v1090 = vsel %vm1084, %v1077, 920167782
        %v1091 = vsel %vm1083, %v1074, %v1090
        %v1092 = vsel %vm1082, %v1089, %v1091
        %v1093 = vsel %vm1081, %v1071, %v1074
        %v1094 = vsel %vm1084, %v1080, 1326507024
        %v1095 = vsel %vm1083, %v1077, %v1094
        %v1096 = vsel %vm1082, %v1093, %v1095
        %v1097 = vshll.u32 %v1057, 8
        %v1098 = vmul.u32.u64.compose %v1097, %v1096
        %v1099 = vextract.low.u32 %v1098
        %v1100 = vextract.high.u32 %v1098
        %v1101 = vmul.u32.u64.compose %v1097, %v1092
        %v1102 = vextract.low.u32 %v1101
        %v1103 = vextract.high.u32 %v1101
        %v1104 = vmul.u32 %v1097, %v1088
        %v1105 = vadd.s32 %v1100, %v1102
        %vm1106 = vc.u32 %v1100, %v1102
        %v1107 = vadd.s32 %v1103, 1
        %v1108 = vsel %vm1106, %v1107, %v1103
        %v1109 = vadd.s32 %v1104, %v1108
        %v1110 = vadd.s32 %v1109, 536870912
        %v1111 = vshrl.u32 %v1110, 30
        %v1112 = vshll.u32 %v1111, 30
        %v1113 = vsub.s32 %v1109, %v1112
        %vm1114 = vcmp.lt.s32.totalorder %v1113, 0
        %v1115 = vsub.s32 0, %v1113
        %v1116 = vsel %vm1114, %v1115, %v1113
        %v1117 = vclz %v1116
        %v1118 = vsub.s32 %v1117, 2
        %vm1119 = vcmp.gt.s32.totalorder 0, %v1118
        %v1120 = vsel %vm1119, 0, %v1118
        %v1121 = vsub.s32 32, %v1120
        %v1122 = vshll.u32 %v1113, %v1120
        %v1123 = vshrl.u32 %v1105, %v1121
        %v1124 = vor.u32 %v1122, %v1123
        %v1125 = vsub.s32 4294967266, %v1120
        %v1126 = vadd.s32 %v1125, 127
        %v1127 = vshll.u32 %v1126, 23
        %v1128 = vor.u32 4788187, %v1127
        %v1129 = vand.u32 2147483647, %v1128
        %v1131 = vcvt.s32.f32 %v1124
        %v1132 = vmul.f32 %v1131, %v1129
        %v1133 = vxor.u32 %v1132, 2147483648
        %v1134 = vsel %vm1051, %v1133, %v1132
        %v1135 = vsub.s32 4, %v1111
        %v1136 = vsel %vm1051, %v1135, %v1111
        %v1137 = vsel %vm1050, %v426, %v1134
        %v1138 = vsel %vm1050, 0, %v1136
        %v1139 = vcosq.f32.pop %v1137
        %v1140 = vsinq.f32.pop %v1137
        %vm1141 = vweird.f32 %v426
        %v1142 = vadd.s32 %v1138, 3
        %v1143 = vand.u32 %v1142, 3
        %vm1144 = vcmp.lt.s32.totalorder %v1143, 2
        %vm1145 = vcmp.eq.s32.totalorder %v1143, 0
        %v1146 = vxor.u32 %v1140, 2147483648
        %v1147 = vsel %vm1145, %v1139, %v1146
        %vm1148 = vcmp.eq.s32.totalorder %v1143, 2
        %v1149 = vxor.u32 %v1139, 2147483648
        %v1150 = vsel %vm1148, %v1149, %v1140
        %v1151 = vsel %vm1144, %v1147, %v1150
        %v1152 = vsel %vm1141, nan, %v1151
        %v1153 = vand.u32 2147483647, %v513
        %vm1154 = vcmp.le.f32.partialorder %v1153, 0.7853982
        %vm1155 = vcmp.lt.s32.totalorder %v513, 0
        %v1156 = vand.u32 %v513, 2139095040
        %v1157 = vshrl.u32 %v1156, 23
        %v1158 = vsub.s32 %v1157, 127
        %v1159 = vand.u32 2147483647, %v513
        %v1160 = vand.u32 %v1159, 8388607
        %v1161 = vor.u32 %v1160, 8388608
        %v1162 = vsub.s32 0, %v1161
        %v1163 = vadd.s32 %v1158, 1
        %vm1164 = vcmp.gt.s32.totalorder %v1163, 0
        %v1165 = vsel %vm1164, %v1163, 0
        %v1166 = vshrl.u32 %v1165, 5
        %v1167 = vand.u32 %v1165, 31
        %v1168 = vsub.s32 32, %v1167
        %v1169 = vshrl.u32 683565275, %v1168
        %v1170 = vshll.u32 683565275, %v1167
        %v1171 = vshrl.u32 2475754826, %v1168
        %v1172 = vor.u32 %v1170, %v1171
        %v1173 = vshll.u32 2475754826, %v1167
        %v1174 = vshrl.u32 2131351028, %v1168
        %v1175 = vor.u32 %v1173, %v1174
        %v1176 = vshll.u32 2131351028, %v1167
        %v1177 = vshrl.u32 2102212464, %v1168
        %v1178 = vor.u32 %v1176, %v1177
        %v1179 = vshll.u32 2102212464, %v1167
        %v1180 = vshrl.u32 920167782, %v1168
        %v1181 = vor.u32 %v1179, %v1180
        %v1182 = vshll.u32 920167782, %v1167
        %v1183 = vshrl.u32 1326507024, %v1168
        %v1184 = vor.u32 %v1182, %v1183
        %vm1185 = vcmp.lt.s32.totalorder %v1166, 1
        %vm1186 = vcmp.lt.s32.totalorder %v1166, 2
        %vm1187 = vcmp.lt.s32.totalorder %v1166, 3
        %vm1188 = vcmp.lt.s32.totalorder %v1166, 4
        %v1189 = vsel %vm1185, %v1169, %v1172
        %v1190 = vsel %vm1188, %v1178, 2102212464
        %v1191 = vsel %vm1187, %v1175, %v1190
        %v1192 = vsel %vm1186, %v1189, %v1191
        %v1193 = vsel %vm1185, %v1172, %v1175
        %v1194 = vsel %vm1188, %v1181, 920167782
        %v1195 = vsel %vm1187, %v1178, %v1194
        %v1196 = vsel %vm1186, %v1193, %v1195
        %v1197 = vsel %vm1185, %v1175, %v1178
        %v1198 = vsel %vm1188, %v1184, 1326507024
        %v1199 = vsel %vm1187, %v1181, %v1198
        %v1200 = vsel %vm1186, %v1197, %v1199
        %v1201 = vshll.u32 %v1161, 8
        %v1202 = vmul.u32.u64.compose %v1201, %v1200
        %v1203 = vextract.low.u32 %v1202
        %v1204 = vextract.high.u32 %v1202
        %v1205 = vmul.u32.u64.compose %v1201, %v1196
        %v1206 = vextract.low.u32 %v1205
        %v1207 = vextract.high.u32 %v1205
        %v1208 = vmul.u32 %v1201, %v1192
        %v1209 = vadd.s32 %v1204, %v1206
        %vm1210 = vc.u32 %v1204, %v1206
        %v1211 = vadd.s32 %v1207, 1
        %v1212 = vsel %vm1210, %v1211, %v1207
        %v1213 = vadd.s32 %v1208, %v1212
        %v1214 = vadd.s32 %v1213, 536870912
        %v1215 = vshrl.u32 %v1214, 30
        %v1216 = vshll.u32 %v1215, 30
        %v1217 = vsub.s32 %v1213, %v1216
        %vm1218 = vcmp.lt.s32.totalorder %v1217, 0
        %v1219 = vsub.s32 0, %v1217
        %v1220 = vsel %vm1218, %v1219, %v1217
        %v1221 = vclz %v1220
        %v1222 = vsub.s32 %v1221, 2
        %vm1223 = vcmp.gt.s32.totalorder 0, %v1222
        %v1224 = vsel %vm1223, 0, %v1222
        %v1225 = vsub.s32 32, %v1224
        %v1226 = vshll.u32 %v1217, %v1224
        %v1227 = vshrl.u32 %v1209, %v1225
        %v1228 = vor.u32 %v1226, %v1227
        %v1229 = vsub.s32 4294967266, %v1224
        %v1230 = vadd.s32 %v1229, 127
        %v1231 = vshll.u32 %v1230, 23
        %v1232 = vor.u32 4788187, %v1231
        %v1233 = vand.u32 2147483647, %v1232
        %v1235 = vcvt.s32.f32 %v1228
        %v1236 = vmul.f32 %v1235, %v1233
        %v1237 = vxor.u32 %v1236, 2147483648
        %v1238 = vsel %vm1155, %v1237, %v1236
        %v1239 = vsub.s32 4, %v1215
        %v1240 = vsel %vm1155, %v1239, %v1215
        %v1241 = vsel %vm1154, %v513, %v1238
        %v1242 = vsel %vm1154, 0, %v1240
        %v1243 = vcosq.f32.pop %v1241
        %v1244 = vsinq.f32.pop %v1241
        %vm1245 = vweird.f32 %v513
        %v1246 = vadd.s32 %v1242, 3
        %v1247 = vand.u32 %v1246, 3
        %vm1248 = vcmp.lt.s32.totalorder %v1247, 2
        %vm1249 = vcmp.eq.s32.totalorder %v1247, 0
        %v1250 = vxor.u32 %v1244, 2147483648
        %v1251 = vsel %vm1249, %v1243, %v1250
        %vm1252 = vcmp.eq.s32.totalorder %v1247, 2
        %v1253 = vxor.u32 %v1243, 2147483648
        %v1254 = vsel %vm1252, %v1253, %v1244
        %v1255 = vsel %vm1248, %v1251, %v1254
        %v1256 = vsel %vm1245, nan, %v1255
        %v1257 = vand.u32 2147483647, %v515
        %vm1258 = vcmp.le.f32.partialorder %v1257, 0.7853982
        %vm1259 = vcmp.lt.s32.totalorder %v515, 0
        %v1260 = vand.u32 %v515, 2139095040
        %v1261 = vshrl.u32 %v1260, 23
        %v1262 = vsub.s32 %v1261, 127
        %v1263 = vand.u32 2147483647, %v515
        %v1264 = vand.u32 %v1263, 8388607
        %v1265 = vor.u32 %v1264, 8388608
        %v1266 = vsub.s32 0, %v1265
        %v1267 = vadd.s32 %v1262, 1
        %vm1268 = vcmp.gt.s32.totalorder %v1267, 0
        %v1269 = vsel %vm1268, %v1267, 0
        %v1270 = vshrl.u32 %v1269, 5
        %v1271 = vand.u32 %v1269, 31
        %v1272 = vsub.s32 32, %v1271
        %v1273 = vshrl.u32 683565275, %v1272
        %v1274 = vshll.u32 683565275, %v1271
        %v1275 = vshrl.u32 2475754826, %v1272
        %v1276 = vor.u32 %v1274, %v1275
        %v1277 = vshll.u32 2475754826, %v1271
        %v1278 = vshrl.u32 2131351028, %v1272
        %v1279 = vor.u32 %v1277, %v1278
        %v1280 = vshll.u32 2131351028, %v1271
        %v1281 = vshrl.u32 2102212464, %v1272
        %v1282 = vor.u32 %v1280, %v1281
        %v1283 = vshll.u32 2102212464, %v1271
        %v1284 = vshrl.u32 920167782, %v1272
        %v1285 = vor.u32 %v1283, %v1284
        %v1286 = vshll.u32 920167782, %v1271
        %v1287 = vshrl.u32 1326507024, %v1272
        %v1288 = vor.u32 %v1286, %v1287
        %vm1289 = vcmp.lt.s32.totalorder %v1270, 1
        %vm1290 = vcmp.lt.s32.totalorder %v1270, 2
        %vm1291 = vcmp.lt.s32.totalorder %v1270, 3
        %vm1292 = vcmp.lt.s32.totalorder %v1270, 4
        %v1293 = vsel %vm1289, %v1273, %v1276
        %v1294 = vsel %vm1292, %v1282, 2102212464
        %v1295 = vsel %vm1291, %v1279, %v1294
        %v1296 = vsel %vm1290, %v1293, %v1295
        %v1297 = vsel %vm1289, %v1276, %v1279
        %v1298 = vsel %vm1292, %v1285, 920167782
        %v1299 = vsel %vm1291, %v1282, %v1298
        %v1300 = vsel %vm1290, %v1297, %v1299
        %v1301 = vsel %vm1289, %v1279, %v1282
        %v1302 = vsel %vm1292, %v1288, 1326507024
        %v1303 = vsel %vm1291, %v1285, %v1302
        %v1304 = vsel %vm1290, %v1301, %v1303
        %v1305 = vshll.u32 %v1265, 8
        %v1306 = vmul.u32.u64.compose %v1305, %v1304
        %v1307 = vextract.low.u32 %v1306
        %v1308 = vextract.high.u32 %v1306
        %v1309 = vmul.u32.u64.compose %v1305, %v1300
        %v1310 = vextract.low.u32 %v1309
        %v1311 = vextract.high.u32 %v1309
        %v1312 = vmul.u32 %v1305, %v1296
        %v1313 = vadd.s32 %v1308, %v1310
        %vm1314 = vc.u32 %v1308, %v1310
        %v1315 = vadd.s32 %v1311, 1
        %v1316 = vsel %vm1314, %v1315, %v1311
        %v1317 = vadd.s32 %v1312, %v1316
        %v1318 = vadd.s32 %v1317, 536870912
        %v1319 = vshrl.u32 %v1318, 30
        %v1320 = vshll.u32 %v1319, 30
        %v1321 = vsub.s32 %v1317, %v1320
        %vm1322 = vcmp.lt.s32.totalorder %v1321, 0
        %v1323 = vsub.s32 0, %v1321
        %v1324 = vsel %vm1322, %v1323, %v1321
        %v1325 = vclz %v1324
        %v1326 = vsub.s32 %v1325, 2
        %vm1327 = vcmp.gt.s32.totalorder 0, %v1326
        %v1328 = vsel %vm1327, 0, %v1326
        %v1329 = vsub.s32 32, %v1328
        %v1330 = vshll.u32 %v1321, %v1328
        %v1331 = vshrl.u32 %v1313, %v1329
        %v1332 = vor.u32 %v1330, %v1331
        %v1333 = vsub.s32 4294967266, %v1328
        %v1334 = vadd.s32 %v1333, 127
        %v1335 = vshll.u32 %v1334, 23
        %v1336 = vor.u32 4788187, %v1335
        %v1337 = vand.u32 2147483647, %v1336
        %v1339 = vcvt.s32.f32 %v1332
        %v1340 = vmul.f32 %v1339, %v1337
        %v1341 = vxor.u32 %v1340, 2147483648
        %v1342 = vsel %vm1259, %v1341, %v1340
        %v1343 = vsub.s32 4, %v1319
        %v1344 = vsel %vm1259, %v1343, %v1319
        %v1345 = vsel %vm1258, %v515, %v1342
        %v1346 = vsel %vm1258, 0, %v1344
        %v1347 = vcosq.f32.pop %v1345
        %v1348 = vsinq.f32.pop %v1345
        %vm1349 = vweird.f32 %v515
        %v1350 = vadd.s32 %v1346, 3
        %v1351 = vand.u32 %v1350, 3
        %vm1352 = vcmp.lt.s32.totalorder %v1351, 2
        %vm1353 = vcmp.eq.s32.totalorder %v1351, 0
        %v1354 = vxor.u32 %v1348, 2147483648
        %v1355 = vsel %vm1353, %v1347, %v1354
        %vm1356 = vcmp.eq.s32.totalorder %v1351, 2
        %v1357 = vxor.u32 %v1347, 2147483648
        %v1358 = vsel %vm1356, %v1357, %v1348
        %v1359 = vsel %vm1352, %v1355, %v1358
        %v1360 = vsel %vm1349, nan, %v1359
        %v1361 = vand.u32 2147483647, %v430
        %vm1362 = vcmp.le.f32.partialorder %v1361, 0.7853982
        %vm1363 = vcmp.lt.s32.totalorder %v430, 0
        %v1364 = vand.u32 %v430, 2139095040
        %v1365 = vshrl.u32 %v1364, 23
        %v1366 = vsub.s32 %v1365, 127
        %v1367 = vand.u32 2147483647, %v430
        %v1368 = vand.u32 %v1367, 8388607
        %v1369 = vor.u32 %v1368, 8388608
        %v1370 = vsub.s32 0, %v1369
        %v1371 = vadd.s32 %v1366, 1
        %vm1372 = vcmp.gt.s32.totalorder %v1371, 0
        %v1373 = vsel %vm1372, %v1371, 0
        %v1374 = vshrl.u32 %v1373, 5
        %v1375 = vand.u32 %v1373, 31
        %v1376 = vsub.s32 32, %v1375
        %v1377 = vshrl.u32 683565275, %v1376
        %v1378 = vshll.u32 683565275, %v1375
        %v1379 = vshrl.u32 2475754826, %v1376
        %v1380 = vor.u32 %v1378, %v1379
        %v1381 = vshll.u32 2475754826, %v1375
        %v1382 = vshrl.u32 2131351028, %v1376
        %v1383 = vor.u32 %v1381, %v1382
        %v1384 = vshll.u32 2131351028, %v1375
        %v1385 = vshrl.u32 2102212464, %v1376
        %v1386 = vor.u32 %v1384, %v1385
        %v1387 = vshll.u32 2102212464, %v1375
        %v1388 = vshrl.u32 920167782, %v1376
        %v1389 = vor.u32 %v1387, %v1388
        %v1390 = vshll.u32 920167782, %v1375
        %v1391 = vshrl.u32 1326507024, %v1376
        %v1392 = vor.u32 %v1390, %v1391
        %vm1393 = vcmp.lt.s32.totalorder %v1374, 1
        %vm1394 = vcmp.lt.s32.totalorder %v1374, 2
        %vm1395 = vcmp.lt.s32.totalorder %v1374, 3
        %vm1396 = vcmp.lt.s32.totalorder %v1374, 4
        %v1397 = vsel %vm1393, %v1377, %v1380
        %v1398 = vsel %vm1396, %v1386, 2102212464
        %v1399 = vsel %vm1395, %v1383, %v1398
        %v1400 = vsel %vm1394, %v1397, %v1399
        %v1401 = vsel %vm1393, %v1380, %v1383
        %v1402 = vsel %vm1396, %v1389, 920167782
        %v1403 = vsel %vm1395, %v1386, %v1402
        %v1404 = vsel %vm1394, %v1401, %v1403
        %v1405 = vsel %vm1393, %v1383, %v1386
        %v1406 = vsel %vm1396, %v1392, 1326507024
        %v1407 = vsel %vm1395, %v1389, %v1406
        %v1408 = vsel %vm1394, %v1405, %v1407
        %v1409 = vshll.u32 %v1369, 8
        %v1410 = vmul.u32.u64.compose %v1409, %v1408
        %v1411 = vextract.low.u32 %v1410
        %v1412 = vextract.high.u32 %v1410
        %v1413 = vmul.u32.u64.compose %v1409, %v1404
        %v1414 = vextract.low.u32 %v1413
        %v1415 = vextract.high.u32 %v1413
        %v1416 = vmul.u32 %v1409, %v1400
        %v1417 = vadd.s32 %v1412, %v1414
        %vm1418 = vc.u32 %v1412, %v1414
        %v1419 = vadd.s32 %v1415, 1
        %v1420 = vsel %vm1418, %v1419, %v1415
        %v1421 = vadd.s32 %v1416, %v1420
        %v1422 = vadd.s32 %v1421, 536870912
        %v1423 = vshrl.u32 %v1422, 30
        %v1424 = vshll.u32 %v1423, 30
        %v1425 = vsub.s32 %v1421, %v1424
        %vm1426 = vcmp.lt.s32.totalorder %v1425, 0
        %v1427 = vsub.s32 0, %v1425
        %v1428 = vsel %vm1426, %v1427, %v1425
        %v1429 = vclz %v1428
        %v1430 = vsub.s32 %v1429, 2
        %vm1431 = vcmp.gt.s32.totalorder 0, %v1430
        %v1432 = vsel %vm1431, 0, %v1430
        %v1433 = vsub.s32 32, %v1432
        %v1434 = vshll.u32 %v1425, %v1432
        %v1435 = vshrl.u32 %v1417, %v1433
        %v1436 = vor.u32 %v1434, %v1435
        %v1437 = vsub.s32 4294967266, %v1432
        %v1438 = vadd.s32 %v1437, 127
        %v1439 = vshll.u32 %v1438, 23
        %v1440 = vor.u32 4788187, %v1439
        %v1441 = vand.u32 2147483647, %v1440
        %v1443 = vcvt.s32.f32 %v1436
        %v1444 = vmul.f32 %v1443, %v1441
        %v1445 = vxor.u32 %v1444, 2147483648
        %v1446 = vsel %vm1363, %v1445, %v1444
        %v1447 = vsub.s32 4, %v1423
        %v1448 = vsel %vm1363, %v1447, %v1423
        %v1449 = vsel %vm1362, %v430, %v1446
        %v1450 = vsel %vm1362, 0, %v1448
        %v1451 = vcosq.f32.pop %v1449
        %v1452 = vsinq.f32.pop %v1449
        %vm1453 = vweird.f32 %v430
        %v1454 = vadd.s32 %v1450, 3
        %v1455 = vand.u32 %v1454, 3
        %vm1456 = vcmp.lt.s32.totalorder %v1455, 2
        %vm1457 = vcmp.eq.s32.totalorder %v1455, 0
        %v1458 = vxor.u32 %v1452, 2147483648
        %v1459 = vsel %vm1457, %v1451, %v1458
        %vm1460 = vcmp.eq.s32.totalorder %v1455, 2
        %v1461 = vxor.u32 %v1451, 2147483648
        %v1462 = vsel %vm1460, %v1461, %v1452
        %v1463 = vsel %vm1456, %v1459, %v1462
        %v1464 = vsel %vm1453, nan, %v1463
        %v1465 = vand.u32 2147483647, %v432
        %vm1466 = vcmp.le.f32.partialorder %v1465, 0.7853982
        %vm1467 = vcmp.lt.s32.totalorder %v432, 0
        %v1468 = vand.u32 %v432, 2139095040
        %v1469 = vshrl.u32 %v1468, 23
        %v1470 = vsub.s32 %v1469, 127
        %v1471 = vand.u32 2147483647, %v432
        %v1472 = vand.u32 %v1471, 8388607
        %v1473 = vor.u32 %v1472, 8388608
        %v1474 = vsub.s32 0, %v1473
        %v1475 = vadd.s32 %v1470, 1
        %vm1476 = vcmp.gt.s32.totalorder %v1475, 0
        %v1477 = vsel %vm1476, %v1475, 0
        %v1478 = vshrl.u32 %v1477, 5
        %v1479 = vand.u32 %v1477, 31
        %v1480 = vsub.s32 32, %v1479
        %v1481 = vshrl.u32 683565275, %v1480
        %v1482 = vshll.u32 683565275, %v1479
        %v1483 = vshrl.u32 2475754826, %v1480
        %v1484 = vor.u32 %v1482, %v1483
        %v1485 = vshll.u32 2475754826, %v1479
        %v1486 = vshrl.u32 2131351028, %v1480
        %v1487 = vor.u32 %v1485, %v1486
        %v1488 = vshll.u32 2131351028, %v1479
        %v1489 = vshrl.u32 2102212464, %v1480
        %v1490 = vor.u32 %v1488, %v1489
        %v1491 = vshll.u32 2102212464, %v1479
        %v1492 = vshrl.u32 920167782, %v1480
        %v1493 = vor.u32 %v1491, %v1492
        %v1494 = vshll.u32 920167782, %v1479
        %v1495 = vshrl.u32 1326507024, %v1480
        %v1496 = vor.u32 %v1494, %v1495
        %vm1497 = vcmp.lt.s32.totalorder %v1478, 1
        %vm1498 = vcmp.lt.s32.totalorder %v1478, 2
        %vm1499 = vcmp.lt.s32.totalorder %v1478, 3
        %vm1500 = vcmp.lt.s32.totalorder %v1478, 4
        %v1501 = vsel %vm1497, %v1481, %v1484
        %v1502 = vsel %vm1500, %v1490, 2102212464
        %v1503 = vsel %vm1499, %v1487, %v1502
        %v1504 = vsel %vm1498, %v1501, %v1503
        %v1505 = vsel %vm1497, %v1484, %v1487
        %v1506 = vsel %vm1500, %v1493, 920167782
        %v1507 = vsel %vm1499, %v1490, %v1506
        %v1508 = vsel %vm1498, %v1505, %v1507
        %v1509 = vsel %vm1497, %v1487, %v1490
        %v1510 = vsel %vm1500, %v1496, 1326507024
        %v1511 = vsel %vm1499, %v1493, %v1510
        %v1512 = vsel %vm1498, %v1509, %v1511
        %v1513 = vshll.u32 %v1473, 8
        %v1514 = vmul.u32.u64.compose %v1513, %v1512
        %v1515 = vextract.low.u32 %v1514
        %v1516 = vextract.high.u32 %v1514
        %v1517 = vmul.u32.u64.compose %v1513, %v1508
        %v1518 = vextract.low.u32 %v1517
        %v1519 = vextract.high.u32 %v1517
        %v1520 = vmul.u32 %v1513, %v1504
        %v1521 = vadd.s32 %v1516, %v1518
        %vm1522 = vc.u32 %v1516, %v1518
        %v1523 = vadd.s32 %v1519, 1
        %v1524 = vsel %vm1522, %v1523, %v1519
        %v1525 = vadd.s32 %v1520, %v1524
        %v1526 = vadd.s32 %v1525, 536870912
        %v1527 = vshrl.u32 %v1526, 30
        %v1528 = vshll.u32 %v1527, 30
        %v1529 = vsub.s32 %v1525, %v1528
        %vm1530 = vcmp.lt.s32.totalorder %v1529, 0
        %v1531 = vsub.s32 0, %v1529
        %v1532 = vsel %vm1530, %v1531, %v1529
        %v1533 = vclz %v1532
        %v1534 = vsub.s32 %v1533, 2
        %vm1535 = vcmp.gt.s32.totalorder 0, %v1534
        %v1536 = vsel %vm1535, 0, %v1534
        %v1537 = vsub.s32 32, %v1536
        %v1538 = vshll.u32 %v1529, %v1536
        %v1539 = vshrl.u32 %v1521, %v1537
        %v1540 = vor.u32 %v1538, %v1539
        %v1541 = vsub.s32 4294967266, %v1536
        %v1542 = vadd.s32 %v1541, 127
        %v1543 = vshll.u32 %v1542, 23
        %v1544 = vor.u32 4788187, %v1543
        %v1545 = vand.u32 2147483647, %v1544
        %v1547 = vcvt.s32.f32 %v1540
        %v1548 = vmul.f32 %v1547, %v1545
        %v1549 = vxor.u32 %v1548, 2147483648
        %v1550 = vsel %vm1467, %v1549, %v1548
        %v1551 = vsub.s32 4, %v1527
        %v1552 = vsel %vm1467, %v1551, %v1527
        %v1553 = vsel %vm1466, %v432, %v1550
        %v1554 = vsel %vm1466, 0, %v1552
        %v1555 = vcosq.f32.pop %v1553
        %v1556 = vsinq.f32.pop %v1553
        %vm1557 = vweird.f32 %v432
        %v1558 = vadd.s32 %v1554, 3
        %v1559 = vand.u32 %v1558, 3
        %vm1560 = vcmp.lt.s32.totalorder %v1559, 2
        %vm1561 = vcmp.eq.s32.totalorder %v1559, 0
        %v1562 = vxor.u32 %v1556, 2147483648
        %v1563 = vsel %vm1561, %v1555, %v1562
        %vm1564 = vcmp.eq.s32.totalorder %v1559, 2
        %v1565 = vxor.u32 %v1555, 2147483648
        %v1566 = vsel %vm1564, %v1565, %v1556
        %v1567 = vsel %vm1560, %v1563, %v1566
        %v1568 = vsel %vm1557, nan, %v1567
        %v1569 = vand.u32 2147483647, %v519
        %vm1570 = vcmp.le.f32.partialorder %v1569, 0.7853982
        %vm1571 = vcmp.lt.s32.totalorder %v519, 0
        %v1572 = vand.u32 %v519, 2139095040
        %v1573 = vshrl.u32 %v1572, 23
        %v1574 = vsub.s32 %v1573, 127
        %v1575 = vand.u32 2147483647, %v519
        %v1576 = vand.u32 %v1575, 8388607
        %v1577 = vor.u32 %v1576, 8388608
        %v1578 = vsub.s32 0, %v1577
        %v1579 = vadd.s32 %v1574, 1
        %vm1580 = vcmp.gt.s32.totalorder %v1579, 0
        %v1581 = vsel %vm1580, %v1579, 0
        %v1582 = vshrl.u32 %v1581, 5
        %v1583 = vand.u32 %v1581, 31
        %v1584 = vsub.s32 32, %v1583
        %v1585 = vshrl.u32 683565275, %v1584
        %v1586 = vshll.u32 683565275, %v1583
        %v1587 = vshrl.u32 2475754826, %v1584
        %v1588 = vor.u32 %v1586, %v1587
        %v1589 = vshll.u32 2475754826, %v1583
        %v1590 = vshrl.u32 2131351028, %v1584
        %v1591 = vor.u32 %v1589, %v1590
        %v1592 = vshll.u32 2131351028, %v1583
        %v1593 = vshrl.u32 2102212464, %v1584
        %v1594 = vor.u32 %v1592, %v1593
        %v1595 = vshll.u32 2102212464, %v1583
        %v1596 = vshrl.u32 920167782, %v1584
        %v1597 = vor.u32 %v1595, %v1596
        %v1598 = vshll.u32 920167782, %v1583
        %v1599 = vshrl.u32 1326507024, %v1584
        %v1600 = vor.u32 %v1598, %v1599
        %vm1601 = vcmp.lt.s32.totalorder %v1582, 1
        %vm1602 = vcmp.lt.s32.totalorder %v1582, 2
        %vm1603 = vcmp.lt.s32.totalorder %v1582, 3
        %vm1604 = vcmp.lt.s32.totalorder %v1582, 4
        %v1605 = vsel %vm1601, %v1585, %v1588
        %v1606 = vsel %vm1604, %v1594, 2102212464
        %v1607 = vsel %vm1603, %v1591, %v1606
        %v1608 = vsel %vm1602, %v1605, %v1607
        %v1609 = vsel %vm1601, %v1588, %v1591
        %v1610 = vsel %vm1604, %v1597, 920167782
        %v1611 = vsel %vm1603, %v1594, %v1610
        %v1612 = vsel %vm1602, %v1609, %v1611
        %v1613 = vsel %vm1601, %v1591, %v1594
        %v1614 = vsel %vm1604, %v1600, 1326507024
        %v1615 = vsel %vm1603, %v1597, %v1614
        %v1616 = vsel %vm1602, %v1613, %v1615
        %v1617 = vshll.u32 %v1577, 8
        %v1618 = vmul.u32.u64.compose %v1617, %v1616
        %v1619 = vextract.low.u32 %v1618
        %v1620 = vextract.high.u32 %v1618
        %v1621 = vmul.u32.u64.compose %v1617, %v1612
        %v1622 = vextract.low.u32 %v1621
        %v1623 = vextract.high.u32 %v1621
        %v1624 = vmul.u32 %v1617, %v1608
        %v1625 = vadd.s32 %v1620, %v1622
        %vm1626 = vc.u32 %v1620, %v1622
        %v1627 = vadd.s32 %v1623, 1
        %v1628 = vsel %vm1626, %v1627, %v1623
        %v1629 = vadd.s32 %v1624, %v1628
        %v1630 = vadd.s32 %v1629, 536870912
        %v1631 = vshrl.u32 %v1630, 30
        %v1632 = vshll.u32 %v1631, 30
        %v1633 = vsub.s32 %v1629, %v1632
        %vm1634 = vcmp.lt.s32.totalorder %v1633, 0
        %v1635 = vsub.s32 0, %v1633
        %v1636 = vsel %vm1634, %v1635, %v1633
        %v1637 = vclz %v1636
        %v1638 = vsub.s32 %v1637, 2
        %vm1639 = vcmp.gt.s32.totalorder 0, %v1638
        %v1640 = vsel %vm1639, 0, %v1638
        %v1641 = vsub.s32 32, %v1640
        %v1642 = vshll.u32 %v1633, %v1640
        %v1643 = vshrl.u32 %v1625, %v1641
        %v1644 = vor.u32 %v1642, %v1643
        %v1645 = vsub.s32 4294967266, %v1640
        %v1646 = vadd.s32 %v1645, 127
        %v1647 = vshll.u32 %v1646, 23
        %v1648 = vor.u32 4788187, %v1647
        %v1649 = vand.u32 2147483647, %v1648
        %v1651 = vcvt.s32.f32 %v1644
        %v1652 = vmul.f32 %v1651, %v1649
        %v1653 = vxor.u32 %v1652, 2147483648
        %v1654 = vsel %vm1571, %v1653, %v1652
        %v1655 = vsub.s32 4, %v1631
        %v1656 = vsel %vm1571, %v1655, %v1631
        %v1657 = vsel %vm1570, %v519, %v1654
        %v1658 = vsel %vm1570, 0, %v1656
        %v1659 = vcosq.f32.pop %v1657
        %v1660 = vsinq.f32.pop %v1657
        %vm1661 = vweird.f32 %v519
        %v1662 = vadd.s32 %v1658, 3
        %v1663 = vand.u32 %v1662, 3
        %vm1664 = vcmp.lt.s32.totalorder %v1663, 2
        %vm1665 = vcmp.eq.s32.totalorder %v1663, 0
        %v1666 = vxor.u32 %v1660, 2147483648
        %v1667 = vsel %vm1665, %v1659, %v1666
        %vm1668 = vcmp.eq.s32.totalorder %v1663, 2
        %v1669 = vxor.u32 %v1659, 2147483648
        %v1670 = vsel %vm1668, %v1669, %v1660
        %v1671 = vsel %vm1664, %v1667, %v1670
        %v1672 = vsel %vm1661, nan, %v1671
        %v1673 = vand.u32 2147483647, %v521
        %vm1674 = vcmp.le.f32.partialorder %v1673, 0.7853982
        %vm1675 = vcmp.lt.s32.totalorder %v521, 0
        %v1676 = vand.u32 %v521, 2139095040
        %v1677 = vshrl.u32 %v1676, 23
        %v1678 = vsub.s32 %v1677, 127
        %v1679 = vand.u32 2147483647, %v521
        %v1680 = vand.u32 %v1679, 8388607
        %v1681 = vor.u32 %v1680, 8388608
        %v1682 = vsub.s32 0, %v1681
        %v1683 = vadd.s32 %v1678, 1
        %vm1684 = vcmp.gt.s32.totalorder %v1683, 0
        %v1685 = vsel %vm1684, %v1683, 0
        %v1686 = vshrl.u32 %v1685, 5
        %v1687 = vand.u32 %v1685, 31
        %v1688 = vsub.s32 32, %v1687
        %v1689 = vshrl.u32 683565275, %v1688
        %v1690 = vshll.u32 683565275, %v1687
        %v1691 = vshrl.u32 2475754826, %v1688
        %v1692 = vor.u32 %v1690, %v1691
        %v1693 = vshll.u32 2475754826, %v1687
        %v1694 = vshrl.u32 2131351028, %v1688
        %v1695 = vor.u32 %v1693, %v1694
        %v1696 = vshll.u32 2131351028, %v1687
        %v1697 = vshrl.u32 2102212464, %v1688
        %v1698 = vor.u32 %v1696, %v1697
        %v1699 = vshll.u32 2102212464, %v1687
        %v1700 = vshrl.u32 920167782, %v1688
        %v1701 = vor.u32 %v1699, %v1700
        %v1702 = vshll.u32 920167782, %v1687
        %v1703 = vshrl.u32 1326507024, %v1688
        %v1704 = vor.u32 %v1702, %v1703
        %vm1705 = vcmp.lt.s32.totalorder %v1686, 1
        %vm1706 = vcmp.lt.s32.totalorder %v1686, 2
        %vm1707 = vcmp.lt.s32.totalorder %v1686, 3
        %vm1708 = vcmp.lt.s32.totalorder %v1686, 4
        %v1709 = vsel %vm1705, %v1689, %v1692
        %v1710 = vsel %vm1708, %v1698, 2102212464
        %v1711 = vsel %vm1707, %v1695, %v1710
        %v1712 = vsel %vm1706, %v1709, %v1711
        %v1713 = vsel %vm1705, %v1692, %v1695
        %v1714 = vsel %vm1708, %v1701, 920167782
        %v1715 = vsel %vm1707, %v1698, %v1714
        %v1716 = vsel %vm1706, %v1713, %v1715
        %v1717 = vsel %vm1705, %v1695, %v1698
        %v1718 = vsel %vm1708, %v1704, 1326507024
        %v1719 = vsel %vm1707, %v1701, %v1718
        %v1720 = vsel %vm1706, %v1717, %v1719
        %v1721 = vshll.u32 %v1681, 8
        %v1722 = vmul.u32.u64.compose %v1721, %v1720
        %v1723 = vextract.low.u32 %v1722
        %v1724 = vextract.high.u32 %v1722
        %v1725 = vmul.u32.u64.compose %v1721, %v1716
        %v1726 = vextract.low.u32 %v1725
        %v1727 = vextract.high.u32 %v1725
        %v1728 = vmul.u32 %v1721, %v1712
        %v1729 = vadd.s32 %v1724, %v1726
        %vm1730 = vc.u32 %v1724, %v1726
        %v1731 = vadd.s32 %v1727, 1
        %v1732 = vsel %vm1730, %v1731, %v1727
        %v1733 = vadd.s32 %v1728, %v1732
        %v1734 = vadd.s32 %v1733, 536870912
        %v1735 = vshrl.u32 %v1734, 30
        %v1736 = vshll.u32 %v1735, 30
        %v1737 = vsub.s32 %v1733, %v1736
        %vm1738 = vcmp.lt.s32.totalorder %v1737, 0
        %v1739 = vsub.s32 0, %v1737
        %v1740 = vsel %vm1738, %v1739, %v1737
        %v1741 = vclz %v1740
        %v1742 = vsub.s32 %v1741, 2
        %vm1743 = vcmp.gt.s32.totalorder 0, %v1742
        %v1744 = vsel %vm1743, 0, %v1742
        %v1745 = vsub.s32 32, %v1744
        %v1746 = vshll.u32 %v1737, %v1744
        %v1747 = vshrl.u32 %v1729, %v1745
        %v1748 = vor.u32 %v1746, %v1747
        %v1749 = vsub.s32 4294967266, %v1744
        %v1750 = vadd.s32 %v1749, 127
        %v1751 = vshll.u32 %v1750, 23
        %v1752 = vor.u32 4788187, %v1751
        %v1753 = vand.u32 2147483647, %v1752
        %v1755 = vcvt.s32.f32 %v1748
        %v1756 = vmul.f32 %v1755, %v1753
        %v1757 = vxor.u32 %v1756, 2147483648
        %v1758 = vsel %vm1675, %v1757, %v1756
        %v1759 = vsub.s32 4, %v1735
        %v1760 = vsel %vm1675, %v1759, %v1735
        %v1761 = vsel %vm1674, %v521, %v1758
        %v1762 = vsel %vm1674, 0, %v1760
        %v1763 = vcosq.f32.pop %v1761
        %v1764 = vsinq.f32.pop %v1761
        %vm1765 = vweird.f32 %v521
        %v1766 = vadd.s32 %v1762, 3
        %v1767 = vand.u32 %v1766, 3
        %vm1768 = vcmp.lt.s32.totalorder %v1767, 2
        %vm1769 = vcmp.eq.s32.totalorder %v1767, 0
        %v1770 = vxor.u32 %v1764, 2147483648
        %v1771 = vsel %vm1769, %v1763, %v1770
        %vm1772 = vcmp.eq.s32.totalorder %v1767, 2
        %v1773 = vxor.u32 %v1763, 2147483648
        %v1774 = vsel %vm1772, %v1773, %v1764
        %v1775 = vsel %vm1768, %v1771, %v1774
        %v1776 = vsel %vm1765, nan, %v1775
        %v1777 = vand.u32 2147483647, %v436
        %vm1778 = vcmp.le.f32.partialorder %v1777, 0.7853982
        %vm1779 = vcmp.lt.s32.totalorder %v436, 0
        %v1780 = vand.u32 %v436, 2139095040
        %v1781 = vshrl.u32 %v1780, 23
        %v1782 = vsub.s32 %v1781, 127
        %v1783 = vand.u32 2147483647, %v436
        %v1784 = vand.u32 %v1783, 8388607
        %v1785 = vor.u32 %v1784, 8388608
        %v1786 = vsub.s32 0, %v1785
        %v1787 = vadd.s32 %v1782, 1
        %vm1788 = vcmp.gt.s32.totalorder %v1787, 0
        %v1789 = vsel %vm1788, %v1787, 0
        %v1790 = vshrl.u32 %v1789, 5
        %v1791 = vand.u32 %v1789, 31
        %v1792 = vsub.s32 32, %v1791
        %v1793 = vshrl.u32 683565275, %v1792
        %v1794 = vshll.u32 683565275, %v1791
        %v1795 = vshrl.u32 2475754826, %v1792
        %v1796 = vor.u32 %v1794, %v1795
        %v1797 = vshll.u32 2475754826, %v1791
        %v1798 = vshrl.u32 2131351028, %v1792
        %v1799 = vor.u32 %v1797, %v1798
        %v1800 = vshll.u32 2131351028, %v1791
        %v1801 = vshrl.u32 2102212464, %v1792
        %v1802 = vor.u32 %v1800, %v1801
        %v1803 = vshll.u32 2102212464, %v1791
        %v1804 = vshrl.u32 920167782, %v1792
        %v1805 = vor.u32 %v1803, %v1804
        %v1806 = vshll.u32 920167782, %v1791
        %v1807 = vshrl.u32 1326507024, %v1792
        %v1808 = vor.u32 %v1806, %v1807
        %vm1809 = vcmp.lt.s32.totalorder %v1790, 1
        %vm1810 = vcmp.lt.s32.totalorder %v1790, 2
        %vm1811 = vcmp.lt.s32.totalorder %v1790, 3
        %vm1812 = vcmp.lt.s32.totalorder %v1790, 4
        %v1813 = vsel %vm1809, %v1793, %v1796
        %v1814 = vsel %vm1812, %v1802, 2102212464
        %v1815 = vsel %vm1811, %v1799, %v1814
        %v1816 = vsel %vm1810, %v1813, %v1815
        %v1817 = vsel %vm1809, %v1796, %v1799
        %v1818 = vsel %vm1812, %v1805, 920167782
        %v1819 = vsel %vm1811, %v1802, %v1818
        %v1820 = vsel %vm1810, %v1817, %v1819
        %v1821 = vsel %vm1809, %v1799, %v1802
        %v1822 = vsel %vm1812, %v1808, 1326507024
        %v1823 = vsel %vm1811, %v1805, %v1822
        %v1824 = vsel %vm1810, %v1821, %v1823
        %v1825 = vshll.u32 %v1785, 8
        %v1826 = vmul.u32.u64.compose %v1825, %v1824
        %v1827 = vextract.low.u32 %v1826
        %v1828 = vextract.high.u32 %v1826
        %v1829 = vmul.u32.u64.compose %v1825, %v1820
        %v1830 = vextract.low.u32 %v1829
        %v1831 = vextract.high.u32 %v1829
        %v1832 = vmul.u32 %v1825, %v1816
        %v1833 = vadd.s32 %v1828, %v1830
        %vm1834 = vc.u32 %v1828, %v1830
        %v1835 = vadd.s32 %v1831, 1
        %v1836 = vsel %vm1834, %v1835, %v1831
        %v1837 = vadd.s32 %v1832, %v1836
        %v1838 = vadd.s32 %v1837, 536870912
        %v1839 = vshrl.u32 %v1838, 30
        %v1840 = vshll.u32 %v1839, 30
        %v1841 = vsub.s32 %v1837, %v1840
        %vm1842 = vcmp.lt.s32.totalorder %v1841, 0
        %v1843 = vsub.s32 0, %v1841
        %v1844 = vsel %vm1842, %v1843, %v1841
        %v1845 = vclz %v1844
        %v1846 = vsub.s32 %v1845, 2
        %vm1847 = vcmp.gt.s32.totalorder 0, %v1846
        %v1848 = vsel %vm1847, 0, %v1846
        %v1849 = vsub.s32 32, %v1848
        %v1850 = vshll.u32 %v1841, %v1848
        %v1851 = vshrl.u32 %v1833, %v1849
        %v1852 = vor.u32 %v1850, %v1851
        %v1853 = vsub.s32 4294967266, %v1848
        %v1854 = vadd.s32 %v1853, 127
        %v1855 = vshll.u32 %v1854, 23
        %v1856 = vor.u32 4788187, %v1855
        %v1857 = vand.u32 2147483647, %v1856
        %v1859 = vcvt.s32.f32 %v1852
        %v1860 = vmul.f32 %v1859, %v1857
        %v1861 = vxor.u32 %v1860, 2147483648
        %v1862 = vsel %vm1779, %v1861, %v1860
        %v1863 = vsub.s32 4, %v1839
        %v1864 = vsel %vm1779, %v1863, %v1839
        %v1865 = vsel %vm1778, %v436, %v1862
        %v1866 = vsel %vm1778, 0, %v1864
        %v1867 = vcosq.f32.pop %v1865
        %v1868 = vsinq.f32.pop %v1865
        %vm1869 = vweird.f32 %v436
        %v1870 = vadd.s32 %v1866, 3
        %v1871 = vand.u32 %v1870, 3
        %vm1872 = vcmp.lt.s32.totalorder %v1871, 2
        %vm1873 = vcmp.eq.s32.totalorder %v1871, 0
        %v1874 = vxor.u32 %v1868, 2147483648
        %v1875 = vsel %vm1873, %v1867, %v1874
        %vm1876 = vcmp.eq.s32.totalorder %v1871, 2
        %v1877 = vxor.u32 %v1867, 2147483648
        %v1878 = vsel %vm1876, %v1877, %v1868
        %v1879 = vsel %vm1872, %v1875, %v1878
        %v1880 = vsel %vm1869, nan, %v1879
        %v1881 = vand.u32 2147483647, %v438
        %vm1882 = vcmp.le.f32.partialorder %v1881, 0.7853982
        %vm1883 = vcmp.lt.s32.totalorder %v438, 0
        %v1884 = vand.u32 %v438, 2139095040
        %v1885 = vshrl.u32 %v1884, 23
        %v1886 = vsub.s32 %v1885, 127
        %v1887 = vand.u32 2147483647, %v438
        %v1888 = vand.u32 %v1887, 8388607
        %v1889 = vor.u32 %v1888, 8388608
        %v1890 = vsub.s32 0, %v1889
        %v1891 = vadd.s32 %v1886, 1
        %vm1892 = vcmp.gt.s32.totalorder %v1891, 0
        %v1893 = vsel %vm1892, %v1891, 0
        %v1894 = vshrl.u32 %v1893, 5
        %v1895 = vand.u32 %v1893, 31
        %v1896 = vsub.s32 32, %v1895
        %v1897 = vshrl.u32 683565275, %v1896
        %v1898 = vshll.u32 683565275, %v1895
        %v1899 = vshrl.u32 2475754826, %v1896
        %v1900 = vor.u32 %v1898, %v1899
        %v1901 = vshll.u32 2475754826, %v1895
        %v1902 = vshrl.u32 2131351028, %v1896
        %v1903 = vor.u32 %v1901, %v1902
        %v1904 = vshll.u32 2131351028, %v1895
        %v1905 = vshrl.u32 2102212464, %v1896
        %v1906 = vor.u32 %v1904, %v1905
        %v1907 = vshll.u32 2102212464, %v1895
        %v1908 = vshrl.u32 920167782, %v1896
        %v1909 = vor.u32 %v1907, %v1908
        %v1910 = vshll.u32 920167782, %v1895
        %v1911 = vshrl.u32 1326507024, %v1896
        %v1912 = vor.u32 %v1910, %v1911
        %vm1913 = vcmp.lt.s32.totalorder %v1894, 1
        %vm1914 = vcmp.lt.s32.totalorder %v1894, 2
        %vm1915 = vcmp.lt.s32.totalorder %v1894, 3
        %vm1916 = vcmp.lt.s32.totalorder %v1894, 4
        %v1917 = vsel %vm1913, %v1897, %v1900
        %v1918 = vsel %vm1916, %v1906, 2102212464
        %v1919 = vsel %vm1915, %v1903, %v1918
        %v1920 = vsel %vm1914, %v1917, %v1919
        %v1921 = vsel %vm1913, %v1900, %v1903
        %v1922 = vsel %vm1916, %v1909, 920167782
        %v1923 = vsel %vm1915, %v1906, %v1922
        %v1924 = vsel %vm1914, %v1921, %v1923
        %v1925 = vsel %vm1913, %v1903, %v1906
        %v1926 = vsel %vm1916, %v1912, 1326507024
        %v1927 = vsel %vm1915, %v1909, %v1926
        %v1928 = vsel %vm1914, %v1925, %v1927
        %v1929 = vshll.u32 %v1889, 8
        %v1930 = vmul.u32.u64.compose %v1929, %v1928
        %v1931 = vextract.low.u32 %v1930
        %v1932 = vextract.high.u32 %v1930
        %v1933 = vmul.u32.u64.compose %v1929, %v1924
        %v1934 = vextract.low.u32 %v1933
        %v1935 = vextract.high.u32 %v1933
        %v1936 = vmul.u32 %v1929, %v1920
        %v1937 = vadd.s32 %v1932, %v1934
        %vm1938 = vc.u32 %v1932, %v1934
        %v1939 = vadd.s32 %v1935, 1
        %v1940 = vsel %vm1938, %v1939, %v1935
        %v1941 = vadd.s32 %v1936, %v1940
        %v1942 = vadd.s32 %v1941, 536870912
        %v1943 = vshrl.u32 %v1942, 30
        %v1944 = vshll.u32 %v1943, 30
        %v1945 = vsub.s32 %v1941, %v1944
        %vm1946 = vcmp.lt.s32.totalorder %v1945, 0
        %v1947 = vsub.s32 0, %v1945
        %v1948 = vsel %vm1946, %v1947, %v1945
        %v1949 = vclz %v1948
        %v1950 = vsub.s32 %v1949, 2
        %vm1951 = vcmp.gt.s32.totalorder 0, %v1950
        %v1952 = vsel %vm1951, 0, %v1950
        %v1953 = vsub.s32 32, %v1952
        %v1954 = vshll.u32 %v1945, %v1952
        %v1955 = vshrl.u32 %v1937, %v1953
        %v1956 = vor.u32 %v1954, %v1955
        %v1957 = vsub.s32 4294967266, %v1952
        %v1958 = vadd.s32 %v1957, 127
        %v1959 = vshll.u32 %v1958, 23
        %v1960 = vor.u32 4788187, %v1959
        %v1961 = vand.u32 2147483647, %v1960
        %v1963 = vcvt.s32.f32 %v1956
        %v1964 = vmul.f32 %v1963, %v1961
        %v1965 = vxor.u32 %v1964, 2147483648
        %v1966 = vsel %vm1883, %v1965, %v1964
        %v1967 = vsub.s32 4, %v1943
        %v1968 = vsel %vm1883, %v1967, %v1943
        %v1969 = vsel %vm1882, %v438, %v1966
        %v1970 = vsel %vm1882, 0, %v1968
        %v1971 = vcosq.f32.pop %v1969
        %v1972 = vsinq.f32.pop %v1969
        %vm1973 = vweird.f32 %v438
        %v1974 = vadd.s32 %v1970, 3
        %v1975 = vand.u32 %v1974, 3
        %vm1976 = vcmp.lt.s32.totalorder %v1975, 2
        %vm1977 = vcmp.eq.s32.totalorder %v1975, 0
        %v1978 = vxor.u32 %v1972, 2147483648
        %v1979 = vsel %vm1977, %v1971, %v1978
        %vm1980 = vcmp.eq.s32.totalorder %v1975, 2
        %v1981 = vxor.u32 %v1971, 2147483648
        %v1982 = vsel %vm1980, %v1981, %v1972
        %v1983 = vsel %vm1976, %v1979, %v1982
        %v1984 = vsel %vm1973, nan, %v1983
        %v1985 = vand.u32 2147483647, %v525
        %vm1986 = vcmp.le.f32.partialorder %v1985, 0.7853982
        %vm1987 = vcmp.lt.s32.totalorder %v525, 0
        %v1988 = vand.u32 %v525, 2139095040
        %v1989 = vshrl.u32 %v1988, 23
        %v1990 = vsub.s32 %v1989, 127
        %v1991 = vand.u32 2147483647, %v525
        %v1992 = vand.u32 %v1991, 8388607
        %v1993 = vor.u32 %v1992, 8388608
        %v1994 = vsub.s32 0, %v1993
        %v1995 = vadd.s32 %v1990, 1
        %vm1996 = vcmp.gt.s32.totalorder %v1995, 0
        %v1997 = vsel %vm1996, %v1995, 0
        %v1998 = vshrl.u32 %v1997, 5
        %v1999 = vand.u32 %v1997, 31
        %v2000 = vsub.s32 32, %v1999
        %v2001 = vshrl.u32 683565275, %v2000
        %v2002 = vshll.u32 683565275, %v1999
        %v2003 = vshrl.u32 2475754826, %v2000
        %v2004 = vor.u32 %v2002, %v2003
        %v2005 = vshll.u32 2475754826, %v1999
        %v2006 = vshrl.u32 2131351028, %v2000
        %v2007 = vor.u32 %v2005, %v2006
        %v2008 = vshll.u32 2131351028, %v1999
        %v2009 = vshrl.u32 2102212464, %v2000
        %v2010 = vor.u32 %v2008, %v2009
        %v2011 = vshll.u32 2102212464, %v1999
        %v2012 = vshrl.u32 920167782, %v2000
        %v2013 = vor.u32 %v2011, %v2012
        %v2014 = vshll.u32 920167782, %v1999
        %v2015 = vshrl.u32 1326507024, %v2000
        %v2016 = vor.u32 %v2014, %v2015
        %vm2017 = vcmp.lt.s32.totalorder %v1998, 1
        %vm2018 = vcmp.lt.s32.totalorder %v1998, 2
        %vm2019 = vcmp.lt.s32.totalorder %v1998, 3
        %vm2020 = vcmp.lt.s32.totalorder %v1998, 4
        %v2021 = vsel %vm2017, %v2001, %v2004
        %v2022 = vsel %vm2020, %v2010, 2102212464
        %v2023 = vsel %vm2019, %v2007, %v2022
        %v2024 = vsel %vm2018, %v2021, %v2023
        %v2025 = vsel %vm2017, %v2004, %v2007
        %v2026 = vsel %vm2020, %v2013, 920167782
        %v2027 = vsel %vm2019, %v2010, %v2026
        %v2028 = vsel %vm2018, %v2025, %v2027
        %v2029 = vsel %vm2017, %v2007, %v2010
        %v2030 = vsel %vm2020, %v2016, 1326507024
        %v2031 = vsel %vm2019, %v2013, %v2030
        %v2032 = vsel %vm2018, %v2029, %v2031
        %v2033 = vshll.u32 %v1993, 8
        %v2034 = vmul.u32.u64.compose %v2033, %v2032
        %v2035 = vextract.low.u32 %v2034
        %v2036 = vextract.high.u32 %v2034
        %v2037 = vmul.u32.u64.compose %v2033, %v2028
        %v2038 = vextract.low.u32 %v2037
        %v2039 = vextract.high.u32 %v2037
        %v2040 = vmul.u32 %v2033, %v2024
        %v2041 = vadd.s32 %v2036, %v2038
        %vm2042 = vc.u32 %v2036, %v2038
        %v2043 = vadd.s32 %v2039, 1
        %v2044 = vsel %vm2042, %v2043, %v2039
        %v2045 = vadd.s32 %v2040, %v2044
        %v2046 = vadd.s32 %v2045, 536870912
        %v2047 = vshrl.u32 %v2046, 30
        %v2048 = vshll.u32 %v2047, 30
        %v2049 = vsub.s32 %v2045, %v2048
        %vm2050 = vcmp.lt.s32.totalorder %v2049, 0
        %v2051 = vsub.s32 0, %v2049
        %v2052 = vsel %vm2050, %v2051, %v2049
        %v2053 = vclz %v2052
        %v2054 = vsub.s32 %v2053, 2
        %vm2055 = vcmp.gt.s32.totalorder 0, %v2054
        %v2056 = vsel %vm2055, 0, %v2054
        %v2057 = vsub.s32 32, %v2056
        %v2058 = vshll.u32 %v2049, %v2056
        %v2059 = vshrl.u32 %v2041, %v2057
        %v2060 = vor.u32 %v2058, %v2059
        %v2061 = vsub.s32 4294967266, %v2056
        %v2062 = vadd.s32 %v2061, 127
        %v2063 = vshll.u32 %v2062, 23
        %v2064 = vor.u32 4788187, %v2063
        %v2065 = vand.u32 2147483647, %v2064
        %v2067 = vcvt.s32.f32 %v2060
        %v2068 = vmul.f32 %v2067, %v2065
        %v2069 = vxor.u32 %v2068, 2147483648
        %v2070 = vsel %vm1987, %v2069, %v2068
        %v2071 = vsub.s32 4, %v2047
        %v2072 = vsel %vm1987, %v2071, %v2047
        %v2073 = vsel %vm1986, %v525, %v2070
        %v2074 = vsel %vm1986, 0, %v2072
        %v2075 = vcosq.f32.pop %v2073
        %v2076 = vsinq.f32.pop %v2073
        %vm2077 = vweird.f32 %v525
        %v2078 = vadd.s32 %v2074, 3
        %v2079 = vand.u32 %v2078, 3
        %vm2080 = vcmp.lt.s32.totalorder %v2079, 2
        %vm2081 = vcmp.eq.s32.totalorder %v2079, 0
        %v2082 = vxor.u32 %v2076, 2147483648
        %v2083 = vsel %vm2081, %v2075, %v2082
        %vm2084 = vcmp.eq.s32.totalorder %v2079, 2
        %v2085 = vxor.u32 %v2075, 2147483648
        %v2086 = vsel %vm2084, %v2085, %v2076
        %v2087 = vsel %vm2080, %v2083, %v2086
        %v2088 = vsel %vm2077, nan, %v2087
        %v2089 = vand.u32 2147483647, %v527
        %vm2090 = vcmp.le.f32.partialorder %v2089, 0.7853982
        %vm2091 = vcmp.lt.s32.totalorder %v527, 0
        %v2092 = vand.u32 %v527, 2139095040
        %v2093 = vshrl.u32 %v2092, 23
        %v2094 = vsub.s32 %v2093, 127
        %v2095 = vand.u32 2147483647, %v527
        %v2096 = vand.u32 %v2095, 8388607
        %v2097 = vor.u32 %v2096, 8388608
        %v2098 = vsub.s32 0, %v2097
        %v2099 = vadd.s32 %v2094, 1
        %vm2100 = vcmp.gt.s32.totalorder %v2099, 0
        %v2101 = vsel %vm2100, %v2099, 0
        %v2102 = vshrl.u32 %v2101, 5
        %v2103 = vand.u32 %v2101, 31
        %v2104 = vsub.s32 32, %v2103
        %v2105 = vshrl.u32 683565275, %v2104
        %v2106 = vshll.u32 683565275, %v2103
        %v2107 = vshrl.u32 2475754826, %v2104
        %v2108 = vor.u32 %v2106, %v2107
        %v2109 = vshll.u32 2475754826, %v2103
        %v2110 = vshrl.u32 2131351028, %v2104
        %v2111 = vor.u32 %v2109, %v2110
        %v2112 = vshll.u32 2131351028, %v2103
        %v2113 = vshrl.u32 2102212464, %v2104
        %v2114 = vor.u32 %v2112, %v2113
        %v2115 = vshll.u32 2102212464, %v2103
        %v2116 = vshrl.u32 920167782, %v2104
        %v2117 = vor.u32 %v2115, %v2116
        %v2118 = vshll.u32 920167782, %v2103
        %v2119 = vshrl.u32 1326507024, %v2104
        %v2120 = vor.u32 %v2118, %v2119
        %vm2121 = vcmp.lt.s32.totalorder %v2102, 1
        %vm2122 = vcmp.lt.s32.totalorder %v2102, 2
        %vm2123 = vcmp.lt.s32.totalorder %v2102, 3
        %vm2124 = vcmp.lt.s32.totalorder %v2102, 4
        %v2125 = vsel %vm2121, %v2105, %v2108
        %v2126 = vsel %vm2124, %v2114, 2102212464
        %v2127 = vsel %vm2123, %v2111, %v2126
        %v2128 = vsel %vm2122, %v2125, %v2127
        %v2129 = vsel %vm2121, %v2108, %v2111
        %v2130 = vsel %vm2124, %v2117, 920167782
        %v2131 = vsel %vm2123, %v2114, %v2130
        %v2132 = vsel %vm2122, %v2129, %v2131
        %v2133 = vsel %vm2121, %v2111, %v2114
        %v2134 = vsel %vm2124, %v2120, 1326507024
        %v2135 = vsel %vm2123, %v2117, %v2134
        %v2136 = vsel %vm2122, %v2133, %v2135
        %v2137 = vshll.u32 %v2097, 8
        %v2138 = vmul.u32.u64.compose %v2137, %v2136
        %v2139 = vextract.low.u32 %v2138
        %v2140 = vextract.high.u32 %v2138
        %v2141 = vmul.u32.u64.compose %v2137, %v2132
        %v2142 = vextract.low.u32 %v2141
        %v2143 = vextract.high.u32 %v2141
        %v2144 = vmul.u32 %v2137, %v2128
        %v2145 = vadd.s32 %v2140, %v2142
        %vm2146 = vc.u32 %v2140, %v2142
        %v2147 = vadd.s32 %v2143, 1
        %v2148 = vsel %vm2146, %v2147, %v2143
        %v2149 = vadd.s32 %v2144, %v2148
        %v2150 = vadd.s32 %v2149, 536870912
        %v2151 = vshrl.u32 %v2150, 30
        %v2152 = vshll.u32 %v2151, 30
        %v2153 = vsub.s32 %v2149, %v2152
        %vm2154 = vcmp.lt.s32.totalorder %v2153, 0
        %v2155 = vsub.s32 0, %v2153
        %v2156 = vsel %vm2154, %v2155, %v2153
        %v2157 = vclz %v2156
        %v2158 = vsub.s32 %v2157, 2
        %vm2159 = vcmp.gt.s32.totalorder 0, %v2158
        %v2160 = vsel %vm2159, 0, %v2158
        %v2161 = vsub.s32 32, %v2160
        %v2162 = vshll.u32 %v2153, %v2160
        %v2163 = vshrl.u32 %v2145, %v2161
        %v2164 = vor.u32 %v2162, %v2163
        %v2165 = vsub.s32 4294967266, %v2160
        %v2166 = vadd.s32 %v2165, 127
        %v2167 = vshll.u32 %v2166, 23
        %v2168 = vor.u32 4788187, %v2167
        %v2169 = vand.u32 2147483647, %v2168
        %v2171 = vcvt.s32.f32 %v2164
        %v2172 = vmul.f32 %v2171, %v2169
        %v2173 = vxor.u32 %v2172, 2147483648
        %v2174 = vsel %vm2091, %v2173, %v2172
        %v2175 = vsub.s32 4, %v2151
        %v2176 = vsel %vm2091, %v2175, %v2151
        %v2177 = vsel %vm2090, %v527, %v2174
        %v2178 = vsel %vm2090, 0, %v2176
        %v2179 = vcosq.f32.pop %v2177
        %v2180 = vsinq.f32.pop %v2177
        %vm2181 = vweird.f32 %v527
        %v2182 = vadd.s32 %v2178, 3
        %v2183 = vand.u32 %v2182, 3
        %vm2184 = vcmp.lt.s32.totalorder %v2183, 2
        %vm2185 = vcmp.eq.s32.totalorder %v2183, 0
        %v2186 = vxor.u32 %v2180, 2147483648
        %v2187 = vsel %vm2185, %v2179, %v2186
        %vm2188 = vcmp.eq.s32.totalorder %v2183, 2
        %v2189 = vxor.u32 %v2179, 2147483648
        %v2190 = vsel %vm2188, %v2189, %v2180
        %v2191 = vsel %vm2184, %v2187, %v2190
        %v2192 = vsel %vm2181, nan, %v2191
        %v2193 = vmul.f32 %v632, %v632
        %v2194 = vmul.f32 %v736, %v736
        %v2195 = vmul.f32 %v840, %v840
        %v2196 = vmul.f32 %v944, %v944
        %v2197 = vmul.f32 %v1048, %v1048
        %v2198 = vmul.f32 %v1152, %v1152
        %v2199 = vmul.f32 %v1256, %v1256
        %v2200 = vmul.f32 %v1360, %v1360
        %v2201 = vmul.f32 %v1464, %v1464
        %v2202 = vmul.f32 %v1568, %v1568
        %v2203 = vmul.f32 %v1672, %v1672
        %v2204 = vmul.f32 %v1776, %v1776
        %v2205 = vmul.f32 %v1880, %v1880
        %v2206 = vmul.f32 %v1984, %v1984
        %v2207 = vmul.f32 %v2088, %v2088
        %v2208 = vmul.f32 %v2192, %v2192
        %v2209 = vmul.f32 %v2193, -1.3333334
        %v2210 = vmul.f32 %v2194, -1.3333334
        %v2211 = vmul.f32 %v2195, -1.3333334
        %v2212 = vmul.f32 %v2196, -1.3333334
        %v2213 = vmul.f32 %v2197, -1.3333334
        %v2214 = vmul.f32 %v2198, -1.3333334
        %v2215 = vmul.f32 %v2199, -1.3333334
        %v2216 = vmul.f32 %v2200, -1.3333334
        %v2217 = vmul.f32 %v2201, -1.3333334
        %v2218 = vmul.f32 %v2202, -1.3333334
        %v2219 = vmul.f32 %v2203, -1.3333334
        %v2220 = vmul.f32 %v2204, -1.3333334
        %v2221 = vmul.f32 %v2205, -1.3333334
        %v2222 = vmul.f32 %v2206, -1.3333334
        %v2223 = vmul.f32 %v2207, -1.3333334
        %v2224 = vmul.f32 %v2208, -1.3333334
        %v2225 = vadd.f32 %v2209, 2.0
        %v2226 = vadd.f32 %v2210, 2.0
        %v2227 = vadd.f32 %v2211, 2.0
        %v2228 = vadd.f32 %v2212, 2.0
        %v2229 = vadd.f32 %v2213, 2.0
        %v2230 = vadd.f32 %v2214, 2.0
        %v2231 = vadd.f32 %v2215, 2.0
        %v2232 = vadd.f32 %v2216, 2.0
        %v2233 = vadd.f32 %v2217, 2.0
        %v2234 = vadd.f32 %v2218, 2.0
        %v2235 = vadd.f32 %v2219, 2.0
        %v2236 = vadd.f32 %v2220, 2.0
        %v2237 = vadd.f32 %v2221, 2.0
        %v2238 = vadd.f32 %v2222, 2.0
        %v2239 = vadd.f32 %v2223, 2.0
        %v2240 = vadd.f32 %v2224, 2.0
        %v2241 = vmul.f32 %v632, %v2225
        %v2242 = vmul.f32 %v736, %v2226
        %v2243 = vmul.f32 %v840, %v2227
        %v2244 = vmul.f32 %v944, %v2228
        %v2245 = vmul.f32 %v1048, %v2229
        %v2246 = vmul.f32 %v1152, %v2230
        %v2247 = vmul.f32 %v1256, %v2231
        %v2248 = vmul.f32 %v1360, %v2232
        %v2249 = vmul.f32 %v1464, %v2233
        %v2250 = vmul.f32 %v1568, %v2234
        %v2251 = vmul.f32 %v1672, %v2235
        %v2252 = vmul.f32 %v1776, %v2236
        %v2253 = vmul.f32 %v1880, %v2237
        %v2254 = vmul.f32 %v1984, %v2238
        %v2255 = vmul.f32 %v2088, %v2239
        %v2256 = vmul.f32 %v2192, %v2240
        %v2257 = vld [vmem:[%s3] sm:$0xff]
        %v2258 = vld [vmem:[%s3 + $0x8] sm:$0xff]
        %v2259 = vld [vmem:[%s3 + $0x10] sm:$0xff]
        %v2260 = vld [vmem:[%s3 + $0x18] sm:$0xff]
        %v2261 = vld [vmem:[%s4] sm:$0xff]
        %v2262 = vld [vmem:[%s4 + $0x8] sm:$0xff]
        %v2263 = vld [vmem:[%s4 + $0x10] sm:$0xff]
        %v2264 = vld [vmem:[%s4 + $0x18] sm:$0xff]
        %2266 = vset.pattern.permute.xlu0 0
        %2267 = vperm.xlu0 %2266, %v2261
        %v2268 = vpop.permute.xlu0 %2267
        %2271 = vset.pattern.permute.xlu0 0
        %2272 = vperm.xlu0 %2271, %v2262
        %v2273 = vpop.permute.xlu0 %2272
        %2276 = vset.pattern.permute.xlu0 0
        %2277 = vperm.xlu0 %2276, %v2263
        %v2278 = vpop.permute.xlu0 %2277
        %2281 = vset.pattern.permute.xlu0 0
        %2282 = vperm.xlu0 %2281, %v2264
        %v2283 = vpop.permute.xlu0 %2282
        %vm2285 = vcmask 261120
        %v2287 = vsel %vm2285, %v2257, 0
        %v2290 = vsel %vm2285, %v2258, 0
        %v2293 = vsel %vm2285, %v2259, 0
        %v2296 = vsel %vm2285, %v2260, 0
        %2298 = vmatprep.subr.mxu0 0.0
        %2299 = vmatpush1.msra.mxu0 0.0
        %2300 = vmatprep.subr.mxu0 0.0
        %2301 = vmatpush1.msra.mxu0 0.0
        %2302 = vmatprep.subr.mxu0 0.0
        %2303 = vmatpush1.msra.mxu0 0.0
        %2304 = vmatprep.subr.mxu0 0.0
        %2305 = vmatpush1.msra.mxu0 0.0
        %2306 = vmatprep.subr.mxu0 0.0
        %2307 = vmatpush1.msra.mxu0 0.0
        %2308 = vmatprep.subr.mxu0 0.0
        %2309 = vmatpush1.msra.mxu0 0.0
        %2310 = vmatprep.subr.mxu0 0.0
        %2311 = vmatpush1.msra.mxu0 0.0
        %2312 = vmatprep.subr.mxu0 0.0
        %2313 = vmatpush1.msra.mxu0 0.0
        %2314 = vmatprep.subr.mxu0 0.0
        %2315 = vmatpush1.msra.mxu0 0.0
        %2316 = vmatprep.subr.mxu0 0.0
        %2317 = vmatpush1.msra.mxu0 0.0
        %2318 = vmatprep.subr.mxu0 0.0
        %2319 = vmatpush1.msra.mxu0 0.0
        %2320 = vmatprep.subr.mxu0 0.0
        %2321 = vmatpush1.msra.mxu0 0.0
        %2322 = vmatprep.subr.mxu0 %v2254
        %2323 = vmatpush1.msra.mxu0 %v2253
        %2324 = vmatprep.subr.mxu0 %v2250
        %2325 = vmatpush1.msra.mxu0 %v2249
        %2326 = vmatprep.subr.mxu0 %v2246
        %2327 = vmatpush1.msra.mxu0 %v2245
        %2328 = vmatprep.subr.mxu0 %v2242
        %2329 = vmatpush1.msra.mxu0 %v2241
        %2330 = vmatprep.subr.mxu0 0.0
        %2331 = vmatpush2.msra.mxu0 0.0
        %2332 = vmatprep.subr.mxu0 0.0
        %2333 = vmatpush2.msra.mxu0 0.0
        %2334 = vmatprep.subr.mxu0 0.0
        %2335 = vmatpush2.msra.mxu0 0.0
        %2336 = vmatprep.subr.mxu0 0.0
        %2337 = vmatpush2.msra.mxu0 0.0
        %2338 = vmatprep.subr.mxu0 0.0
        %2339 = vmatpush2.msra.mxu0 0.0
        %2340 = vmatprep.subr.mxu0 0.0
        %2341 = vmatpush2.msra.mxu0 0.0
        %2342 = vmatprep.subr.mxu0 0.0
        %2343 = vmatpush2.msra.mxu0 0.0
        %2344 = vmatprep.subr.mxu0 0.0
        %2345 = vmatpush2.msra.mxu0 0.0
        %2346 = vmatprep.subr.mxu0 0.0
        %2347 = vmatpush2.msra.mxu0 0.0
        %2348 = vmatprep.subr.mxu0 0.0
        %2349 = vmatpush2.msra.mxu0 0.0
        %2350 = vmatprep.subr.mxu0 0.0
        %2351 = vmatpush2.msra.mxu0 0.0
        %2352 = vmatprep.subr.mxu0 0.0
        %2353 = vmatpush2.msra.mxu0 0.0
        %2354 = vmatprep.subr.mxu0 0.0
        %2355 = vmatpush2.msra.mxu0 0.0
        %2356 = vmatprep.subr.mxu0 0.0
        %2357 = vmatpush2.msra.mxu0 0.0
        %2358 = vmatprep.subr.mxu0 0.0
        %2359 = vmatpush2.msra.mxu0 0.0
        %2360 = vmatprep.subr.mxu0 0.0
        %2361 = vmatpush2.msra.mxu0 0.0
        %2362 = vmatprep.mubr.f32.mxu0 0.0
        %2363 = vmatmul.mubr.f32.gmra.mxu0 %v2287
        %v2364 = vpop.f32.mrf.mxu0
        %v2365 = vadd.f32 %v2268, %v2364
        %v2366 = vpop.f32.mrf.mxu0
        %v2367 = vadd.f32 %v2268, %v2366
        %2368 = vmatprep.mubr.f32.mxu0 0.0
        %2369 = vmatmul.mubr.f32.gmra.mxu0 %v2290
        %v2370 = vpop.f32.mrf.mxu0
        %v2371 = vadd.f32 %v2273, %v2370
        %v2372 = vpop.f32.mrf.mxu0
        %v2373 = vadd.f32 %v2273, %v2372
        %2374 = vmatprep.mubr.f32.mxu0 0.0
        %2375 = vmatmul.mubr.f32.gmra.mxu0 %v2293
        %v2376 = vpop.f32.mrf.mxu0
        %v2377 = vadd.f32 %v2278, %v2376
        %v2378 = vpop.f32.mrf.mxu0
        %v2379 = vadd.f32 %v2278, %v2378
        %2380 = vmatprep.mubr.f32.mxu0 0.0
        %2381 = vmatmul.mubr.f32.gmra.mxu0 %v2296
        %v2382 = vpop.f32.mrf.mxu0
        %v2383 = vadd.f32 %v2283, %v2382
        %v2384 = vpop.f32.mrf.mxu0
        %v2385 = vadd.f32 %v2283, %v2384
        %2386 = vdwg.mxu0
        %2387 = vmatprep.subr.mxu0 0.0
        %2388 = vmatpush1.msra.mxu0 0.0
        %2389 = vmatprep.subr.mxu0 0.0
        %2390 = vmatpush1.msra.mxu0 0.0
        %2391 = vmatprep.subr.mxu0 0.0
        %2392 = vmatpush1.msra.mxu0 0.0
        %2393 = vmatprep.subr.mxu0 0.0
        %2394 = vmatpush1.msra.mxu0 0.0
        %2395 = vmatprep.subr.mxu0 0.0
        %2396 = vmatpush1.msra.mxu0 0.0
        %2397 = vmatprep.subr.mxu0 0.0
        %2398 = vmatpush1.msra.mxu0 0.0
        %2399 = vmatprep.subr.mxu0 0.0
        %2400 = vmatpush1.msra.mxu0 0.0
        %2401 = vmatprep.subr.mxu0 0.0
        %2402 = vmatpush1.msra.mxu0 0.0
        %2403 = vmatprep.subr.mxu0 0.0
        %2404 = vmatpush1.msra.mxu0 0.0
        %2405 = vmatprep.subr.mxu0 0.0
        %2406 = vmatpush1.msra.mxu0 0.0
        %2407 = vmatprep.subr.mxu0 0.0
        %2408 = vmatpush1.msra.mxu0 0.0
        %2409 = vmatprep.subr.mxu0 0.0
        %2410 = vmatpush1.msra.mxu0 0.0
        %2411 = vmatprep.subr.mxu0 %v2256
        %2412 = vmatpush1.msra.mxu0 %v2255
        %2413 = vmatprep.subr.mxu0 %v2252
        %2414 = vmatpush1.msra.mxu0 %v2251
        %2415 = vmatprep.subr.mxu0 %v2248
        %2416 = vmatpush1.msra.mxu0 %v2247
        %2417 = vmatprep.subr.mxu0 %v2244
        %2418 = vmatpush1.msra.mxu0 %v2243
        %2419 = vmatprep.subr.mxu0 0.0
        %2420 = vmatpush2.msra.mxu0 0.0
        %2421 = vmatprep.subr.mxu0 0.0
        %2422 = vmatpush2.msra.mxu0 0.0
        %2423 = vmatprep.subr.mxu0 0.0
        %2424 = vmatpush2.msra.mxu0 0.0
        %2425 = vmatprep.subr.mxu0 0.0
        %2426 = vmatpush2.msra.mxu0 0.0
        %2427 = vmatprep.subr.mxu0 0.0
        %2428 = vmatpush2.msra.mxu0 0.0
        %2429 = vmatprep.subr.mxu0 0.0
        %2430 = vmatpush2.msra.mxu0 0.0
        %2431 = vmatprep.subr.mxu0 0.0
        %2432 = vmatpush2.msra.mxu0 0.0
        %2433 = vmatprep.subr.mxu0 0.0
        %2434 = vmatpush2.msra.mxu0 0.0
        %2435 = vmatprep.subr.mxu0 0.0
        %2436 = vmatpush2.msra.mxu0 0.0
        %2437 = vmatprep.subr.mxu0 0.0
        %2438 = vmatpush2.msra.mxu0 0.0
        %2439 = vmatprep.subr.mxu0 0.0
        %2440 = vmatpush2.msra.mxu0 0.0
        %2441 = vmatprep.subr.mxu0 0.0
        %2442 = vmatpush2.msra.mxu0 0.0
        %2443 = vmatprep.subr.mxu0 0.0
        %2444 = vmatpush2.msra.mxu0 0.0
        %2445 = vmatprep.subr.mxu0 0.0
        %2446 = vmatpush2.msra.mxu0 0.0
        %2447 = vmatprep.subr.mxu0 0.0
        %2448 = vmatpush2.msra.mxu0 0.0
        %2449 = vmatprep.subr.mxu0 0.0
        %2450 = vmatpush2.msra.mxu0 0.0
        %2451 = vmatprep.mubr.f32.mxu0 0.0
        %2452 = vmatmul.mubr.f32.gmra.mxu0 %v2287
        %v2453 = vpop.f32.mrf.mxu0
        %v2454 = vadd.f32 %v2268, %v2453
        %v2455 = vpop.f32.mrf.mxu0
        %v2456 = vadd.f32 %v2268, %v2455
        %2457 = vmatprep.mubr.f32.mxu0 0.0
        %2458 = vmatmul.mubr.f32.gmra.mxu0 %v2290
        %v2459 = vpop.f32.mrf.mxu0
        %v2460 = vadd.f32 %v2273, %v2459
        %v2461 = vpop.f32.mrf.mxu0
        %v2462 = vadd.f32 %v2273, %v2461
        %2463 = vmatprep.mubr.f32.mxu0 0.0
        %2464 = vmatmul.mubr.f32.gmra.mxu0 %v2293
        %v2465 = vpop.f32.mrf.mxu0
        %v2466 = vadd.f32 %v2278, %v2465
        %v2467 = vpop.f32.mrf.mxu0
        %v2468 = vadd.f32 %v2278, %v2467
        %2469 = vmatprep.mubr.f32.mxu0 0.0
        %2470 = vmatmul.mubr.f32.gmra.mxu0 %v2296
        %v2471 = vpop.f32.mrf.mxu0
        %v2472 = vadd.f32 %v2283, %v2471
        %v2473 = vpop.f32.mrf.mxu0
        %v2474 = vadd.f32 %v2283, %v2473
        %2475 = vdwg.mxu0
        %v2476 = vand.u32 2147483647, %v2365
        %vm2477 = vcmp.le.f32.partialorder %v2476, 0.7853982
        %vm2478 = vcmp.lt.s32.totalorder %v2365, 0
        %v2479 = vand.u32 %v2365, 2139095040
        %v2480 = vshrl.u32 %v2479, 23
        %v2481 = vsub.s32 %v2480, 127
        %v2482 = vand.u32 2147483647, %v2365
        %v2483 = vand.u32 %v2482, 8388607
        %v2484 = vor.u32 %v2483, 8388608
        %v2485 = vsub.s32 0, %v2484
        %v2486 = vadd.s32 %v2481, 1
        %vm2487 = vcmp.gt.s32.totalorder %v2486, 0
        %v2488 = vsel %vm2487, %v2486, 0
        %v2489 = vshrl.u32 %v2488, 5
        %v2490 = vand.u32 %v2488, 31
        %v2491 = vsub.s32 32, %v2490
        %v2492 = vshrl.u32 683565275, %v2491
        %v2493 = vshll.u32 683565275, %v2490
        %v2494 = vshrl.u32 2475754826, %v2491
        %v2495 = vor.u32 %v2493, %v2494
        %v2496 = vshll.u32 2475754826, %v2490
        %v2497 = vshrl.u32 2131351028, %v2491
        %v2498 = vor.u32 %v2496, %v2497
        %v2499 = vshll.u32 2131351028, %v2490
        %v2500 = vshrl.u32 2102212464, %v2491
        %v2501 = vor.u32 %v2499, %v2500
        %v2502 = vshll.u32 2102212464, %v2490
        %v2503 = vshrl.u32 920167782, %v2491
        %v2504 = vor.u32 %v2502, %v2503
        %v2505 = vshll.u32 920167782, %v2490
        %v2506 = vshrl.u32 1326507024, %v2491
        %v2507 = vor.u32 %v2505, %v2506
        %vm2508 = vcmp.lt.s32.totalorder %v2489, 1
        %vm2509 = vcmp.lt.s32.totalorder %v2489, 2
        %vm2510 = vcmp.lt.s32.totalorder %v2489, 3
        %vm2511 = vcmp.lt.s32.totalorder %v2489, 4
        %v2512 = vsel %vm2508, %v2492, %v2495
        %v2513 = vsel %vm2511, %v2501, 2102212464
        %v2514 = vsel %vm2510, %v2498, %v2513
        %v2515 = vsel %vm2509, %v2512, %v2514
        %v2516 = vsel %vm2508, %v2495, %v2498
        %v2517 = vsel %vm2511, %v2504, 920167782
        %v2518 = vsel %vm2510, %v2501, %v2517
        %v2519 = vsel %vm2509, %v2516, %v2518
        %v2520 = vsel %vm2508, %v2498, %v2501
        %v2521 = vsel %vm2511, %v2507, 1326507024
        %v2522 = vsel %vm2510, %v2504, %v2521
        %v2523 = vsel %vm2509, %v2520, %v2522
        %v2524 = vshll.u32 %v2484, 8
        %v2525 = vmul.u32.u64.compose %v2524, %v2523
        %v2526 = vextract.low.u32 %v2525
        %v2527 = vextract.high.u32 %v2525
        %v2528 = vmul.u32.u64.compose %v2524, %v2519
        %v2529 = vextract.low.u32 %v2528
        %v2530 = vextract.high.u32 %v2528
        %v2531 = vmul.u32 %v2524, %v2515
        %v2532 = vadd.s32 %v2527, %v2529
        %vm2533 = vc.u32 %v2527, %v2529
        %v2534 = vadd.s32 %v2530, 1
        %v2535 = vsel %vm2533, %v2534, %v2530
        %v2536 = vadd.s32 %v2531, %v2535
        %v2537 = vadd.s32 %v2536, 536870912
        %v2538 = vshrl.u32 %v2537, 30
        %v2539 = vshll.u32 %v2538, 30
        %v2540 = vsub.s32 %v2536, %v2539
        %vm2541 = vcmp.lt.s32.totalorder %v2540, 0
        %v2542 = vsub.s32 0, %v2540
        %v2543 = vsel %vm2541, %v2542, %v2540
        %v2544 = vclz %v2543
        %v2545 = vsub.s32 %v2544, 2
        %vm2546 = vcmp.gt.s32.totalorder 0, %v2545
        %v2547 = vsel %vm2546, 0, %v2545
        %v2548 = vsub.s32 32, %v2547
        %v2549 = vshll.u32 %v2540, %v2547
        %v2550 = vshrl.u32 %v2532, %v2548
        %v2551 = vor.u32 %v2549, %v2550
        %v2552 = vsub.s32 4294967266, %v2547
        %v2553 = vadd.s32 %v2552, 127
        %v2554 = vshll.u32 %v2553, 23
        %v2555 = vor.u32 4788187, %v2554
        %v2556 = vand.u32 2147483647, %v2555
        %v2558 = vcvt.s32.f32 %v2551
        %v2559 = vmul.f32 %v2558, %v2556
        %v2560 = vxor.u32 %v2559, 2147483648
        %v2561 = vsel %vm2478, %v2560, %v2559
        %v2562 = vsub.s32 4, %v2538
        %v2563 = vsel %vm2478, %v2562, %v2538
        %v2564 = vsel %vm2477, %v2365, %v2561
        %v2565 = vsel %vm2477, 0, %v2563
        %v2566 = vcosq.f32.pop %v2564
        %v2567 = vsinq.f32.pop %v2564
        %vm2568 = vweird.f32 %v2365
        %v2569 = vadd.s32 %v2565, 3
        %v2570 = vand.u32 %v2569, 3
        %vm2571 = vcmp.lt.s32.totalorder %v2570, 2
        %vm2572 = vcmp.eq.s32.totalorder %v2570, 0
        %v2573 = vxor.u32 %v2567, 2147483648
        %v2574 = vsel %vm2572, %v2566, %v2573
        %vm2575 = vcmp.eq.s32.totalorder %v2570, 2
        %v2576 = vxor.u32 %v2566, 2147483648
        %v2577 = vsel %vm2575, %v2576, %v2567
        %v2578 = vsel %vm2571, %v2574, %v2577
        %v2579 = vsel %vm2568, nan, %v2578
        %v2580 = vand.u32 2147483647, %v2367
        %vm2581 = vcmp.le.f32.partialorder %v2580, 0.7853982
        %vm2582 = vcmp.lt.s32.totalorder %v2367, 0
        %v2583 = vand.u32 %v2367, 2139095040
        %v2584 = vshrl.u32 %v2583, 23
        %v2585 = vsub.s32 %v2584, 127
        %v2586 = vand.u32 2147483647, %v2367
        %v2587 = vand.u32 %v2586, 8388607
        %v2588 = vor.u32 %v2587, 8388608
        %v2589 = vsub.s32 0, %v2588
        %v2590 = vadd.s32 %v2585, 1
        %vm2591 = vcmp.gt.s32.totalorder %v2590, 0
        %v2592 = vsel %vm2591, %v2590, 0
        %v2593 = vshrl.u32 %v2592, 5
        %v2594 = vand.u32 %v2592, 31
        %v2595 = vsub.s32 32, %v2594
        %v2596 = vshrl.u32 683565275, %v2595
        %v2597 = vshll.u32 683565275, %v2594
        %v2598 = vshrl.u32 2475754826, %v2595
        %v2599 = vor.u32 %v2597, %v2598
        %v2600 = vshll.u32 2475754826, %v2594
        %v2601 = vshrl.u32 2131351028, %v2595
        %v2602 = vor.u32 %v2600, %v2601
        %v2603 = vshll.u32 2131351028, %v2594
        %v2604 = vshrl.u32 2102212464, %v2595
        %v2605 = vor.u32 %v2603, %v2604
        %v2606 = vshll.u32 2102212464, %v2594
        %v2607 = vshrl.u32 920167782, %v2595
        %v2608 = vor.u32 %v2606, %v2607
        %v2609 = vshll.u32 920167782, %v2594
        %v2610 = vshrl.u32 1326507024, %v2595
        %v2611 = vor.u32 %v2609, %v2610
        %vm2612 = vcmp.lt.s32.totalorder %v2593, 1
        %vm2613 = vcmp.lt.s32.totalorder %v2593, 2
        %vm2614 = vcmp.lt.s32.totalorder %v2593, 3
        %vm2615 = vcmp.lt.s32.totalorder %v2593, 4
        %v2616 = vsel %vm2612, %v2596, %v2599
        %v2617 = vsel %vm2615, %v2605, 2102212464
        %v2618 = vsel %vm2614, %v2602, %v2617
        %v2619 = vsel %vm2613, %v2616, %v2618
        %v2620 = vsel %vm2612, %v2599, %v2602
        %v2621 = vsel %vm2615, %v2608, 920167782
        %v2622 = vsel %vm2614, %v2605, %v2621
        %v2623 = vsel %vm2613, %v2620, %v2622
        %v2624 = vsel %vm2612, %v2602, %v2605
        %v2625 = vsel %vm2615, %v2611, 1326507024
        %v2626 = vsel %vm2614, %v2608, %v2625
        %v2627 = vsel %vm2613, %v2624, %v2626
        %v2628 = vshll.u32 %v2588, 8
        %v2629 = vmul.u32.u64.compose %v2628, %v2627
        %v2630 = vextract.low.u32 %v2629
        %v2631 = vextract.high.u32 %v2629
        %v2632 = vmul.u32.u64.compose %v2628, %v2623
        %v2633 = vextract.low.u32 %v2632
        %v2634 = vextract.high.u32 %v2632
        %v2635 = vmul.u32 %v2628, %v2619
        %v2636 = vadd.s32 %v2631, %v2633
        %vm2637 = vc.u32 %v2631, %v2633
        %v2638 = vadd.s32 %v2634, 1
        %v2639 = vsel %vm2637, %v2638, %v2634
        %v2640 = vadd.s32 %v2635, %v2639
        %v2641 = vadd.s32 %v2640, 536870912
        %v2642 = vshrl.u32 %v2641, 30
        %v2643 = vshll.u32 %v2642, 30
        %v2644 = vsub.s32 %v2640, %v2643
        %vm2645 = vcmp.lt.s32.totalorder %v2644, 0
        %v2646 = vsub.s32 0, %v2644
        %v2647 = vsel %vm2645, %v2646, %v2644
        %v2648 = vclz %v2647
        %v2649 = vsub.s32 %v2648, 2
        %vm2650 = vcmp.gt.s32.totalorder 0, %v2649
        %v2651 = vsel %vm2650, 0, %v2649
        %v2652 = vsub.s32 32, %v2651
        %v2653 = vshll.u32 %v2644, %v2651
        %v2654 = vshrl.u32 %v2636, %v2652
        %v2655 = vor.u32 %v2653, %v2654
        %v2656 = vsub.s32 4294967266, %v2651
        %v2657 = vadd.s32 %v2656, 127
        %v2658 = vshll.u32 %v2657, 23
        %v2659 = vor.u32 4788187, %v2658
        %v2660 = vand.u32 2147483647, %v2659
        %v2662 = vcvt.s32.f32 %v2655
        %v2663 = vmul.f32 %v2662, %v2660
        %v2664 = vxor.u32 %v2663, 2147483648
        %v2665 = vsel %vm2582, %v2664, %v2663
        %v2666 = vsub.s32 4, %v2642
        %v2667 = vsel %vm2582, %v2666, %v2642
        %v2668 = vsel %vm2581, %v2367, %v2665
        %v2669 = vsel %vm2581, 0, %v2667
        %v2670 = vcosq.f32.pop %v2668
        %v2671 = vsinq.f32.pop %v2668
        %vm2672 = vweird.f32 %v2367
        %v2673 = vadd.s32 %v2669, 3
        %v2674 = vand.u32 %v2673, 3
        %vm2675 = vcmp.lt.s32.totalorder %v2674, 2
        %vm2676 = vcmp.eq.s32.totalorder %v2674, 0
        %v2677 = vxor.u32 %v2671, 2147483648
        %v2678 = vsel %vm2676, %v2670, %v2677
        %vm2679 = vcmp.eq.s32.totalorder %v2674, 2
        %v2680 = vxor.u32 %v2670, 2147483648
        %v2681 = vsel %vm2679, %v2680, %v2671
        %v2682 = vsel %vm2675, %v2678, %v2681
        %v2683 = vsel %vm2672, nan, %v2682
        %v2684 = vand.u32 2147483647, %v2454
        %vm2685 = vcmp.le.f32.partialorder %v2684, 0.7853982
        %vm2686 = vcmp.lt.s32.totalorder %v2454, 0
        %v2687 = vand.u32 %v2454, 2139095040
        %v2688 = vshrl.u32 %v2687, 23
        %v2689 = vsub.s32 %v2688, 127
        %v2690 = vand.u32 2147483647, %v2454
        %v2691 = vand.u32 %v2690, 8388607
        %v2692 = vor.u32 %v2691, 8388608
        %v2693 = vsub.s32 0, %v2692
        %v2694 = vadd.s32 %v2689, 1
        %vm2695 = vcmp.gt.s32.totalorder %v2694, 0
        %v2696 = vsel %vm2695, %v2694, 0
        %v2697 = vshrl.u32 %v2696, 5
        %v2698 = vand.u32 %v2696, 31
        %v2699 = vsub.s32 32, %v2698
        %v2700 = vshrl.u32 683565275, %v2699
        %v2701 = vshll.u32 683565275, %v2698
        %v2702 = vshrl.u32 2475754826, %v2699
        %v2703 = vor.u32 %v2701, %v2702
        %v2704 = vshll.u32 2475754826, %v2698
        %v2705 = vshrl.u32 2131351028, %v2699
        %v2706 = vor.u32 %v2704, %v2705
        %v2707 = vshll.u32 2131351028, %v2698
        %v2708 = vshrl.u32 2102212464, %v2699
        %v2709 = vor.u32 %v2707, %v2708
        %v2710 = vshll.u32 2102212464, %v2698
        %v2711 = vshrl.u32 920167782, %v2699
        %v2712 = vor.u32 %v2710, %v2711
        %v2713 = vshll.u32 920167782, %v2698
        %v2714 = vshrl.u32 1326507024, %v2699
        %v2715 = vor.u32 %v2713, %v2714
        %vm2716 = vcmp.lt.s32.totalorder %v2697, 1
        %vm2717 = vcmp.lt.s32.totalorder %v2697, 2
        %vm2718 = vcmp.lt.s32.totalorder %v2697, 3
        %vm2719 = vcmp.lt.s32.totalorder %v2697, 4
        %v2720 = vsel %vm2716, %v2700, %v2703
        %v2721 = vsel %vm2719, %v2709, 2102212464
        %v2722 = vsel %vm2718, %v2706, %v2721
        %v2723 = vsel %vm2717, %v2720, %v2722
        %v2724 = vsel %vm2716, %v2703, %v2706
        %v2725 = vsel %vm2719, %v2712, 920167782
        %v2726 = vsel %vm2718, %v2709, %v2725
        %v2727 = vsel %vm2717, %v2724, %v2726
        %v2728 = vsel %vm2716, %v2706, %v2709
        %v2729 = vsel %vm2719, %v2715, 1326507024
        %v2730 = vsel %vm2718, %v2712, %v2729
        %v2731 = vsel %vm2717, %v2728, %v2730
        %v2732 = vshll.u32 %v2692, 8
        %v2733 = vmul.u32.u64.compose %v2732, %v2731
        %v2734 = vextract.low.u32 %v2733
        %v2735 = vextract.high.u32 %v2733
        %v2736 = vmul.u32.u64.compose %v2732, %v2727
        %v2737 = vextract.low.u32 %v2736
        %v2738 = vextract.high.u32 %v2736
        %v2739 = vmul.u32 %v2732, %v2723
        %v2740 = vadd.s32 %v2735, %v2737
        %vm2741 = vc.u32 %v2735, %v2737
        %v2742 = vadd.s32 %v2738, 1
        %v2743 = vsel %vm2741, %v2742, %v2738
        %v2744 = vadd.s32 %v2739, %v2743
        %v2745 = vadd.s32 %v2744, 536870912
        %v2746 = vshrl.u32 %v2745, 30
        %v2747 = vshll.u32 %v2746, 30
        %v2748 = vsub.s32 %v2744, %v2747
        %vm2749 = vcmp.lt.s32.totalorder %v2748, 0
        %v2750 = vsub.s32 0, %v2748
        %v2751 = vsel %vm2749, %v2750, %v2748
        %v2752 = vclz %v2751
        %v2753 = vsub.s32 %v2752, 2
        %vm2754 = vcmp.gt.s32.totalorder 0, %v2753
        %v2755 = vsel %vm2754, 0, %v2753
        %v2756 = vsub.s32 32, %v2755
        %v2757 = vshll.u32 %v2748, %v2755
        %v2758 = vshrl.u32 %v2740, %v2756
        %v2759 = vor.u32 %v2757, %v2758
        %v2760 = vsub.s32 4294967266, %v2755
        %v2761 = vadd.s32 %v2760, 127
        %v2762 = vshll.u32 %v2761, 23
        %v2763 = vor.u32 4788187, %v2762
        %v2764 = vand.u32 2147483647, %v2763
        %v2766 = vcvt.s32.f32 %v2759
        %v2767 = vmul.f32 %v2766, %v2764
        %v2768 = vxor.u32 %v2767, 2147483648
        %v2769 = vsel %vm2686, %v2768, %v2767
        %v2770 = vsub.s32 4, %v2746
        %v2771 = vsel %vm2686, %v2770, %v2746
        %v2772 = vsel %vm2685, %v2454, %v2769
        %v2773 = vsel %vm2685, 0, %v2771
        %v2774 = vcosq.f32.pop %v2772
        %v2775 = vsinq.f32.pop %v2772
        %vm2776 = vweird.f32 %v2454
        %v2777 = vadd.s32 %v2773, 3
        %v2778 = vand.u32 %v2777, 3
        %vm2779 = vcmp.lt.s32.totalorder %v2778, 2
        %vm2780 = vcmp.eq.s32.totalorder %v2778, 0
        %v2781 = vxor.u32 %v2775, 2147483648
        %v2782 = vsel %vm2780, %v2774, %v2781
        %vm2783 = vcmp.eq.s32.totalorder %v2778, 2
        %v2784 = vxor.u32 %v2774, 2147483648
        %v2785 = vsel %vm2783, %v2784, %v2775
        %v2786 = vsel %vm2779, %v2782, %v2785
        %v2787 = vsel %vm2776, nan, %v2786
        %v2788 = vand.u32 2147483647, %v2456
        %vm2789 = vcmp.le.f32.partialorder %v2788, 0.7853982
        %vm2790 = vcmp.lt.s32.totalorder %v2456, 0
        %v2791 = vand.u32 %v2456, 2139095040
        %v2792 = vshrl.u32 %v2791, 23
        %v2793 = vsub.s32 %v2792, 127
        %v2794 = vand.u32 2147483647, %v2456
        %v2795 = vand.u32 %v2794, 8388607
        %v2796 = vor.u32 %v2795, 8388608
        %v2797 = vsub.s32 0, %v2796
        %v2798 = vadd.s32 %v2793, 1
        %vm2799 = vcmp.gt.s32.totalorder %v2798, 0
        %v2800 = vsel %vm2799, %v2798, 0
        %v2801 = vshrl.u32 %v2800, 5
        %v2802 = vand.u32 %v2800, 31
        %v2803 = vsub.s32 32, %v2802
        %v2804 = vshrl.u32 683565275, %v2803
        %v2805 = vshll.u32 683565275, %v2802
        %v2806 = vshrl.u32 2475754826, %v2803
        %v2807 = vor.u32 %v2805, %v2806
        %v2808 = vshll.u32 2475754826, %v2802
        %v2809 = vshrl.u32 2131351028, %v2803
        %v2810 = vor.u32 %v2808, %v2809
        %v2811 = vshll.u32 2131351028, %v2802
        %v2812 = vshrl.u32 2102212464, %v2803
        %v2813 = vor.u32 %v2811, %v2812
        %v2814 = vshll.u32 2102212464, %v2802
        %v2815 = vshrl.u32 920167782, %v2803
        %v2816 = vor.u32 %v2814, %v2815
        %v2817 = vshll.u32 920167782, %v2802
        %v2818 = vshrl.u32 1326507024, %v2803
        %v2819 = vor.u32 %v2817, %v2818
        %vm2820 = vcmp.lt.s32.totalorder %v2801, 1
        %vm2821 = vcmp.lt.s32.totalorder %v2801, 2
        %vm2822 = vcmp.lt.s32.totalorder %v2801, 3
        %vm2823 = vcmp.lt.s32.totalorder %v2801, 4
        %v2824 = vsel %vm2820, %v2804, %v2807
        %v2825 = vsel %vm2823, %v2813, 2102212464
        %v2826 = vsel %vm2822, %v2810, %v2825
        %v2827 = vsel %vm2821, %v2824, %v2826
        %v2828 = vsel %vm2820, %v2807, %v2810
        %v2829 = vsel %vm2823, %v2816, 920167782
        %v2830 = vsel %vm2822, %v2813, %v2829
        %v2831 = vsel %vm2821, %v2828, %v2830
        %v2832 = vsel %vm2820, %v2810, %v2813
        %v2833 = vsel %vm2823, %v2819, 1326507024
        %v2834 = vsel %vm2822, %v2816, %v2833
        %v2835 = vsel %vm2821, %v2832, %v2834
        %v2836 = vshll.u32 %v2796, 8
        %v2837 = vmul.u32.u64.compose %v2836, %v2835
        %v2838 = vextract.low.u32 %v2837
        %v2839 = vextract.high.u32 %v2837
        %v2840 = vmul.u32.u64.compose %v2836, %v2831
        %v2841 = vextract.low.u32 %v2840
        %v2842 = vextract.high.u32 %v2840
        %v2843 = vmul.u32 %v2836, %v2827
        %v2844 = vadd.s32 %v2839, %v2841
        %vm2845 = vc.u32 %v2839, %v2841
        %v2846 = vadd.s32 %v2842, 1
        %v2847 = vsel %vm2845, %v2846, %v2842
        %v2848 = vadd.s32 %v2843, %v2847
        %v2849 = vadd.s32 %v2848, 536870912
        %v2850 = vshrl.u32 %v2849, 30
        %v2851 = vshll.u32 %v2850, 30
        %v2852 = vsub.s32 %v2848, %v2851
        %vm2853 = vcmp.lt.s32.totalorder %v2852, 0
        %v2854 = vsub.s32 0, %v2852
        %v2855 = vsel %vm2853, %v2854, %v2852
        %v2856 = vclz %v2855
        %v2857 = vsub.s32 %v2856, 2
        %vm2858 = vcmp.gt.s32.totalorder 0, %v2857
        %v2859 = vsel %vm2858, 0, %v2857
        %v2860 = vsub.s32 32, %v2859
        %v2861 = vshll.u32 %v2852, %v2859
        %v2862 = vshrl.u32 %v2844, %v2860
        %v2863 = vor.u32 %v2861, %v2862
        %v2864 = vsub.s32 4294967266, %v2859
        %v2865 = vadd.s32 %v2864, 127
        %v2866 = vshll.u32 %v2865, 23
        %v2867 = vor.u32 4788187, %v2866
        %v2868 = vand.u32 2147483647, %v2867
        %v2870 = vcvt.s32.f32 %v2863
        %v2871 = vmul.f32 %v2870, %v2868
        %v2872 = vxor.u32 %v2871, 2147483648
        %v2873 = vsel %vm2790, %v2872, %v2871
        %v2874 = vsub.s32 4, %v2850
        %v2875 = vsel %vm2790, %v2874, %v2850
        %v2876 = vsel %vm2789, %v2456, %v2873
        %v2877 = vsel %vm2789, 0, %v2875
        %v2878 = vcosq.f32.pop %v2876
        %v2879 = vsinq.f32.pop %v2876
        %vm2880 = vweird.f32 %v2456
        %v2881 = vadd.s32 %v2877, 3
        %v2882 = vand.u32 %v2881, 3
        %vm2883 = vcmp.lt.s32.totalorder %v2882, 2
        %vm2884 = vcmp.eq.s32.totalorder %v2882, 0
        %v2885 = vxor.u32 %v2879, 2147483648
        %v2886 = vsel %vm2884, %v2878, %v2885
        %vm2887 = vcmp.eq.s32.totalorder %v2882, 2
        %v2888 = vxor.u32 %v2878, 2147483648
        %v2889 = vsel %vm2887, %v2888, %v2879
        %v2890 = vsel %vm2883, %v2886, %v2889
        %v2891 = vsel %vm2880, nan, %v2890
        %v2892 = vand.u32 2147483647, %v2371
        %vm2893 = vcmp.le.f32.partialorder %v2892, 0.7853982
        %vm2894 = vcmp.lt.s32.totalorder %v2371, 0
        %v2895 = vand.u32 %v2371, 2139095040
        %v2896 = vshrl.u32 %v2895, 23
        %v2897 = vsub.s32 %v2896, 127
        %v2898 = vand.u32 2147483647, %v2371
        %v2899 = vand.u32 %v2898, 8388607
        %v2900 = vor.u32 %v2899, 8388608
        %v2901 = vsub.s32 0, %v2900
        %v2902 = vadd.s32 %v2897, 1
        %vm2903 = vcmp.gt.s32.totalorder %v2902, 0
        %v2904 = vsel %vm2903, %v2902, 0
        %v2905 = vshrl.u32 %v2904, 5
        %v2906 = vand.u32 %v2904, 31
        %v2907 = vsub.s32 32, %v2906
        %v2908 = vshrl.u32 683565275, %v2907
        %v2909 = vshll.u32 683565275, %v2906
        %v2910 = vshrl.u32 2475754826, %v2907
        %v2911 = vor.u32 %v2909, %v2910
        %v2912 = vshll.u32 2475754826, %v2906
        %v2913 = vshrl.u32 2131351028, %v2907
        %v2914 = vor.u32 %v2912, %v2913
        %v2915 = vshll.u32 2131351028, %v2906
        %v2916 = vshrl.u32 2102212464, %v2907
        %v2917 = vor.u32 %v2915, %v2916
        %v2918 = vshll.u32 2102212464, %v2906
        %v2919 = vshrl.u32 920167782, %v2907
        %v2920 = vor.u32 %v2918, %v2919
        %v2921 = vshll.u32 920167782, %v2906
        %v2922 = vshrl.u32 1326507024, %v2907
        %v2923 = vor.u32 %v2921, %v2922
        %vm2924 = vcmp.lt.s32.totalorder %v2905, 1
        %vm2925 = vcmp.lt.s32.totalorder %v2905, 2
        %vm2926 = vcmp.lt.s32.totalorder %v2905, 3
        %vm2927 = vcmp.lt.s32.totalorder %v2905, 4
        %v2928 = vsel %vm2924, %v2908, %v2911
        %v2929 = vsel %vm2927, %v2917, 2102212464
        %v2930 = vsel %vm2926, %v2914, %v2929
        %v2931 = vsel %vm2925, %v2928, %v2930
        %v2932 = vsel %vm2924, %v2911, %v2914
        %v2933 = vsel %vm2927, %v2920, 920167782
        %v2934 = vsel %vm2926, %v2917, %v2933
        %v2935 = vsel %vm2925, %v2932, %v2934
        %v2936 = vsel %vm2924, %v2914, %v2917
        %v2937 = vsel %vm2927, %v2923, 1326507024
        %v2938 = vsel %vm2926, %v2920, %v2937
        %v2939 = vsel %vm2925, %v2936, %v2938
        %v2940 = vshll.u32 %v2900, 8
        %v2941 = vmul.u32.u64.compose %v2940, %v2939
        %v2942 = vextract.low.u32 %v2941
        %v2943 = vextract.high.u32 %v2941
        %v2944 = vmul.u32.u64.compose %v2940, %v2935
        %v2945 = vextract.low.u32 %v2944
        %v2946 = vextract.high.u32 %v2944
        %v2947 = vmul.u32 %v2940, %v2931
        %v2948 = vadd.s32 %v2943, %v2945
        %vm2949 = vc.u32 %v2943, %v2945
        %v2950 = vadd.s32 %v2946, 1
        %v2951 = vsel %vm2949, %v2950, %v2946
        %v2952 = vadd.s32 %v2947, %v2951
        %v2953 = vadd.s32 %v2952, 536870912
        %v2954 = vshrl.u32 %v2953, 30
        %v2955 = vshll.u32 %v2954, 30
        %v2956 = vsub.s32 %v2952, %v2955
        %vm2957 = vcmp.lt.s32.totalorder %v2956, 0
        %v2958 = vsub.s32 0, %v2956
        %v2959 = vsel %vm2957, %v2958, %v2956
        %v2960 = vclz %v2959
        %v2961 = vsub.s32 %v2960, 2
        %vm2962 = vcmp.gt.s32.totalorder 0, %v2961
        %v2963 = vsel %vm2962, 0, %v2961
        %v2964 = vsub.s32 32, %v2963
        %v2965 = vshll.u32 %v2956, %v2963
        %v2966 = vshrl.u32 %v2948, %v2964
        %v2967 = vor.u32 %v2965, %v2966
        %v2968 = vsub.s32 4294967266, %v2963
        %v2969 = vadd.s32 %v2968, 127
        %v2970 = vshll.u32 %v2969, 23
        %v2971 = vor.u32 4788187, %v2970
        %v2972 = vand.u32 2147483647, %v2971
        %v2974 = vcvt.s32.f32 %v2967
        %v2975 = vmul.f32 %v2974, %v2972
        %v2976 = vxor.u32 %v2975, 2147483648
        %v2977 = vsel %vm2894, %v2976, %v2975
        %v2978 = vsub.s32 4, %v2954
        %v2979 = vsel %vm2894, %v2978, %v2954
        %v2980 = vsel %vm2893, %v2371, %v2977
        %v2981 = vsel %vm2893, 0, %v2979
        %v2982 = vcosq.f32.pop %v2980
        %v2983 = vsinq.f32.pop %v2980
        %vm2984 = vweird.f32 %v2371
        %v2985 = vadd.s32 %v2981, 3
        %v2986 = vand.u32 %v2985, 3
        %vm2987 = vcmp.lt.s32.totalorder %v2986, 2
        %vm2988 = vcmp.eq.s32.totalorder %v2986, 0
        %v2989 = vxor.u32 %v2983, 2147483648
        %v2990 = vsel %vm2988, %v2982, %v2989
        %vm2991 = vcmp.eq.s32.totalorder %v2986, 2
        %v2992 = vxor.u32 %v2982, 2147483648
        %v2993 = vsel %vm2991, %v2992, %v2983
        %v2994 = vsel %vm2987, %v2990, %v2993
        %v2995 = vsel %vm2984, nan, %v2994
        %v2996 = vand.u32 2147483647, %v2373
        %vm2997 = vcmp.le.f32.partialorder %v2996, 0.7853982
        %vm2998 = vcmp.lt.s32.totalorder %v2373, 0
        %v2999 = vand.u32 %v2373, 2139095040
        %v3000 = vshrl.u32 %v2999, 23
        %v3001 = vsub.s32 %v3000, 127
        %v3002 = vand.u32 2147483647, %v2373
        %v3003 = vand.u32 %v3002, 8388607
        %v3004 = vor.u32 %v3003, 8388608
        %v3005 = vsub.s32 0, %v3004
        %v3006 = vadd.s32 %v3001, 1
        %vm3007 = vcmp.gt.s32.totalorder %v3006, 0
        %v3008 = vsel %vm3007, %v3006, 0
        %v3009 = vshrl.u32 %v3008, 5
        %v3010 = vand.u32 %v3008, 31
        %v3011 = vsub.s32 32, %v3010
        %v3012 = vshrl.u32 683565275, %v3011
        %v3013 = vshll.u32 683565275, %v3010
        %v3014 = vshrl.u32 2475754826, %v3011
        %v3015 = vor.u32 %v3013, %v3014
        %v3016 = vshll.u32 2475754826, %v3010
        %v3017 = vshrl.u32 2131351028, %v3011
        %v3018 = vor.u32 %v3016, %v3017
        %v3019 = vshll.u32 2131351028, %v3010
        %v3020 = vshrl.u32 2102212464, %v3011
        %v3021 = vor.u32 %v3019, %v3020
        %v3022 = vshll.u32 2102212464, %v3010
        %v3023 = vshrl.u32 920167782, %v3011
        %v3024 = vor.u32 %v3022, %v3023
        %v3025 = vshll.u32 920167782, %v3010
        %v3026 = vshrl.u32 1326507024, %v3011
        %v3027 = vor.u32 %v3025, %v3026
        %vm3028 = vcmp.lt.s32.totalorder %v3009, 1
        %vm3029 = vcmp.lt.s32.totalorder %v3009, 2
        %vm3030 = vcmp.lt.s32.totalorder %v3009, 3
        %vm3031 = vcmp.lt.s32.totalorder %v3009, 4
        %v3032 = vsel %vm3028, %v3012, %v3015
        %v3033 = vsel %vm3031, %v3021, 2102212464
        %v3034 = vsel %vm3030, %v3018, %v3033
        %v3035 = vsel %vm3029, %v3032, %v3034
        %v3036 = vsel %vm3028, %v3015, %v3018
        %v3037 = vsel %vm3031, %v3024, 920167782
        %v3038 = vsel %vm3030, %v3021, %v3037
        %v3039 = vsel %vm3029, %v3036, %v3038
        %v3040 = vsel %vm3028, %v3018, %v3021
        %v3041 = vsel %vm3031, %v3027, 1326507024
        %v3042 = vsel %vm3030, %v3024, %v3041
        %v3043 = vsel %vm3029, %v3040, %v3042
        %v3044 = vshll.u32 %v3004, 8
        %v3045 = vmul.u32.u64.compose %v3044, %v3043
        %v3046 = vextract.low.u32 %v3045
        %v3047 = vextract.high.u32 %v3045
        %v3048 = vmul.u32.u64.compose %v3044, %v3039
        %v3049 = vextract.low.u32 %v3048
        %v3050 = vextract.high.u32 %v3048
        %v3051 = vmul.u32 %v3044, %v3035
        %v3052 = vadd.s32 %v3047, %v3049
        %vm3053 = vc.u32 %v3047, %v3049
        %v3054 = vadd.s32 %v3050, 1
        %v3055 = vsel %vm3053, %v3054, %v3050
        %v3056 = vadd.s32 %v3051, %v3055
        %v3057 = vadd.s32 %v3056, 536870912
        %v3058 = vshrl.u32 %v3057, 30
        %v3059 = vshll.u32 %v3058, 30
        %v3060 = vsub.s32 %v3056, %v3059
        %vm3061 = vcmp.lt.s32.totalorder %v3060, 0
        %v3062 = vsub.s32 0, %v3060
        %v3063 = vsel %vm3061, %v3062, %v3060
        %v3064 = vclz %v3063
        %v3065 = vsub.s32 %v3064, 2
        %vm3066 = vcmp.gt.s32.totalorder 0, %v3065
        %v3067 = vsel %vm3066, 0, %v3065
        %v3068 = vsub.s32 32, %v3067
        %v3069 = vshll.u32 %v3060, %v3067
        %v3070 = vshrl.u32 %v3052, %v3068
        %v3071 = vor.u32 %v3069, %v3070
        %v3072 = vsub.s32 4294967266, %v3067
        %v3073 = vadd.s32 %v3072, 127
        %v3074 = vshll.u32 %v3073, 23
        %v3075 = vor.u32 4788187, %v3074
        %v3076 = vand.u32 2147483647, %v3075
        %v3078 = vcvt.s32.f32 %v3071
        %v3079 = vmul.f32 %v3078, %v3076
        %v3080 = vxor.u32 %v3079, 2147483648
        %v3081 = vsel %vm2998, %v3080, %v3079
        %v3082 = vsub.s32 4, %v3058
        %v3083 = vsel %vm2998, %v3082, %v3058
        %v3084 = vsel %vm2997, %v2373, %v3081
        %v3085 = vsel %vm2997, 0, %v3083
        %v3086 = vcosq.f32.pop %v3084
        %v3087 = vsinq.f32.pop %v3084
        %vm3088 = vweird.f32 %v2373
        %v3089 = vadd.s32 %v3085, 3
        %v3090 = vand.u32 %v3089, 3
        %vm3091 = vcmp.lt.s32.totalorder %v3090, 2
        %vm3092 = vcmp.eq.s32.totalorder %v3090, 0
        %v3093 = vxor.u32 %v3087, 2147483648
        %v3094 = vsel %vm3092, %v3086, %v3093
        %vm3095 = vcmp.eq.s32.totalorder %v3090, 2
        %v3096 = vxor.u32 %v3086, 2147483648
        %v3097 = vsel %vm3095, %v3096, %v3087
        %v3098 = vsel %vm3091, %v3094, %v3097
        %v3099 = vsel %vm3088, nan, %v3098
        %v3100 = vand.u32 2147483647, %v2460
        %vm3101 = vcmp.le.f32.partialorder %v3100, 0.7853982
        %vm3102 = vcmp.lt.s32.totalorder %v2460, 0
        %v3103 = vand.u32 %v2460, 2139095040
        %v3104 = vshrl.u32 %v3103, 23
        %v3105 = vsub.s32 %v3104, 127
        %v3106 = vand.u32 2147483647, %v2460
        %v3107 = vand.u32 %v3106, 8388607
        %v3108 = vor.u32 %v3107, 8388608
        %v3109 = vsub.s32 0, %v3108
        %v3110 = vadd.s32 %v3105, 1
        %vm3111 = vcmp.gt.s32.totalorder %v3110, 0
        %v3112 = vsel %vm3111, %v3110, 0
        %v3113 = vshrl.u32 %v3112, 5
        %v3114 = vand.u32 %v3112, 31
        %v3115 = vsub.s32 32, %v3114
        %v3116 = vshrl.u32 683565275, %v3115
        %v3117 = vshll.u32 683565275, %v3114
        %v3118 = vshrl.u32 2475754826, %v3115
        %v3119 = vor.u32 %v3117, %v3118
        %v3120 = vshll.u32 2475754826, %v3114
        %v3121 = vshrl.u32 2131351028, %v3115
        %v3122 = vor.u32 %v3120, %v3121
        %v3123 = vshll.u32 2131351028, %v3114
        %v3124 = vshrl.u32 2102212464, %v3115
        %v3125 = vor.u32 %v3123, %v3124
        %v3126 = vshll.u32 2102212464, %v3114
        %v3127 = vshrl.u32 920167782, %v3115
        %v3128 = vor.u32 %v3126, %v3127
        %v3129 = vshll.u32 920167782, %v3114
        %v3130 = vshrl.u32 1326507024, %v3115
        %v3131 = vor.u32 %v3129, %v3130
        %vm3132 = vcmp.lt.s32.totalorder %v3113, 1
        %vm3133 = vcmp.lt.s32.totalorder %v3113, 2
        %vm3134 = vcmp.lt.s32.totalorder %v3113, 3
        %vm3135 = vcmp.lt.s32.totalorder %v3113, 4
        %v3136 = vsel %vm3132, %v3116, %v3119
        %v3137 = vsel %vm3135, %v3125, 2102212464
        %v3138 = vsel %vm3134, %v3122, %v3137
        %v3139 = vsel %vm3133, %v3136, %v3138
        %v3140 = vsel %vm3132, %v3119, %v3122
        %v3141 = vsel %vm3135, %v3128, 920167782
        %v3142 = vsel %vm3134, %v3125, %v3141
        %v3143 = vsel %vm3133, %v3140, %v3142
        %v3144 = vsel %vm3132, %v3122, %v3125
        %v3145 = vsel %vm3135, %v3131, 1326507024
        %v3146 = vsel %vm3134, %v3128, %v3145
        %v3147 = vsel %vm3133, %v3144, %v3146
        %v3148 = vshll.u32 %v3108, 8
        %v3149 = vmul.u32.u64.compose %v3148, %v3147
        %v3150 = vextract.low.u32 %v3149
        %v3151 = vextract.high.u32 %v3149
        %v3152 = vmul.u32.u64.compose %v3148, %v3143
        %v3153 = vextract.low.u32 %v3152
        %v3154 = vextract.high.u32 %v3152
        %v3155 = vmul.u32 %v3148, %v3139
        %v3156 = vadd.s32 %v3151, %v3153
        %vm3157 = vc.u32 %v3151, %v3153
        %v3158 = vadd.s32 %v3154, 1
        %v3159 = vsel %vm3157, %v3158, %v3154
        %v3160 = vadd.s32 %v3155, %v3159
        %v3161 = vadd.s32 %v3160, 536870912
        %v3162 = vshrl.u32 %v3161, 30
        %v3163 = vshll.u32 %v3162, 30
        %v3164 = vsub.s32 %v3160, %v3163
        %vm3165 = vcmp.lt.s32.totalorder %v3164, 0
        %v3166 = vsub.s32 0, %v3164
        %v3167 = vsel %vm3165, %v3166, %v3164
        %v3168 = vclz %v3167
        %v3169 = vsub.s32 %v3168, 2
        %vm3170 = vcmp.gt.s32.totalorder 0, %v3169
        %v3171 = vsel %vm3170, 0, %v3169
        %v3172 = vsub.s32 32, %v3171
        %v3173 = vshll.u32 %v3164, %v3171
        %v3174 = vshrl.u32 %v3156, %v3172
        %v3175 = vor.u32 %v3173, %v3174
        %v3176 = vsub.s32 4294967266, %v3171
        %v3177 = vadd.s32 %v3176, 127
        %v3178 = vshll.u32 %v3177, 23
        %v3179 = vor.u32 4788187, %v3178
        %v3180 = vand.u32 2147483647, %v3179
        %v3182 = vcvt.s32.f32 %v3175
        %v3183 = vmul.f32 %v3182, %v3180
        %v3184 = vxor.u32 %v3183, 2147483648
        %v3185 = vsel %vm3102, %v3184, %v3183
        %v3186 = vsub.s32 4, %v3162
        %v3187 = vsel %vm3102, %v3186, %v3162
        %v3188 = vsel %vm3101, %v2460, %v3185
        %v3189 = vsel %vm3101, 0, %v3187
        %v3190 = vcosq.f32.pop %v3188
        %v3191 = vsinq.f32.pop %v3188
        %vm3192 = vweird.f32 %v2460
        %v3193 = vadd.s32 %v3189, 3
        %v3194 = vand.u32 %v3193, 3
        %vm3195 = vcmp.lt.s32.totalorder %v3194, 2
        %vm3196 = vcmp.eq.s32.totalorder %v3194, 0
        %v3197 = vxor.u32 %v3191, 2147483648
        %v3198 = vsel %vm3196, %v3190, %v3197
        %vm3199 = vcmp.eq.s32.totalorder %v3194, 2
        %v3200 = vxor.u32 %v3190, 2147483648
        %v3201 = vsel %vm3199, %v3200, %v3191
        %v3202 = vsel %vm3195, %v3198, %v3201
        %v3203 = vsel %vm3192, nan, %v3202
        %v3204 = vand.u32 2147483647, %v2462
        %vm3205 = vcmp.le.f32.partialorder %v3204, 0.7853982
        %vm3206 = vcmp.lt.s32.totalorder %v2462, 0
        %v3207 = vand.u32 %v2462, 2139095040
        %v3208 = vshrl.u32 %v3207, 23
        %v3209 = vsub.s32 %v3208, 127
        %v3210 = vand.u32 2147483647, %v2462
        %v3211 = vand.u32 %v3210, 8388607
        %v3212 = vor.u32 %v3211, 8388608
        %v3213 = vsub.s32 0, %v3212
        %v3214 = vadd.s32 %v3209, 1
        %vm3215 = vcmp.gt.s32.totalorder %v3214, 0
        %v3216 = vsel %vm3215, %v3214, 0
        %v3217 = vshrl.u32 %v3216, 5
        %v3218 = vand.u32 %v3216, 31
        %v3219 = vsub.s32 32, %v3218
        %v3220 = vshrl.u32 683565275, %v3219
        %v3221 = vshll.u32 683565275, %v3218
        %v3222 = vshrl.u32 2475754826, %v3219
        %v3223 = vor.u32 %v3221, %v3222
        %v3224 = vshll.u32 2475754826, %v3218
        %v3225 = vshrl.u32 2131351028, %v3219
        %v3226 = vor.u32 %v3224, %v3225
        %v3227 = vshll.u32 2131351028, %v3218
        %v3228 = vshrl.u32 2102212464, %v3219
        %v3229 = vor.u32 %v3227, %v3228
        %v3230 = vshll.u32 2102212464, %v3218
        %v3231 = vshrl.u32 920167782, %v3219
        %v3232 = vor.u32 %v3230, %v3231
        %v3233 = vshll.u32 920167782, %v3218
        %v3234 = vshrl.u32 1326507024, %v3219
        %v3235 = vor.u32 %v3233, %v3234
        %vm3236 = vcmp.lt.s32.totalorder %v3217, 1
        %vm3237 = vcmp.lt.s32.totalorder %v3217, 2
        %vm3238 = vcmp.lt.s32.totalorder %v3217, 3
        %vm3239 = vcmp.lt.s32.totalorder %v3217, 4
        %v3240 = vsel %vm3236, %v3220, %v3223
        %v3241 = vsel %vm3239, %v3229, 2102212464
        %v3242 = vsel %vm3238, %v3226, %v3241
        %v3243 = vsel %vm3237, %v3240, %v3242
        %v3244 = vsel %vm3236, %v3223, %v3226
        %v3245 = vsel %vm3239, %v3232, 920167782
        %v3246 = vsel %vm3238, %v3229, %v3245
        %v3247 = vsel %vm3237, %v3244, %v3246
        %v3248 = vsel %vm3236, %v3226, %v3229
        %v3249 = vsel %vm3239, %v3235, 1326507024
        %v3250 = vsel %vm3238, %v3232, %v3249
        %v3251 = vsel %vm3237, %v3248, %v3250
        %v3252 = vshll.u32 %v3212, 8
        %v3253 = vmul.u32.u64.compose %v3252, %v3251
        %v3254 = vextract.low.u32 %v3253
        %v3255 = vextract.high.u32 %v3253
        %v3256 = vmul.u32.u64.compose %v3252, %v3247
        %v3257 = vextract.low.u32 %v3256
        %v3258 = vextract.high.u32 %v3256
        %v3259 = vmul.u32 %v3252, %v3243
        %v3260 = vadd.s32 %v3255, %v3257
        %vm3261 = vc.u32 %v3255, %v3257
        %v3262 = vadd.s32 %v3258, 1
        %v3263 = vsel %vm3261, %v3262, %v3258
        %v3264 = vadd.s32 %v3259, %v3263
        %v3265 = vadd.s32 %v3264, 536870912
        %v3266 = vshrl.u32 %v3265, 30
        %v3267 = vshll.u32 %v3266, 30
        %v3268 = vsub.s32 %v3264, %v3267
        %vm3269 = vcmp.lt.s32.totalorder %v3268, 0
        %v3270 = vsub.s32 0, %v3268
        %v3271 = vsel %vm3269, %v3270, %v3268
        %v3272 = vclz %v3271
        %v3273 = vsub.s32 %v3272, 2
        %vm3274 = vcmp.gt.s32.totalorder 0, %v3273
        %v3275 = vsel %vm3274, 0, %v3273
        %v3276 = vsub.s32 32, %v3275
        %v3277 = vshll.u32 %v3268, %v3275
        %v3278 = vshrl.u32 %v3260, %v3276
        %v3279 = vor.u32 %v3277, %v3278
        %v3280 = vsub.s32 4294967266, %v3275
        %v3281 = vadd.s32 %v3280, 127
        %v3282 = vshll.u32 %v3281, 23
        %v3283 = vor.u32 4788187, %v3282
        %v3284 = vand.u32 2147483647, %v3283
        %v3286 = vcvt.s32.f32 %v3279
        %v3287 = vmul.f32 %v3286, %v3284
        %v3288 = vxor.u32 %v3287, 2147483648
        %v3289 = vsel %vm3206, %v3288, %v3287
        %v3290 = vsub.s32 4, %v3266
        %v3291 = vsel %vm3206, %v3290, %v3266
        %v3292 = vsel %vm3205, %v2462, %v3289
        %v3293 = vsel %vm3205, 0, %v3291
        %v3294 = vcosq.f32.pop %v3292
        %v3295 = vsinq.f32.pop %v3292
        %vm3296 = vweird.f32 %v2462
        %v3297 = vadd.s32 %v3293, 3
        %v3298 = vand.u32 %v3297, 3
        %vm3299 = vcmp.lt.s32.totalorder %v3298, 2
        %vm3300 = vcmp.eq.s32.totalorder %v3298, 0
        %v3301 = vxor.u32 %v3295, 2147483648
        %v3302 = vsel %vm3300, %v3294, %v3301
        %vm3303 = vcmp.eq.s32.totalorder %v3298, 2
        %v3304 = vxor.u32 %v3294, 2147483648
        %v3305 = vsel %vm3303, %v3304, %v3295
        %v3306 = vsel %vm3299, %v3302, %v3305
        %v3307 = vsel %vm3296, nan, %v3306
        %v3308 = vand.u32 2147483647, %v2377
        %vm3309 = vcmp.le.f32.partialorder %v3308, 0.7853982
        %vm3310 = vcmp.lt.s32.totalorder %v2377, 0
        %v3311 = vand.u32 %v2377, 2139095040
        %v3312 = vshrl.u32 %v3311, 23
        %v3313 = vsub.s32 %v3312, 127
        %v3314 = vand.u32 2147483647, %v2377
        %v3315 = vand.u32 %v3314, 8388607
        %v3316 = vor.u32 %v3315, 8388608
        %v3317 = vsub.s32 0, %v3316
        %v3318 = vadd.s32 %v3313, 1
        %vm3319 = vcmp.gt.s32.totalorder %v3318, 0
        %v3320 = vsel %vm3319, %v3318, 0
        %v3321 = vshrl.u32 %v3320, 5
        %v3322 = vand.u32 %v3320, 31
        %v3323 = vsub.s32 32, %v3322
        %v3324 = vshrl.u32 683565275, %v3323
        %v3325 = vshll.u32 683565275, %v3322
        %v3326 = vshrl.u32 2475754826, %v3323
        %v3327 = vor.u32 %v3325, %v3326
        %v3328 = vshll.u32 2475754826, %v3322
        %v3329 = vshrl.u32 2131351028, %v3323
        %v3330 = vor.u32 %v3328, %v3329
        %v3331 = vshll.u32 2131351028, %v3322
        %v3332 = vshrl.u32 2102212464, %v3323
        %v3333 = vor.u32 %v3331, %v3332
        %v3334 = vshll.u32 2102212464, %v3322
        %v3335 = vshrl.u32 920167782, %v3323
        %v3336 = vor.u32 %v3334, %v3335
        %v3337 = vshll.u32 920167782, %v3322
        %v3338 = vshrl.u32 1326507024, %v3323
        %v3339 = vor.u32 %v3337, %v3338
        %vm3340 = vcmp.lt.s32.totalorder %v3321, 1
        %vm3341 = vcmp.lt.s32.totalorder %v3321, 2
        %vm3342 = vcmp.lt.s32.totalorder %v3321, 3
        %vm3343 = vcmp.lt.s32.totalorder %v3321, 4
        %v3344 = vsel %vm3340, %v3324, %v3327
        %v3345 = vsel %vm3343, %v3333, 2102212464
        %v3346 = vsel %vm3342, %v3330, %v3345
        %v3347 = vsel %vm3341, %v3344, %v3346
        %v3348 = vsel %vm3340, %v3327, %v3330
        %v3349 = vsel %vm3343, %v3336, 920167782
        %v3350 = vsel %vm3342, %v3333, %v3349
        %v3351 = vsel %vm3341, %v3348, %v3350
        %v3352 = vsel %vm3340, %v3330, %v3333
        %v3353 = vsel %vm3343, %v3339, 1326507024
        %v3354 = vsel %vm3342, %v3336, %v3353
        %v3355 = vsel %vm3341, %v3352, %v3354
        %v3356 = vshll.u32 %v3316, 8
        %v3357 = vmul.u32.u64.compose %v3356, %v3355
        %v3358 = vextract.low.u32 %v3357
        %v3359 = vextract.high.u32 %v3357
        %v3360 = vmul.u32.u64.compose %v3356, %v3351
        %v3361 = vextract.low.u32 %v3360
        %v3362 = vextract.high.u32 %v3360
        %v3363 = vmul.u32 %v3356, %v3347
        %v3364 = vadd.s32 %v3359, %v3361
        %vm3365 = vc.u32 %v3359, %v3361
        %v3366 = vadd.s32 %v3362, 1
        %v3367 = vsel %vm3365, %v3366, %v3362
        %v3368 = vadd.s32 %v3363, %v3367
        %v3369 = vadd.s32 %v3368, 536870912
        %v3370 = vshrl.u32 %v3369, 30
        %v3371 = vshll.u32 %v3370, 30
        %v3372 = vsub.s32 %v3368, %v3371
        %vm3373 = vcmp.lt.s32.totalorder %v3372, 0
        %v3374 = vsub.s32 0, %v3372
        %v3375 = vsel %vm3373, %v3374, %v3372
        %v3376 = vclz %v3375
        %v3377 = vsub.s32 %v3376, 2
        %vm3378 = vcmp.gt.s32.totalorder 0, %v3377
        %v3379 = vsel %vm3378, 0, %v3377
        %v3380 = vsub.s32 32, %v3379
        %v3381 = vshll.u32 %v3372, %v3379
        %v3382 = vshrl.u32 %v3364, %v3380
        %v3383 = vor.u32 %v3381, %v3382
        %v3384 = vsub.s32 4294967266, %v3379
        %v3385 = vadd.s32 %v3384, 127
        %v3386 = vshll.u32 %v3385, 23
        %v3387 = vor.u32 4788187, %v3386
        %v3388 = vand.u32 2147483647, %v3387
        %v3390 = vcvt.s32.f32 %v3383
        %v3391 = vmul.f32 %v3390, %v3388
        %v3392 = vxor.u32 %v3391, 2147483648
        %v3393 = vsel %vm3310, %v3392, %v3391
        %v3394 = vsub.s32 4, %v3370
        %v3395 = vsel %vm3310, %v3394, %v3370
        %v3396 = vsel %vm3309, %v2377, %v3393
        %v3397 = vsel %vm3309, 0, %v3395
        %v3398 = vcosq.f32.pop %v3396
        %v3399 = vsinq.f32.pop %v3396
        %vm3400 = vweird.f32 %v2377
        %v3401 = vadd.s32 %v3397, 3
        %v3402 = vand.u32 %v3401, 3
        %vm3403 = vcmp.lt.s32.totalorder %v3402, 2
        %vm3404 = vcmp.eq.s32.totalorder %v3402, 0
        %v3405 = vxor.u32 %v3399, 2147483648
        %v3406 = vsel %vm3404, %v3398, %v3405
        %vm3407 = vcmp.eq.s32.totalorder %v3402, 2
        %v3408 = vxor.u32 %v3398, 2147483648
        %v3409 = vsel %vm3407, %v3408, %v3399
        %v3410 = vsel %vm3403, %v3406, %v3409
        %v3411 = vsel %vm3400, nan, %v3410
        %v3412 = vand.u32 2147483647, %v2379
        %vm3413 = vcmp.le.f32.partialorder %v3412, 0.7853982
        %vm3414 = vcmp.lt.s32.totalorder %v2379, 0
        %v3415 = vand.u32 %v2379, 2139095040
        %v3416 = vshrl.u32 %v3415, 23
        %v3417 = vsub.s32 %v3416, 127
        %v3418 = vand.u32 2147483647, %v2379
        %v3419 = vand.u32 %v3418, 8388607
        %v3420 = vor.u32 %v3419, 8388608
        %v3421 = vsub.s32 0, %v3420
        %v3422 = vadd.s32 %v3417, 1
        %vm3423 = vcmp.gt.s32.totalorder %v3422, 0
        %v3424 = vsel %vm3423, %v3422, 0
        %v3425 = vshrl.u32 %v3424, 5
        %v3426 = vand.u32 %v3424, 31
        %v3427 = vsub.s32 32, %v3426
        %v3428 = vshrl.u32 683565275, %v3427
        %v3429 = vshll.u32 683565275, %v3426
        %v3430 = vshrl.u32 2475754826, %v3427
        %v3431 = vor.u32 %v3429, %v3430
        %v3432 = vshll.u32 2475754826, %v3426
        %v3433 = vshrl.u32 2131351028, %v3427
        %v3434 = vor.u32 %v3432, %v3433
        %v3435 = vshll.u32 2131351028, %v3426
        %v3436 = vshrl.u32 2102212464, %v3427
        %v3437 = vor.u32 %v3435, %v3436
        %v3438 = vshll.u32 2102212464, %v3426
        %v3439 = vshrl.u32 920167782, %v3427
        %v3440 = vor.u32 %v3438, %v3439
        %v3441 = vshll.u32 920167782, %v3426
        %v3442 = vshrl.u32 1326507024, %v3427
        %v3443 = vor.u32 %v3441, %v3442
        %vm3444 = vcmp.lt.s32.totalorder %v3425, 1
        %vm3445 = vcmp.lt.s32.totalorder %v3425, 2
        %vm3446 = vcmp.lt.s32.totalorder %v3425, 3
        %vm3447 = vcmp.lt.s32.totalorder %v3425, 4
        %v3448 = vsel %vm3444, %v3428, %v3431
        %v3449 = vsel %vm3447, %v3437, 2102212464
        %v3450 = vsel %vm3446, %v3434, %v3449
        %v3451 = vsel %vm3445, %v3448, %v3450
        %v3452 = vsel %vm3444, %v3431, %v3434
        %v3453 = vsel %vm3447, %v3440, 920167782
        %v3454 = vsel %vm3446, %v3437, %v3453
        %v3455 = vsel %vm3445, %v3452, %v3454
        %v3456 = vsel %vm3444, %v3434, %v3437
        %v3457 = vsel %vm3447, %v3443, 1326507024
        %v3458 = vsel %vm3446, %v3440, %v3457
        %v3459 = vsel %vm3445, %v3456, %v3458
        %v3460 = vshll.u32 %v3420, 8
        %v3461 = vmul.u32.u64.compose %v3460, %v3459
        %v3462 = vextract.low.u32 %v3461
        %v3463 = vextract.high.u32 %v3461
        %v3464 = vmul.u32.u64.compose %v3460, %v3455
        %v3465 = vextract.low.u32 %v3464
        %v3466 = vextract.high.u32 %v3464
        %v3467 = vmul.u32 %v3460, %v3451
        %v3468 = vadd.s32 %v3463, %v3465
        %vm3469 = vc.u32 %v3463, %v3465
        %v3470 = vadd.s32 %v3466, 1
        %v3471 = vsel %vm3469, %v3470, %v3466
        %v3472 = vadd.s32 %v3467, %v3471
        %v3473 = vadd.s32 %v3472, 536870912
        %v3474 = vshrl.u32 %v3473, 30
        %v3475 = vshll.u32 %v3474, 30
        %v3476 = vsub.s32 %v3472, %v3475
        %vm3477 = vcmp.lt.s32.totalorder %v3476, 0
        %v3478 = vsub.s32 0, %v3476
        %v3479 = vsel %vm3477, %v3478, %v3476
        %v3480 = vclz %v3479
        %v3481 = vsub.s32 %v3480, 2
        %vm3482 = vcmp.gt.s32.totalorder 0, %v3481
        %v3483 = vsel %vm3482, 0, %v3481
        %v3484 = vsub.s32 32, %v3483
        %v3485 = vshll.u32 %v3476, %v3483
        %v3486 = vshrl.u32 %v3468, %v3484
        %v3487 = vor.u32 %v3485, %v3486
        %v3488 = vsub.s32 4294967266, %v3483
        %v3489 = vadd.s32 %v3488, 127
        %v3490 = vshll.u32 %v3489, 23
        %v3491 = vor.u32 4788187, %v3490
        %v3492 = vand.u32 2147483647, %v3491
        %v3494 = vcvt.s32.f32 %v3487
        %v3495 = vmul.f32 %v3494, %v3492
        %v3496 = vxor.u32 %v3495, 2147483648
        %v3497 = vsel %vm3414, %v3496, %v3495
        %v3498 = vsub.s32 4, %v3474
        %v3499 = vsel %vm3414, %v3498, %v3474
        %v3500 = vsel %vm3413, %v2379, %v3497
        %v3501 = vsel %vm3413, 0, %v3499
        %v3502 = vcosq.f32.pop %v3500
        %v3503 = vsinq.f32.pop %v3500
        %vm3504 = vweird.f32 %v2379
        %v3505 = vadd.s32 %v3501, 3
        %v3506 = vand.u32 %v3505, 3
        %vm3507 = vcmp.lt.s32.totalorder %v3506, 2
        %vm3508 = vcmp.eq.s32.totalorder %v3506, 0
        %v3509 = vxor.u32 %v3503, 2147483648
        %v3510 = vsel %vm3508, %v3502, %v3509
        %vm3511 = vcmp.eq.s32.totalorder %v3506, 2
        %v3512 = vxor.u32 %v3502, 2147483648
        %v3513 = vsel %vm3511, %v3512, %v3503
        %v3514 = vsel %vm3507, %v3510, %v3513
        %v3515 = vsel %vm3504, nan, %v3514
        %v3516 = vand.u32 2147483647, %v2466
        %vm3517 = vcmp.le.f32.partialorder %v3516, 0.7853982
        %vm3518 = vcmp.lt.s32.totalorder %v2466, 0
        %v3519 = vand.u32 %v2466, 2139095040
        %v3520 = vshrl.u32 %v3519, 23
        %v3521 = vsub.s32 %v3520, 127
        %v3522 = vand.u32 2147483647, %v2466
        %v3523 = vand.u32 %v3522, 8388607
        %v3524 = vor.u32 %v3523, 8388608
        %v3525 = vsub.s32 0, %v3524
        %v3526 = vadd.s32 %v3521, 1
        %vm3527 = vcmp.gt.s32.totalorder %v3526, 0
        %v3528 = vsel %vm3527, %v3526, 0
        %v3529 = vshrl.u32 %v3528, 5
        %v3530 = vand.u32 %v3528, 31
        %v3531 = vsub.s32 32, %v3530
        %v3532 = vshrl.u32 683565275, %v3531
        %v3533 = vshll.u32 683565275, %v3530
        %v3534 = vshrl.u32 2475754826, %v3531
        %v3535 = vor.u32 %v3533, %v3534
        %v3536 = vshll.u32 2475754826, %v3530
        %v3537 = vshrl.u32 2131351028, %v3531
        %v3538 = vor.u32 %v3536, %v3537
        %v3539 = vshll.u32 2131351028, %v3530
        %v3540 = vshrl.u32 2102212464, %v3531
        %v3541 = vor.u32 %v3539, %v3540
        %v3542 = vshll.u32 2102212464, %v3530
        %v3543 = vshrl.u32 920167782, %v3531
        %v3544 = vor.u32 %v3542, %v3543
        %v3545 = vshll.u32 920167782, %v3530
        %v3546 = vshrl.u32 1326507024, %v3531
        %v3547 = vor.u32 %v3545, %v3546
        %vm3548 = vcmp.lt.s32.totalorder %v3529, 1
        %vm3549 = vcmp.lt.s32.totalorder %v3529, 2
        %vm3550 = vcmp.lt.s32.totalorder %v3529, 3
        %vm3551 = vcmp.lt.s32.totalorder %v3529, 4
        %v3552 = vsel %vm3548, %v3532, %v3535
        %v3553 = vsel %vm3551, %v3541, 2102212464
        %v3554 = vsel %vm3550, %v3538, %v3553
        %v3555 = vsel %vm3549, %v3552, %v3554
        %v3556 = vsel %vm3548, %v3535, %v3538
        %v3557 = vsel %vm3551, %v3544, 920167782
        %v3558 = vsel %vm3550, %v3541, %v3557
        %v3559 = vsel %vm3549, %v3556, %v3558
        %v3560 = vsel %vm3548, %v3538, %v3541
        %v3561 = vsel %vm3551, %v3547, 1326507024
        %v3562 = vsel %vm3550, %v3544, %v3561
        %v3563 = vsel %vm3549, %v3560, %v3562
        %v3564 = vshll.u32 %v3524, 8
        %v3565 = vmul.u32.u64.compose %v3564, %v3563
        %v3566 = vextract.low.u32 %v3565
        %v3567 = vextract.high.u32 %v3565
        %v3568 = vmul.u32.u64.compose %v3564, %v3559
        %v3569 = vextract.low.u32 %v3568
        %v3570 = vextract.high.u32 %v3568
        %v3571 = vmul.u32 %v3564, %v3555
        %v3572 = vadd.s32 %v3567, %v3569
        %vm3573 = vc.u32 %v3567, %v3569
        %v3574 = vadd.s32 %v3570, 1
        %v3575 = vsel %vm3573, %v3574, %v3570
        %v3576 = vadd.s32 %v3571, %v3575
        %v3577 = vadd.s32 %v3576, 536870912
        %v3578 = vshrl.u32 %v3577, 30
        %v3579 = vshll.u32 %v3578, 30
        %v3580 = vsub.s32 %v3576, %v3579
        %vm3581 = vcmp.lt.s32.totalorder %v3580, 0
        %v3582 = vsub.s32 0, %v3580
        %v3583 = vsel %vm3581, %v3582, %v3580
        %v3584 = vclz %v3583
        %v3585 = vsub.s32 %v3584, 2
        %vm3586 = vcmp.gt.s32.totalorder 0, %v3585
        %v3587 = vsel %vm3586, 0, %v3585
        %v3588 = vsub.s32 32, %v3587
        %v3589 = vshll.u32 %v3580, %v3587
        %v3590 = vshrl.u32 %v3572, %v3588
        %v3591 = vor.u32 %v3589, %v3590
        %v3592 = vsub.s32 4294967266, %v3587
        %v3593 = vadd.s32 %v3592, 127
        %v3594 = vshll.u32 %v3593, 23
        %v3595 = vor.u32 4788187, %v3594
        %v3596 = vand.u32 2147483647, %v3595
        %v3598 = vcvt.s32.f32 %v3591
        %v3599 = vmul.f32 %v3598, %v3596
        %v3600 = vxor.u32 %v3599, 2147483648
        %v3601 = vsel %vm3518, %v3600, %v3599
        %v3602 = vsub.s32 4, %v3578
        %v3603 = vsel %vm3518, %v3602, %v3578
        %v3604 = vsel %vm3517, %v2466, %v3601
        %v3605 = vsel %vm3517, 0, %v3603
        %v3606 = vcosq.f32.pop %v3604
        %v3607 = vsinq.f32.pop %v3604
        %vm3608 = vweird.f32 %v2466
        %v3609 = vadd.s32 %v3605, 3
        %v3610 = vand.u32 %v3609, 3
        %vm3611 = vcmp.lt.s32.totalorder %v3610, 2
        %vm3612 = vcmp.eq.s32.totalorder %v3610, 0
        %v3613 = vxor.u32 %v3607, 2147483648
        %v3614 = vsel %vm3612, %v3606, %v3613
        %vm3615 = vcmp.eq.s32.totalorder %v3610, 2
        %v3616 = vxor.u32 %v3606, 2147483648
        %v3617 = vsel %vm3615, %v3616, %v3607
        %v3618 = vsel %vm3611, %v3614, %v3617
        %v3619 = vsel %vm3608, nan, %v3618
        %v3620 = vand.u32 2147483647, %v2468
        %vm3621 = vcmp.le.f32.partialorder %v3620, 0.7853982
        %vm3622 = vcmp.lt.s32.totalorder %v2468, 0
        %v3623 = vand.u32 %v2468, 2139095040
        %v3624 = vshrl.u32 %v3623, 23
        %v3625 = vsub.s32 %v3624, 127
        %v3626 = vand.u32 2147483647, %v2468
        %v3627 = vand.u32 %v3626, 8388607
        %v3628 = vor.u32 %v3627, 8388608
        %v3629 = vsub.s32 0, %v3628
        %v3630 = vadd.s32 %v3625, 1
        %vm3631 = vcmp.gt.s32.totalorder %v3630, 0
        %v3632 = vsel %vm3631, %v3630, 0
        %v3633 = vshrl.u32 %v3632, 5
        %v3634 = vand.u32 %v3632, 31
        %v3635 = vsub.s32 32, %v3634
        %v3636 = vshrl.u32 683565275, %v3635
        %v3637 = vshll.u32 683565275, %v3634
        %v3638 = vshrl.u32 2475754826, %v3635
        %v3639 = vor.u32 %v3637, %v3638
        %v3640 = vshll.u32 2475754826, %v3634
        %v3641 = vshrl.u32 2131351028, %v3635
        %v3642 = vor.u32 %v3640, %v3641
        %v3643 = vshll.u32 2131351028, %v3634
        %v3644 = vshrl.u32 2102212464, %v3635
        %v3645 = vor.u32 %v3643, %v3644
        %v3646 = vshll.u32 2102212464, %v3634
        %v3647 = vshrl.u32 920167782, %v3635
        %v3648 = vor.u32 %v3646, %v3647
        %v3649 = vshll.u32 920167782, %v3634
        %v3650 = vshrl.u32 1326507024, %v3635
        %v3651 = vor.u32 %v3649, %v3650
        %vm3652 = vcmp.lt.s32.totalorder %v3633, 1
        %vm3653 = vcmp.lt.s32.totalorder %v3633, 2
        %vm3654 = vcmp.lt.s32.totalorder %v3633, 3
        %vm3655 = vcmp.lt.s32.totalorder %v3633, 4
        %v3656 = vsel %vm3652, %v3636, %v3639
        %v3657 = vsel %vm3655, %v3645, 2102212464
        %v3658 = vsel %vm3654, %v3642, %v3657
        %v3659 = vsel %vm3653, %v3656, %v3658
        %v3660 = vsel %vm3652, %v3639, %v3642
        %v3661 = vsel %vm3655, %v3648, 920167782
        %v3662 = vsel %vm3654, %v3645, %v3661
        %v3663 = vsel %vm3653, %v3660, %v3662
        %v3664 = vsel %vm3652, %v3642, %v3645
        %v3665 = vsel %vm3655, %v3651, 1326507024
        %v3666 = vsel %vm3654, %v3648, %v3665
        %v3667 = vsel %vm3653, %v3664, %v3666
        %v3668 = vshll.u32 %v3628, 8
        %v3669 = vmul.u32.u64.compose %v3668, %v3667
        %v3670 = vextract.low.u32 %v3669
        %v3671 = vextract.high.u32 %v3669
        %v3672 = vmul.u32.u64.compose %v3668, %v3663
        %v3673 = vextract.low.u32 %v3672
        %v3674 = vextract.high.u32 %v3672
        %v3675 = vmul.u32 %v3668, %v3659
        %v3676 = vadd.s32 %v3671, %v3673
        %vm3677 = vc.u32 %v3671, %v3673
        %v3678 = vadd.s32 %v3674, 1
        %v3679 = vsel %vm3677, %v3678, %v3674
        %v3680 = vadd.s32 %v3675, %v3679
        %v3681 = vadd.s32 %v3680, 536870912
        %v3682 = vshrl.u32 %v3681, 30
        %v3683 = vshll.u32 %v3682, 30
        %v3684 = vsub.s32 %v3680, %v3683
        %vm3685 = vcmp.lt.s32.totalorder %v3684, 0
        %v3686 = vsub.s32 0, %v3684
        %v3687 = vsel %vm3685, %v3686, %v3684
        %v3688 = vclz %v3687
        %v3689 = vsub.s32 %v3688, 2
        %vm3690 = vcmp.gt.s32.totalorder 0, %v3689
        %v3691 = vsel %vm3690, 0, %v3689
        %v3692 = vsub.s32 32, %v3691
        %v3693 = vshll.u32 %v3684, %v3691
        %v3694 = vshrl.u32 %v3676, %v3692
        %v3695 = vor.u32 %v3693, %v3694
        %v3696 = vsub.s32 4294967266, %v3691
        %v3697 = vadd.s32 %v3696, 127
        %v3698 = vshll.u32 %v3697, 23
        %v3699 = vor.u32 4788187, %v3698
        %v3700 = vand.u32 2147483647, %v3699
        %v3702 = vcvt.s32.f32 %v3695
        %v3703 = vmul.f32 %v3702, %v3700
        %v3704 = vxor.u32 %v3703, 2147483648
        %v3705 = vsel %vm3622, %v3704, %v3703
        %v3706 = vsub.s32 4, %v3682
        %v3707 = vsel %vm3622, %v3706, %v3682
        %v3708 = vsel %vm3621, %v2468, %v3705
        %v3709 = vsel %vm3621, 0, %v3707
        %v3710 = vcosq.f32.pop %v3708
        %v3711 = vsinq.f32.pop %v3708
        %vm3712 = vweird.f32 %v2468
        %v3713 = vadd.s32 %v3709, 3
        %v3714 = vand.u32 %v3713, 3
        %vm3715 = vcmp.lt.s32.totalorder %v3714, 2
        %vm3716 = vcmp.eq.s32.totalorder %v3714, 0
        %v3717 = vxor.u32 %v3711, 2147483648
        %v3718 = vsel %vm3716, %v3710, %v3717
        %vm3719 = vcmp.eq.s32.totalorder %v3714, 2
        %v3720 = vxor.u32 %v3710, 2147483648
        %v3721 = vsel %vm3719, %v3720, %v3711
        %v3722 = vsel %vm3715, %v3718, %v3721
        %v3723 = vsel %vm3712, nan, %v3722
        %v3724 = vand.u32 2147483647, %v2383
        %vm3725 = vcmp.le.f32.partialorder %v3724, 0.7853982
        %vm3726 = vcmp.lt.s32.totalorder %v2383, 0
        %v3727 = vand.u32 %v2383, 2139095040
        %v3728 = vshrl.u32 %v3727, 23
        %v3729 = vsub.s32 %v3728, 127
        %v3730 = vand.u32 2147483647, %v2383
        %v3731 = vand.u32 %v3730, 8388607
        %v3732 = vor.u32 %v3731, 8388608
        %v3733 = vsub.s32 0, %v3732
        %v3734 = vadd.s32 %v3729, 1
        %vm3735 = vcmp.gt.s32.totalorder %v3734, 0
        %v3736 = vsel %vm3735, %v3734, 0
        %v3737 = vshrl.u32 %v3736, 5
        %v3738 = vand.u32 %v3736, 31
        %v3739 = vsub.s32 32, %v3738
        %v3740 = vshrl.u32 683565275, %v3739
        %v3741 = vshll.u32 683565275, %v3738
        %v3742 = vshrl.u32 2475754826, %v3739
        %v3743 = vor.u32 %v3741, %v3742
        %v3744 = vshll.u32 2475754826, %v3738
        %v3745 = vshrl.u32 2131351028, %v3739
        %v3746 = vor.u32 %v3744, %v3745
        %v3747 = vshll.u32 2131351028, %v3738
        %v3748 = vshrl.u32 2102212464, %v3739
        %v3749 = vor.u32 %v3747, %v3748
        %v3750 = vshll.u32 2102212464, %v3738
        %v3751 = vshrl.u32 920167782, %v3739
        %v3752 = vor.u32 %v3750, %v3751
        %v3753 = vshll.u32 920167782, %v3738
        %v3754 = vshrl.u32 1326507024, %v3739
        %v3755 = vor.u32 %v3753, %v3754
        %vm3756 = vcmp.lt.s32.totalorder %v3737, 1
        %vm3757 = vcmp.lt.s32.totalorder %v3737, 2
        %vm3758 = vcmp.lt.s32.totalorder %v3737, 3
        %vm3759 = vcmp.lt.s32.totalorder %v3737, 4
        %v3760 = vsel %vm3756, %v3740, %v3743
        %v3761 = vsel %vm3759, %v3749, 2102212464
        %v3762 = vsel %vm3758, %v3746, %v3761
        %v3763 = vsel %vm3757, %v3760, %v3762
        %v3764 = vsel %vm3756, %v3743, %v3746
        %v3765 = vsel %vm3759, %v3752, 920167782
        %v3766 = vsel %vm3758, %v3749, %v3765
        %v3767 = vsel %vm3757, %v3764, %v3766
        %v3768 = vsel %vm3756, %v3746, %v3749
        %v3769 = vsel %vm3759, %v3755, 1326507024
        %v3770 = vsel %vm3758, %v3752, %v3769
        %v3771 = vsel %vm3757, %v3768, %v3770
        %v3772 = vshll.u32 %v3732, 8
        %v3773 = vmul.u32.u64.compose %v3772, %v3771
        %v3774 = vextract.low.u32 %v3773
        %v3775 = vextract.high.u32 %v3773
        %v3776 = vmul.u32.u64.compose %v3772, %v3767
        %v3777 = vextract.low.u32 %v3776
        %v3778 = vextract.high.u32 %v3776
        %v3779 = vmul.u32 %v3772, %v3763
        %v3780 = vadd.s32 %v3775, %v3777
        %vm3781 = vc.u32 %v3775, %v3777
        %v3782 = vadd.s32 %v3778, 1
        %v3783 = vsel %vm3781, %v3782, %v3778
        %v3784 = vadd.s32 %v3779, %v3783
        %v3785 = vadd.s32 %v3784, 536870912
        %v3786 = vshrl.u32 %v3785, 30
        %v3787 = vshll.u32 %v3786, 30
        %v3788 = vsub.s32 %v3784, %v3787
        %vm3789 = vcmp.lt.s32.totalorder %v3788, 0
        %v3790 = vsub.s32 0, %v3788
        %v3791 = vsel %vm3789, %v3790, %v3788
        %v3792 = vclz %v3791
        %v3793 = vsub.s32 %v3792, 2
        %vm3794 = vcmp.gt.s32.totalorder 0, %v3793
        %v3795 = vsel %vm3794, 0, %v3793
        %v3796 = vsub.s32 32, %v3795
        %v3797 = vshll.u32 %v3788, %v3795
        %v3798 = vshrl.u32 %v3780, %v3796
        %v3799 = vor.u32 %v3797, %v3798
        %v3800 = vsub.s32 4294967266, %v3795
        %v3801 = vadd.s32 %v3800, 127
        %v3802 = vshll.u32 %v3801, 23
        %v3803 = vor.u32 4788187, %v3802
        %v3804 = vand.u32 2147483647, %v3803
        %v3806 = vcvt.s32.f32 %v3799
        %v3807 = vmul.f32 %v3806, %v3804
        %v3808 = vxor.u32 %v3807, 2147483648
        %v3809 = vsel %vm3726, %v3808, %v3807
        %v3810 = vsub.s32 4, %v3786
        %v3811 = vsel %vm3726, %v3810, %v3786
        %v3812 = vsel %vm3725, %v2383, %v3809
        %v3813 = vsel %vm3725, 0, %v3811
        %v3814 = vcosq.f32.pop %v3812
        %v3815 = vsinq.f32.pop %v3812
        %vm3816 = vweird.f32 %v2383
        %v3817 = vadd.s32 %v3813, 3
        %v3818 = vand.u32 %v3817, 3
        %vm3819 = vcmp.lt.s32.totalorder %v3818, 2
        %vm3820 = vcmp.eq.s32.totalorder %v3818, 0
        %v3821 = vxor.u32 %v3815, 2147483648
        %v3822 = vsel %vm3820, %v3814, %v3821
        %vm3823 = vcmp.eq.s32.totalorder %v3818, 2
        %v3824 = vxor.u32 %v3814, 2147483648
        %v3825 = vsel %vm3823, %v3824, %v3815
        %v3826 = vsel %vm3819, %v3822, %v3825
        %v3827 = vsel %vm3816, nan, %v3826
        %v3828 = vand.u32 2147483647, %v2385
        %vm3829 = vcmp.le.f32.partialorder %v3828, 0.7853982
        %vm3830 = vcmp.lt.s32.totalorder %v2385, 0
        %v3831 = vand.u32 %v2385, 2139095040
        %v3832 = vshrl.u32 %v3831, 23
        %v3833 = vsub.s32 %v3832, 127
        %v3834 = vand.u32 2147483647, %v2385
        %v3835 = vand.u32 %v3834, 8388607
        %v3836 = vor.u32 %v3835, 8388608
        %v3837 = vsub.s32 0, %v3836
        %v3838 = vadd.s32 %v3833, 1
        %vm3839 = vcmp.gt.s32.totalorder %v3838, 0
        %v3840 = vsel %vm3839, %v3838, 0
        %v3841 = vshrl.u32 %v3840, 5
        %v3842 = vand.u32 %v3840, 31
        %v3843 = vsub.s32 32, %v3842
        %v3844 = vshrl.u32 683565275, %v3843
        %v3845 = vshll.u32 683565275, %v3842
        %v3846 = vshrl.u32 2475754826, %v3843
        %v3847 = vor.u32 %v3845, %v3846
        %v3848 = vshll.u32 2475754826, %v3842
        %v3849 = vshrl.u32 2131351028, %v3843
        %v3850 = vor.u32 %v3848, %v3849
        %v3851 = vshll.u32 2131351028, %v3842
        %v3852 = vshrl.u32 2102212464, %v3843
        %v3853 = vor.u32 %v3851, %v3852
        %v3854 = vshll.u32 2102212464, %v3842
        %v3855 = vshrl.u32 920167782, %v3843
        %v3856 = vor.u32 %v3854, %v3855
        %v3857 = vshll.u32 920167782, %v3842
        %v3858 = vshrl.u32 1326507024, %v3843
        %v3859 = vor.u32 %v3857, %v3858
        %vm3860 = vcmp.lt.s32.totalorder %v3841, 1
        %vm3861 = vcmp.lt.s32.totalorder %v3841, 2
        %vm3862 = vcmp.lt.s32.totalorder %v3841, 3
        %vm3863 = vcmp.lt.s32.totalorder %v3841, 4
        %v3864 = vsel %vm3860, %v3844, %v3847
        %v3865 = vsel %vm3863, %v3853, 2102212464
        %v3866 = vsel %vm3862, %v3850, %v3865
        %v3867 = vsel %vm3861, %v3864, %v3866
        %v3868 = vsel %vm3860, %v3847, %v3850
        %v3869 = vsel %vm3863, %v3856, 920167782
        %v3870 = vsel %vm3862, %v3853, %v3869
        %v3871 = vsel %vm3861, %v3868, %v3870
        %v3872 = vsel %vm3860, %v3850, %v3853
        %v3873 = vsel %vm3863, %v3859, 1326507024
        %v3874 = vsel %vm3862, %v3856, %v3873
        %v3875 = vsel %vm3861, %v3872, %v3874
        %v3876 = vshll.u32 %v3836, 8
        %v3877 = vmul.u32.u64.compose %v3876, %v3875
        %v3878 = vextract.low.u32 %v3877
        %v3879 = vextract.high.u32 %v3877
        %v3880 = vmul.u32.u64.compose %v3876, %v3871
        %v3881 = vextract.low.u32 %v3880
        %v3882 = vextract.high.u32 %v3880
        %v3883 = vmul.u32 %v3876, %v3867
        %v3884 = vadd.s32 %v3879, %v3881
        %vm3885 = vc.u32 %v3879, %v3881
        %v3886 = vadd.s32 %v3882, 1
        %v3887 = vsel %vm3885, %v3886, %v3882
        %v3888 = vadd.s32 %v3883, %v3887
        %v3889 = vadd.s32 %v3888, 536870912
        %v3890 = vshrl.u32 %v3889, 30
        %v3891 = vshll.u32 %v3890, 30
        %v3892 = vsub.s32 %v3888, %v3891
        %vm3893 = vcmp.lt.s32.totalorder %v3892, 0
        %v3894 = vsub.s32 0, %v3892
        %v3895 = vsel %vm3893, %v3894, %v3892
        %v3896 = vclz %v3895
        %v3897 = vsub.s32 %v3896, 2
        %vm3898 = vcmp.gt.s32.totalorder 0, %v3897
        %v3899 = vsel %vm3898, 0, %v3897
        %v3900 = vsub.s32 32, %v3899
        %v3901 = vshll.u32 %v3892, %v3899
        %v3902 = vshrl.u32 %v3884, %v3900
        %v3903 = vor.u32 %v3901, %v3902
        %v3904 = vsub.s32 4294967266, %v3899
        %v3905 = vadd.s32 %v3904, 127
        %v3906 = vshll.u32 %v3905, 23
        %v3907 = vor.u32 4788187, %v3906
        %v3908 = vand.u32 2147483647, %v3907
        %v3910 = vcvt.s32.f32 %v3903
        %v3911 = vmul.f32 %v3910, %v3908
        %v3912 = vxor.u32 %v3911, 2147483648
        %v3913 = vsel %vm3830, %v3912, %v3911
        %v3914 = vsub.s32 4, %v3890
        %v3915 = vsel %vm3830, %v3914, %v3890
        %v3916 = vsel %vm3829, %v2385, %v3913
        %v3917 = vsel %vm3829, 0, %v3915
        %v3918 = vcosq.f32.pop %v3916
        %v3919 = vsinq.f32.pop %v3916
        %vm3920 = vweird.f32 %v2385
        %v3921 = vadd.s32 %v3917, 3
        %v3922 = vand.u32 %v3921, 3
        %vm3923 = vcmp.lt.s32.totalorder %v3922, 2
        %vm3924 = vcmp.eq.s32.totalorder %v3922, 0
        %v3925 = vxor.u32 %v3919, 2147483648
        %v3926 = vsel %vm3924, %v3918, %v3925
        %vm3927 = vcmp.eq.s32.totalorder %v3922, 2
        %v3928 = vxor.u32 %v3918, 2147483648
        %v3929 = vsel %vm3927, %v3928, %v3919
        %v3930 = vsel %vm3923, %v3926, %v3929
        %v3931 = vsel %vm3920, nan, %v3930
        %v3932 = vand.u32 2147483647, %v2472
        %vm3933 = vcmp.le.f32.partialorder %v3932, 0.7853982
        %vm3934 = vcmp.lt.s32.totalorder %v2472, 0
        %v3935 = vand.u32 %v2472, 2139095040
        %v3936 = vshrl.u32 %v3935, 23
        %v3937 = vsub.s32 %v3936, 127
        %v3938 = vand.u32 2147483647, %v2472
        %v3939 = vand.u32 %v3938, 8388607
        %v3940 = vor.u32 %v3939, 8388608
        %v3941 = vsub.s32 0, %v3940
        %v3942 = vadd.s32 %v3937, 1
        %vm3943 = vcmp.gt.s32.totalorder %v3942, 0
        %v3944 = vsel %vm3943, %v3942, 0
        %v3945 = vshrl.u32 %v3944, 5
        %v3946 = vand.u32 %v3944, 31
        %v3947 = vsub.s32 32, %v3946
        %v3948 = vshrl.u32 683565275, %v3947
        %v3949 = vshll.u32 683565275, %v3946
        %v3950 = vshrl.u32 2475754826, %v3947
        %v3951 = vor.u32 %v3949, %v3950
        %v3952 = vshll.u32 2475754826, %v3946
        %v3953 = vshrl.u32 2131351028, %v3947
        %v3954 = vor.u32 %v3952, %v3953
        %v3955 = vshll.u32 2131351028, %v3946
        %v3956 = vshrl.u32 2102212464, %v3947
        %v3957 = vor.u32 %v3955, %v3956
        %v3958 = vshll.u32 2102212464, %v3946
        %v3959 = vshrl.u32 920167782, %v3947
        %v3960 = vor.u32 %v3958, %v3959
        %v3961 = vshll.u32 920167782, %v3946
        %v3962 = vshrl.u32 1326507024, %v3947
        %v3963 = vor.u32 %v3961, %v3962
        %vm3964 = vcmp.lt.s32.totalorder %v3945, 1
        %vm3965 = vcmp.lt.s32.totalorder %v3945, 2
        %vm3966 = vcmp.lt.s32.totalorder %v3945, 3
        %vm3967 = vcmp.lt.s32.totalorder %v3945, 4
        %v3968 = vsel %vm3964, %v3948, %v3951
        %v3969 = vsel %vm3967, %v3957, 2102212464
        %v3970 = vsel %vm3966, %v3954, %v3969
        %v3971 = vsel %vm3965, %v3968, %v3970
        %v3972 = vsel %vm3964, %v3951, %v3954
        %v3973 = vsel %vm3967, %v3960, 920167782
        %v3974 = vsel %vm3966, %v3957, %v3973
        %v3975 = vsel %vm3965, %v3972, %v3974
        %v3976 = vsel %vm3964, %v3954, %v3957
        %v3977 = vsel %vm3967, %v3963, 1326507024
        %v3978 = vsel %vm3966, %v3960, %v3977
        %v3979 = vsel %vm3965, %v3976, %v3978
        %v3980 = vshll.u32 %v3940, 8
        %v3981 = vmul.u32.u64.compose %v3980, %v3979
        %v3982 = vextract.low.u32 %v3981
        %v3983 = vextract.high.u32 %v3981
        %v3984 = vmul.u32.u64.compose %v3980, %v3975
        %v3985 = vextract.low.u32 %v3984
        %v3986 = vextract.high.u32 %v3984
        %v3987 = vmul.u32 %v3980, %v3971
        %v3988 = vadd.s32 %v3983, %v3985
        %vm3989 = vc.u32 %v3983, %v3985
        %v3990 = vadd.s32 %v3986, 1
        %v3991 = vsel %vm3989, %v3990, %v3986
        %v3992 = vadd.s32 %v3987, %v3991
        %v3993 = vadd.s32 %v3992, 536870912
        %v3994 = vshrl.u32 %v3993, 30
        %v3995 = vshll.u32 %v3994, 30
        %v3996 = vsub.s32 %v3992, %v3995
        %vm3997 = vcmp.lt.s32.totalorder %v3996, 0
        %v3998 = vsub.s32 0, %v3996
        %v3999 = vsel %vm3997, %v3998, %v3996
        %v4000 = vclz %v3999
        %v4001 = vsub.s32 %v4000, 2
        %vm4002 = vcmp.gt.s32.totalorder 0, %v4001
        %v4003 = vsel %vm4002, 0, %v4001
        %v4004 = vsub.s32 32, %v4003
        %v4005 = vshll.u32 %v3996, %v4003
        %v4006 = vshrl.u32 %v3988, %v4004
        %v4007 = vor.u32 %v4005, %v4006
        %v4008 = vsub.s32 4294967266, %v4003
        %v4009 = vadd.s32 %v4008, 127
        %v4010 = vshll.u32 %v4009, 23
        %v4011 = vor.u32 4788187, %v4010
        %v4012 = vand.u32 2147483647, %v4011
        %v4014 = vcvt.s32.f32 %v4007
        %v4015 = vmul.f32 %v4014, %v4012
        %v4016 = vxor.u32 %v4015, 2147483648
        %v4017 = vsel %vm3934, %v4016, %v4015
        %v4018 = vsub.s32 4, %v3994
        %v4019 = vsel %vm3934, %v4018, %v3994
        %v4020 = vsel %vm3933, %v2472, %v4017
        %v4021 = vsel %vm3933, 0, %v4019
        %v4022 = vcosq.f32.pop %v4020
        %v4023 = vsinq.f32.pop %v4020
        %vm4024 = vweird.f32 %v2472
        %v4025 = vadd.s32 %v4021, 3
        %v4026 = vand.u32 %v4025, 3
        %vm4027 = vcmp.lt.s32.totalorder %v4026, 2
        %vm4028 = vcmp.eq.s32.totalorder %v4026, 0
        %v4029 = vxor.u32 %v4023, 2147483648
        %v4030 = vsel %vm4028, %v4022, %v4029
        %vm4031 = vcmp.eq.s32.totalorder %v4026, 2
        %v4032 = vxor.u32 %v4022, 2147483648
        %v4033 = vsel %vm4031, %v4032, %v4023
        %v4034 = vsel %vm4027, %v4030, %v4033
        %v4035 = vsel %vm4024, nan, %v4034
        %v4036 = vand.u32 2147483647, %v2474
        %vm4037 = vcmp.le.f32.partialorder %v4036, 0.7853982
        %vm4038 = vcmp.lt.s32.totalorder %v2474, 0
        %v4039 = vand.u32 %v2474, 2139095040
        %v4040 = vshrl.u32 %v4039, 23
        %v4041 = vsub.s32 %v4040, 127
        %v4042 = vand.u32 2147483647, %v2474
        %v4043 = vand.u32 %v4042, 8388607
        %v4044 = vor.u32 %v4043, 8388608
        %v4045 = vsub.s32 0, %v4044
        %v4046 = vadd.s32 %v4041, 1
        %vm4047 = vcmp.gt.s32.totalorder %v4046, 0
        %v4048 = vsel %vm4047, %v4046, 0
        %v4049 = vshrl.u32 %v4048, 5
        %v4050 = vand.u32 %v4048, 31
        %v4051 = vsub.s32 32, %v4050
        %v4052 = vshrl.u32 683565275, %v4051
        %v4053 = vshll.u32 683565275, %v4050
        %v4054 = vshrl.u32 2475754826, %v4051
        %v4055 = vor.u32 %v4053, %v4054
        %v4056 = vshll.u32 2475754826, %v4050
        %v4057 = vshrl.u32 2131351028, %v4051
        %v4058 = vor.u32 %v4056, %v4057
        %v4059 = vshll.u32 2131351028, %v4050
        %v4060 = vshrl.u32 2102212464, %v4051
        %v4061 = vor.u32 %v4059, %v4060
        %v4062 = vshll.u32 2102212464, %v4050
        %v4063 = vshrl.u32 920167782, %v4051
        %v4064 = vor.u32 %v4062, %v4063
        %v4065 = vshll.u32 920167782, %v4050
        %v4066 = vshrl.u32 1326507024, %v4051
        %v4067 = vor.u32 %v4065, %v4066
        %vm4068 = vcmp.lt.s32.totalorder %v4049, 1
        %vm4069 = vcmp.lt.s32.totalorder %v4049, 2
        %vm4070 = vcmp.lt.s32.totalorder %v4049, 3
        %vm4071 = vcmp.lt.s32.totalorder %v4049, 4
        %v4072 = vsel %vm4068, %v4052, %v4055
        %v4073 = vsel %vm4071, %v4061, 2102212464
        %v4074 = vsel %vm4070, %v4058, %v4073
        %v4075 = vsel %vm4069, %v4072, %v4074
        %v4076 = vsel %vm4068, %v4055, %v4058
        %v4077 = vsel %vm4071, %v4064, 920167782
        %v4078 = vsel %vm4070, %v4061, %v4077
        %v4079 = vsel %vm4069, %v4076, %v4078
        %v4080 = vsel %vm4068, %v4058, %v4061
        %v4081 = vsel %vm4071, %v4067, 1326507024
        %v4082 = vsel %vm4070, %v4064, %v4081
        %v4083 = vsel %vm4069, %v4080, %v4082
        %v4084 = vshll.u32 %v4044, 8
        %v4085 = vmul.u32.u64.compose %v4084, %v4083
        %v4086 = vextract.low.u32 %v4085
        %v4087 = vextract.high.u32 %v4085
        %v4088 = vmul.u32.u64.compose %v4084, %v4079
        %v4089 = vextract.low.u32 %v4088
        %v4090 = vextract.high.u32 %v4088
        %v4091 = vmul.u32 %v4084, %v4075
        %v4092 = vadd.s32 %v4087, %v4089
        %vm4093 = vc.u32 %v4087, %v4089
        %v4094 = vadd.s32 %v4090, 1
        %v4095 = vsel %vm4093, %v4094, %v4090
        %v4096 = vadd.s32 %v4091, %v4095
        %v4097 = vadd.s32 %v4096, 536870912
        %v4098 = vshrl.u32 %v4097, 30
        %v4099 = vshll.u32 %v4098, 30
        %v4100 = vsub.s32 %v4096, %v4099
        %vm4101 = vcmp.lt.s32.totalorder %v4100, 0
        %v4102 = vsub.s32 0, %v4100
        %v4103 = vsel %vm4101, %v4102, %v4100
        %v4104 = vclz %v4103
        %v4105 = vsub.s32 %v4104, 2
        %vm4106 = vcmp.gt.s32.totalorder 0, %v4105
        %v4107 = vsel %vm4106, 0, %v4105
        %v4108 = vsub.s32 32, %v4107
        %v4109 = vshll.u32 %v4100, %v4107
        %v4110 = vshrl.u32 %v4092, %v4108
        %v4111 = vor.u32 %v4109, %v4110
        %v4112 = vsub.s32 4294967266, %v4107
        %v4113 = vadd.s32 %v4112, 127
        %v4114 = vshll.u32 %v4113, 23
        %v4115 = vor.u32 4788187, %v4114
        %v4116 = vand.u32 2147483647, %v4115
        %v4118 = vcvt.s32.f32 %v4111
        %v4119 = vmul.f32 %v4118, %v4116
        %v4120 = vxor.u32 %v4119, 2147483648
        %v4121 = vsel %vm4038, %v4120, %v4119
        %v4122 = vsub.s32 4, %v4098
        %v4123 = vsel %vm4038, %v4122, %v4098
        %v4124 = vsel %vm4037, %v2474, %v4121
        %v4125 = vsel %vm4037, 0, %v4123
        %v4126 = vcosq.f32.pop %v4124
        %v4127 = vsinq.f32.pop %v4124
        %vm4128 = vweird.f32 %v2474
        %v4129 = vadd.s32 %v4125, 3
        %v4130 = vand.u32 %v4129, 3
        %vm4131 = vcmp.lt.s32.totalorder %v4130, 2
        %vm4132 = vcmp.eq.s32.totalorder %v4130, 0
        %v4133 = vxor.u32 %v4127, 2147483648
        %v4134 = vsel %vm4132, %v4126, %v4133
        %vm4135 = vcmp.eq.s32.totalorder %v4130, 2
        %v4136 = vxor.u32 %v4126, 2147483648
        %v4137 = vsel %vm4135, %v4136, %v4127
        %v4138 = vsel %vm4131, %v4134, %v4137
        %v4139 = vsel %vm4128, nan, %v4138
        %v4140 = vmul.f32 %v2579, %v2579
        %v4141 = vmul.f32 %v2683, %v2683
        %v4142 = vmul.f32 %v2787, %v2787
        %v4143 = vmul.f32 %v2891, %v2891
        %v4144 = vmul.f32 %v2995, %v2995
        %v4145 = vmul.f32 %v3099, %v3099
        %v4146 = vmul.f32 %v3203, %v3203
        %v4147 = vmul.f32 %v3307, %v3307
        %v4148 = vmul.f32 %v3411, %v3411
        %v4149 = vmul.f32 %v3515, %v3515
        %v4150 = vmul.f32 %v3619, %v3619
        %v4151 = vmul.f32 %v3723, %v3723
        %v4152 = vmul.f32 %v3827, %v3827
        %v4153 = vmul.f32 %v3931, %v3931
        %v4154 = vmul.f32 %v4035, %v4035
        %v4155 = vmul.f32 %v4139, %v4139
        %v4156 = vmul.f32 %v4140, -1.3333334
        %v4157 = vmul.f32 %v4141, -1.3333334
        %v4158 = vmul.f32 %v4142, -1.3333334
        %v4159 = vmul.f32 %v4143, -1.3333334
        %v4160 = vmul.f32 %v4144, -1.3333334
        %v4161 = vmul.f32 %v4145, -1.3333334
        %v4162 = vmul.f32 %v4146, -1.3333334
        %v4163 = vmul.f32 %v4147, -1.3333334
        %v4164 = vmul.f32 %v4148, -1.3333334
        %v4165 = vmul.f32 %v4149, -1.3333334
        %v4166 = vmul.f32 %v4150, -1.3333334
        %v4167 = vmul.f32 %v4151, -1.3333334
        %v4168 = vmul.f32 %v4152, -1.3333334
        %v4169 = vmul.f32 %v4153, -1.3333334
        %v4170 = vmul.f32 %v4154, -1.3333334
        %v4171 = vmul.f32 %v4155, -1.3333334
        %v4172 = vadd.f32 %v4156, 2.0
        %v4173 = vadd.f32 %v4157, 2.0
        %v4174 = vadd.f32 %v4158, 2.0
        %v4175 = vadd.f32 %v4159, 2.0
        %v4176 = vadd.f32 %v4160, 2.0
        %v4177 = vadd.f32 %v4161, 2.0
        %v4178 = vadd.f32 %v4162, 2.0
        %v4179 = vadd.f32 %v4163, 2.0
        %v4180 = vadd.f32 %v4164, 2.0
        %v4181 = vadd.f32 %v4165, 2.0
        %v4182 = vadd.f32 %v4166, 2.0
        %v4183 = vadd.f32 %v4167, 2.0
        %v4184 = vadd.f32 %v4168, 2.0
        %v4185 = vadd.f32 %v4169, 2.0
        %v4186 = vadd.f32 %v4170, 2.0
        %v4187 = vadd.f32 %v4171, 2.0
        %v4188 = vmul.f32 %v2579, %v4172
        %v4189 = vmul.f32 %v2683, %v4173
        %v4190 = vmul.f32 %v2787, %v4174
        %v4191 = vmul.f32 %v2891, %v4175
        %v4192 = vmul.f32 %v2995, %v4176
        %v4193 = vmul.f32 %v3099, %v4177
        %v4194 = vmul.f32 %v3203, %v4178
        %v4195 = vmul.f32 %v3307, %v4179
        %v4196 = vmul.f32 %v3411, %v4180
        %v4197 = vmul.f32 %v3515, %v4181
        %v4198 = vmul.f32 %v3619, %v4182
        %v4199 = vmul.f32 %v3723, %v4183
        %v4200 = vmul.f32 %v3827, %v4184
        %v4201 = vmul.f32 %v3931, %v4185
        %v4202 = vmul.f32 %v4035, %v4186
        %v4203 = vmul.f32 %v4139, %v4187
        %v4204 = vld [vmem:[%s5] sm:$0xff]
        %v4205 = vld [vmem:[%s5 + $0x8] sm:$0xff]
        %v4206 = vld [vmem:[%s5 + $0x10] sm:$0xff]
        %v4207 = vld [vmem:[%s5 + $0x18] sm:$0xff]
        %4209 = vset.pattern.permute.xlu0 0
        %4210 = vperm.xlu0 %4209, %v4204
        %v4211 = vpop.permute.xlu0 %4210
        %4214 = vset.pattern.permute.xlu0 0
        %4215 = vperm.xlu0 %4214, %v4205
        %v4216 = vpop.permute.xlu0 %4215
        %4219 = vset.pattern.permute.xlu0 0
        %4220 = vperm.xlu0 %4219, %v4206
        %v4221 = vpop.permute.xlu0 %4220
        %4224 = vset.pattern.permute.xlu0 0
        %4225 = vperm.xlu0 %4224, %v4207
        %v4226 = vpop.permute.xlu0 %4225
        %v4228 = vmul.f32 %v4211, %v4188
        %v4229 = vmul.f32 %v4211, %v4189
        %v4230 = vmul.f32 %v4211, %v4190
        %v4231 = vmul.f32 %v4211, %v4191
        %v4232 = vmul.f32 %v4216, %v4192
        %v4233 = vmul.f32 %v4216, %v4193
        %v4234 = vmul.f32 %v4216, %v4194
        %v4235 = vmul.f32 %v4216, %v4195
        %v4236 = vmul.f32 %v4221, %v4196
        %v4237 = vmul.f32 %v4221, %v4197
        %v4238 = vmul.f32 %v4221, %v4198
        %v4239 = vmul.f32 %v4221, %v4199
        %v4240 = vmul.f32 %v4226, %v4200
        %v4241 = vmul.f32 %v4226, %v4201
        %v4242 = vmul.f32 %v4226, %v4202
        %v4243 = vmul.f32 %v4226, %v4203
        %v4244 = vadd.f32 %v4228, %v4232
        %v4245 = vadd.f32 %v4244, %v4236
        %v4246 = vadd.f32 %v4245, %v4240
        %v4247 = vrot.slane %v4246, 4
        %v4248 = vadd.f32 %v4246, %v4247
        %v4249 = vrot.slane %v4248, 2
        %v4250 = vadd.f32 %v4248, %v4249
        %v4251 = vrot.slane %v4250, 1
        %v4252 = vadd.f32 %v4250, %v4251
        %v4253 = vadd.f32 %v4229, %v4233
        %v4254 = vadd.f32 %v4253, %v4237
        %v4255 = vadd.f32 %v4254, %v4241
        %v4256 = vrot.slane %v4255, 4
        %v4257 = vadd.f32 %v4255, %v4256
        %v4258 = vrot.slane %v4257, 2
        %v4259 = vadd.f32 %v4257, %v4258
        %v4260 = vrot.slane %v4259, 1
        %v4261 = vadd.f32 %v4259, %v4260
        %v4262 = vadd.f32 %v4230, %v4234
        %v4263 = vadd.f32 %v4262, %v4238
        %v4264 = vadd.f32 %v4263, %v4242
        %v4265 = vrot.slane %v4264, 4
        %v4266 = vadd.f32 %v4264, %v4265
        %v4267 = vrot.slane %v4266, 2
        %v4268 = vadd.f32 %v4266, %v4267
        %v4269 = vrot.slane %v4268, 1
        %v4270 = vadd.f32 %v4268, %v4269
        %v4271 = vadd.f32 %v4231, %v4235
        %v4272 = vadd.f32 %v4271, %v4239
        %v4273 = vadd.f32 %v4272, %v4243
        %v4274 = vrot.slane %v4273, 4
        %v4275 = vadd.f32 %v4273, %v4274
        %v4276 = vrot.slane %v4275, 2
        %v4277 = vadd.f32 %v4275, %v4276
        %v4278 = vrot.slane %v4277, 1
        %v4279 = vadd.f32 %v4277, %v4278
        %v4280 = vld [vmem:[#allocation2] sm:$0x1]
        %4282 = vset.pattern.permute.xlu0 0
        %4283 = vperm.xlu0 %4282, %v4280
        %v4284 = vpop.permute.xlu0 %4283
        %v4286 = vlaneseq
        %v4287 = vshrl.u32 %v4286, 7
        %v4288 = vsub.s32 0, %v4287
        %v4289 = vrot.slane %v4284, %v4288
        %v4290 = vadd.f32 %v4252, %v4289
        %v4291 = vadd.f32 %v4261, %v4289
        %v4292 = vadd.f32 %v4270, %v4289
        %v4293 = vadd.f32 %v4279, %v4289
        %v4298 = vcombine.low %v4290, %v4291
        %v4299 = vcombine.low %v4292, %v4293
        %v4301 = vunpack.c.l.s4 1966171168
        %v4302 = vunpack.c.0.s8 %v4301
        %v4303 = vlaneseq
        %v4304 = vshrl.u32 %v4303, 7
        %v4305 = vsub.s32 %v4302, %v4304
        %v4306 = vrot.slane %v4298, %v4305
        %v4308 = vunpack.c.l.s4 1966171168
        %v4309 = vunpack.c.0.s8 %v4308
        %v4310 = vlaneseq
        %v4311 = vshrl.u32 %v4310, 7
        %v4312 = vsub.s32 %v4309, %v4311
        %v4313 = vrot.slane %v4299, %v4312
        %v4314 = vcombine.low %v4306, %v4313
        %v4316 = vunpack.c.l.s4 1966171168
        %v4317 = vunpack.c.0.s8 %v4316
        %v4318 = vlaneseq
        %v4319 = vshrl.u32 %v4318, 7
        %v4320 = vsub.s32 %v4317, %v4319
        %v4321 = vrot.slane %v4314, %v4320
        %v4323 = vlaneseq
        %vm4324 = vcmp.ge.s32.totalorder %v4323, 0
        %vm4325 = vcmp.lt.s32.totalorder %v4323, 512
        %vm4326 = vmand %vm4324, %vm4325
        %4327 = vst.msk [vmem:[%s274] sm:$0xf] %vm4326, %v4321
        %s4328 = sand.u32 %s183, 1
        %s4329 = scalar_lea.sflag [#allocation4], %s4328
        %s4330 = sand.u32 %s183, 1
        %s4331 = smul.addr %s4330, 4
        %s4332 = scalar_lea.vmem [#allocation3], %s4331
        // Predicated region
        $region49: #{tpu_custom_call.1} parent=47 // pred_check
          %p4333 = pneg %p193
        $region50: #{tpu_custom_call.1} parent=47 // pred_check_branch
          %4335 = sbr.rel (%p4333) target = $region52
        $region51: #{tpu_custom_call.1} parent=47 // pred_region
          %s4336 = smul.u32 4, %s23
          %s4338 = ssub.s32 64, 64
          %4339 = vsyncadd %s4329, %s4338
          %s4340 = smul.addr %s4336, 16
          %s4341 = scalar_lea.hbm %s7, %s4340
          %s4343 = sshll.u32 %s4332, 4
          %s4344 = int_to_ptr.vmem [resolvable:$true] %s4343
          %4346 = dma.vmem_to_hbm [thread:$0]  %s4344, 64, %s4341, %s4329
        $region52: #{tpu_custom_call.1} parent=47 // pred_fallthru
          _
      $region48: #{tpu_custom_call.1} parent=5 // pred_fallthru
        _
      %p4347 = scmp.le.s32.totalorder 2, %s18
      // Predicated region
      $region53: #{tpu_custom_call.1} parent=5 // pred_check
        %p4348 = pneg %p4347
      $region54: #{tpu_custom_call.1} parent=5 // pred_check_branch
        %4350 = sbr.rel (%p4348) target = $region56
      $region55: #{tpu_custom_call.1} parent=5 // pred_region
        %s4351 = ssub.s32 %s18, 2
        // Predicated region
        $region57: #{tpu_custom_call.1} parent=55 // pred_check
          %p4352 = pneg %p199
        $region58: #{tpu_custom_call.1} parent=55 // pred_check_branch
          %4354 = sbr.rel (%p4352) target = $region60
        $region59: #{tpu_custom_call.1} parent=55 // pred_region
          %s4355 = sand.u32 %s184, 1
          %s4356 = scalar_lea.sflag [#allocation4], %s4355
          %s4357 = sand.u32 %s184, 1
          %s4358 = smul.addr %s4357, 4
          %s4359 = scalar_lea.vmem [#allocation3], %s4358
          %4360 = dma.done %s4356, 64
        $region60: #{tpu_custom_call.1} parent=55 // pred_fallthru
          _
      $region56: #{tpu_custom_call.1} parent=5 // pred_fallthru
        _
    $region6: #{tpu_custom_call.1} parent=1 // loop_footer
      %s22 = sadd.s32 1, %s18
    $region7: #{tpu_custom_call.1} parent=1 // loop_footer_branch
      %17 = sbr.rel target = $region3
    $region8: #{tpu_custom_call.1} parent=1 // loop_exit
      _
    %4361 = vsyncpa [#allocation4], 1
    %s4362 = scalar_lea.sflag [#allocation4], 1
    %4363 = vsyncpa %s4362, 1

</llo_original>
